<compile_context>
chip_gen: v6e
topology: v6e:2x2x1
jax: 0.10.0
libtpu: 0.0.40
codegen_flags: <defaults>
</compile_context>

<pallas_src>
import functools

import jax
import jax.numpy as jnp
import numpy as np
from jax.experimental import pallas as pl
from jax.experimental.pallas import tpu as pltpu

LANE = 128
SUBLANE = 8


def _round_up(n, m):
    return ((n + m - 1) // m) * m


def _cdiv(a, b):
    return -(-a // b)


def _tensorcores_per_chip():
    """2 on v7x (megacore), 1 on v5e/v6e; best-effort, defaults to 1."""
    try:
        kind = jax.devices()[0].device_kind.lower()
        if "v7" in kind:
            return 2
    except Exception:
        pass
    return 1


def _softmax_over_padded(logits, num_classes, out_dtype):
    """Numerically-stable softmax over the first `num_classes` lanes only."""
    lane = jax.lax.broadcasted_iota(jnp.int32, logits.shape, 1)
    logits = jnp.where(lane < num_classes, logits, -jnp.inf)
    m = jnp.max(logits, axis=-1, keepdims=True)
    e = jnp.exp(logits - m)                      # padded lanes -> exp(-inf) = 0
    denom = jnp.sum(e, axis=-1, keepdims=True)
    return (e / denom).astype(out_dtype)         # exact divide (no approx recip)


def _net_kernel_masked(x_ref, w1_ref, w2_ref, w3_ref, wlast_ref, masks_ref,
                       o_ref, *, num_classes, d):
    """fc1..fc3 (+ReLU, +dropout mask) + fc_last + softmax for one batch tile."""
    x = x_ref[...]                                               # (bt, D) bf16

    # fc1 + ReLU   (bf16 MXU inputs, f32 accumulation)
    h = jnp.dot(x, w1_ref[...], preferred_element_type=jnp.float32)
    h = jnp.maximum(h, 0.0)

    # mask 0 (bf16 -> f32 upcast), fc2 + ReLU
    h = h * masks_ref[:, 0:d].astype(jnp.float32)
    h = jnp.dot(h.astype(jnp.bfloat16), w2_ref[...],
                preferred_element_type=jnp.float32)
    h = jnp.maximum(h, 0.0)

    # mask 1, fc3 + ReLU
    h = h * masks_ref[:, d:2 * d].astype(jnp.float32)
    h = jnp.dot(h.astype(jnp.bfloat16), w3_ref[...],
                preferred_element_type=jnp.float32)
    h = jnp.maximum(h, 0.0)

    # mask 2, fc_last (classes padded to 128 lanes)
    h = h * masks_ref[:, 2 * d:3 * d].astype(jnp.float32)
    logits = jnp.dot(h.astype(jnp.bfloat16), wlast_ref[...],
                     preferred_element_type=jnp.float32)         # (bt, C_pad)

    o_ref[...] = _softmax_over_padded(logits, num_classes, o_ref.dtype)


def _net_kernel_nomask(x_ref, w1_ref, w2_ref, w3_ref, wlast_ref, o_ref,
                       *, num_classes):
    """do_masks=None path: no mask stream, no mask multiplies."""
    x = x_ref[...]                                               # (bt, D) bf16
    h = jnp.dot(x, w1_ref[...], preferred_element_type=jnp.float32)
    h = jnp.maximum(h, 0.0)
    h = jnp.dot(h.astype(jnp.bfloat16), w2_ref[...],
                preferred_element_type=jnp.float32)
    h = jnp.maximum(h, 0.0)
    h = jnp.dot(h.astype(jnp.bfloat16), w3_ref[...],
                preferred_element_type=jnp.float32)
    h = jnp.maximum(h, 0.0)
    logits = jnp.dot(h.astype(jnp.bfloat16), wlast_ref[...],
                     preferred_element_type=jnp.float32)
    o_ref[...] = _softmax_over_padded(logits, num_classes, o_ref.dtype)


def _common_specs(batch_tile, D, C_pad):
    row_spec = pl.BlockSpec((batch_tile, D), lambda i: (i, 0))           # x (bf16)
    w_specs = [
        pl.BlockSpec((D, D), lambda i: (0, 0)),                          # w1
        pl.BlockSpec((D, D), lambda i: (0, 0)),                          # w2
        pl.BlockSpec((D, D), lambda i: (0, 0)),                          # w3
        pl.BlockSpec((D, C_pad), lambda i: (0, 0)),                      # w_last
    ]
    out_spec = pl.BlockSpec((batch_tile, C_pad), lambda i: (i, 0))
    return row_spec, w_specs, out_spec


@functools.partial(jax.jit,
                   static_argnames=("num_classes", "batch_tile",
                                    "vmem_limit_bytes"))
def _forward_masked(x, w1, w2, w3, wlast_p, masks, *,
                    num_classes, batch_tile, vmem_limit_bytes):
    B, D = x.shape
    C_pad = wlast_p.shape[1]
    grid = (B // batch_tile,)
    row_spec, w_specs, out_spec = _common_specs(batch_tile, D, C_pad)
    # Masks: contiguous (B, 3*D) bf16 slab; one lane-aligned DMA per grid step.
    mask_spec = pl.BlockSpec((batch_tile, 3 * D), lambda i: (i, 0))

    kernel = functools.partial(_net_kernel_masked, num_classes=num_classes, d=D)
    return pl.pallas_call(
        kernel,
        out_shape=jax.ShapeDtypeStruct((B, C_pad), jnp.float32),
        grid_spec=pltpu.PrefetchScalarGridSpec(
            num_scalar_prefetch=0,
            grid=grid,
            in_specs=[row_spec] + w_specs + [mask_spec],
            out_specs=out_spec,
        ),
        compiler_params=pltpu.CompilerParams(
            dimension_semantics=("parallel",),
            vmem_limit_bytes=vmem_limit_bytes,
        ),
    )(x, w1, w2, w3, wlast_p, masks)


@functools.partial(jax.jit,
                   static_argnames=("num_classes", "batch_tile",
                                    "vmem_limit_bytes"))
def _forward_nomask(x, w1, w2, w3, wlast_p, *,
                    num_classes, batch_tile, vmem_limit_bytes):
    B, D = x.shape
    C_pad = wlast_p.shape[1]
    grid = (B // batch_tile,)
    row_spec, w_specs, out_spec = _common_specs(batch_tile, D, C_pad)

    kernel = functools.partial(_net_kernel_nomask, num_classes=num_classes)
    return pl.pallas_call(
        kernel,
        out_shape=jax.ShapeDtypeStruct((B, C_pad), jnp.float32),
        grid_spec=pltpu.PrefetchScalarGridSpec(
            num_scalar_prefetch=0,
            grid=grid,
            in_specs=[row_spec] + w_specs,
            out_specs=out_spec,
        ),
        compiler_params=pltpu.CompilerParams(
            dimension_semantics=("parallel",),
            vmem_limit_bytes=vmem_limit_bytes,
        ),
    )(x, w1, w2, w3, wlast_p)


def _vmem_need_bytes(batch_tile, D, C_pad, has_masks):
    """Conservative VMEM footprint: resident weights (x2 pipeline buffers),
    streamed tiles (x2 double buffering), f32 activation temporaries + their
    bf16 casts, plus a small margin."""
    weight_bytes = (3 * D * D + D * C_pad) * 2                    # bf16, resident
    stream_bytes = batch_tile * D * 2                             # x tile (bf16)
    if has_masks:
        stream_bytes += batch_tile * 3 * D * 2                    # mask tile (bf16)
    stream_bytes += batch_tile * C_pad * 4                        # out tile (f32)
    act_bytes = 6 * batch_tile * D * 4                            # live f32 h + bf16 casts
    return 2 * weight_bytes + 2 * stream_bytes + act_bytes + (4 << 20)


def net_forward(x, w1_bf, w2_bf, w3_bf, wlast_pad, do_masks, num_classes,
                *, batch_tile=None):
    """Forward pass of NetFC1x1024DOcust.

    x:          (B, D) float array
    wK_bf:      (D, D) bf16, pre-transposed to (in, out)
    wlast_pad:  (D, C_pad) bf16, pre-transposed, classes padded to a multiple of 128
    do_masks:   None, or a list/tuple of 3 (B, D) dropout masks, or a (3, B, D)
                / (B, 3, D) stacked array (any float dtype)
    returns     (B, num_classes) f32 softmax probabilities
    """
    B, D = x.shape
    C_pad = wlast_pad.shape[1]
    has_masks = do_masks is not None

    # Stream x as bf16 (the first MXU dot consumes bf16 anyway).
    x_bf = x.astype(jnp.bfloat16)

    if has_masks:
        if isinstance(do_masks, (list, tuple)):
            masks = jnp.stack([jnp.asarray(m).astype(jnp.bfloat16)
                               for m in do_masks], axis=1)         # (B, 3, D)
        else:
            masks = jnp.asarray(do_masks).astype(jnp.bfloat16)
            if masks.ndim == 3 and masks.shape[0] == 3:            # (3, B, D) -> (B, 3, D)
                masks = jnp.transpose(masks, (1, 0, 2))
        masks = masks.reshape(B, 3 * D)                            # contiguous per-row slab

    # --- tile selection ------------------------------------------------------
    if batch_tile is None:
        b8 = _round_up(B, SUBLANE)
        ncores = _tensorcores_per_chip()
        # 1-TC chips (v5e/v6e): largest tile up to 256 rows, no forced splitting.
        # 2-TC chips (v7x): >=2 grid steps per TensorCore when the batch allows,
        # so each core's x/mask DMA overlaps the previous tile's MXU work.
        min_steps = min(2 * ncores, max(1, b8 // SUBLANE)) if ncores > 1 else 1
        n_steps = max(_cdiv(b8, 256), min_steps)
        batch_tile = min(256, _round_up(_cdiv(b8, n_steps), SUBLANE))
    batch_tile = max(SUBLANE, _round_up(batch_tile, SUBLANE))

    # --- VMEM budget: shrink the tile if the footprint exceeds 0.9x capacity --
    try:
        cap = pltpu.get_tpu_info().vmem_capacity_bytes
    except Exception:
        cap = 64 << 20                                             # v7x floor
    budget = int(0.9 * cap)
    while (_vmem_need_bytes(batch_tile, D, C_pad, has_masks) > budget
           and batch_tile > SUBLANE):
        batch_tile = max(SUBLANE, _round_up(batch_tile // 2, SUBLANE))
    vmem_limit_bytes = int(min(
        max(_vmem_need_bytes(batch_tile, D, C_pad, has_masks), 32 << 20),
        budget))

    # --- pad batch to a tile multiple, run, slice back ------------------------
    B_pad = _round_up(B, batch_tile)
    if B_pad != B:
        x_bf = jnp.pad(x_bf, ((0, B_pad - B), (0, 0)))
        if has_masks:
            masks = jnp.pad(masks, ((0, B_pad - B), (0, 0)))

    if has_masks:
        out = _forward_masked(x_bf, w1_bf, w2_bf, w3_bf, wlast_pad, masks,
                              num_classes=num_classes, batch_tile=batch_tile,
                              vmem_limit_bytes=vmem_limit_bytes)
    else:
        out = _forward_nomask(x_bf, w1_bf, w2_bf, w3_bf, wlast_pad,
                              num_classes=num_classes, batch_tile=batch_tile,
                              vmem_limit_bytes=vmem_limit_bytes)
    return out[:B, :num_classes]


def init_params(key, dims, classes):
    """uniform(-sqrt(6/nin), sqrt(6/nin)) init matching the module.

    Returns f32 weights already transposed to (in, out)."""
    keys = jax.random.split(key, len(dims))
    w_ts = []
    for d in range(len(dims) - 1):
        nin = dims[d]
        limit = float(np.sqrt(6.0 / nin))
        w_ts.append(jax.random.uniform(
            keys[d], (dims[d], dims[d + 1]), jnp.float32, -limit, limit))
    last_limit = float(np.sqrt(6.0 / dims[-1]))
    wlast_t = jax.random.uniform(
        keys[-1], (dims[-1], classes), jnp.float32, -last_limit, last_limit)
    return w_ts, wlast_t


def prepare_params(w_ts, wlast_t):
    """Cast pre-transposed weights to bf16 and pad the classes dim to 128 lanes."""
    w_bf = [w.astype(jnp.bfloat16) for w in w_ts]
    D, C = wlast_t.shape
    C_pad = _round_up(max(C, LANE), LANE)
    wlast_pad = jnp.zeros((D, C_pad), jnp.bfloat16).at[:, :C].set(
        wlast_t.astype(jnp.bfloat16))
    return w_bf, wlast_pad


def reference_forward(x, w_bf, wlast_pad, do_masks, num_classes):
    """Pure-JAX reference mirroring the kernel math (bf16 dots, f32 elementwise)."""
    def mm(a, w):
        return jnp.dot(a.astype(jnp.bfloat16), w,
                       preferred_element_type=jnp.float32)
    h = jax.nn.relu(mm(x, w_bf[0]))
    if do_masks is not None:
        h = h * jnp.asarray(do_masks[0]).astype(jnp.float32)
    h = jax.nn.relu(mm(h, w_bf[1]))
    if do_masks is not None:
        h = h * jnp.asarray(do_masks[1]).astype(jnp.float32)
    h = jax.nn.relu(mm(h, w_bf[2]))
    if do_masks is not None:
        h = h * jnp.asarray(do_masks[2]).astype(jnp.float32)
    logits = mm(h, wlast_pad)[:, :num_classes]
    return jax.nn.softmax(logits, axis=1)


if __name__ == "__main__":
    # Small shapes consistent with the 3-hidden-layer topology (module uses
    # D=1024; D=256 keeps the demo quick).  B=512 -> multiple grid steps.
    B, D, CLASSES = 512, 256, 2
    dims = [D, D, D, D]

    key = jax.random.PRNGKey(0)
    k_x, k_w, k_m = jax.random.split(key, 3)

    x = jax.random.normal(k_x, (B, D), jnp.float32)
    w_ts_f32, wlast_t_f32 = init_params(k_w, dims, CLASSES)
    w_bf, wlast_pad = prepare_params(w_ts_f32, wlast_t_f32)

    # Dropout masks as supplied to forward(): one per hidden layer (3 total),
    # stored in bf16 (0 and 1/keep = 1.25 are exactly representable).
    keep = 0.8
    mask_keys = jax.random.split(k_m, 3)
    do_masks = [
        ((jax.random.uniform(mk, (B, D)) < keep).astype(jnp.float32) / keep
         ).astype(jnp.bfloat16)
        for mk in mask_keys
    ]

    out = jax.block_until_ready(
        net_forward(x, w_bf[0], w_bf[1], w_bf[2], wlast_pad, do_masks, CLASSES))
    ref = reference_forward(x, w_bf, wlast_pad, do_masks, CLASSES)
    np.testing.assert_allclose(np.asarray(out), np.asarray(ref),
                               atol=1e-2, rtol=1e-2)

    # do_masks=None (eval) path: dedicated mask-free kernel, plus a ragged batch
    # that is not a multiple of the tile, exercising the pad/slice path.
    B2 = 12
    x2 = x[:B2]
    out2 = jax.block_until_ready(
        net_forward(x2, w_bf[0], w_bf[1], w_bf[2], wlast_pad, None, CLASSES))
    ref2 = reference_forward(x2, w_bf, wlast_pad, None, CLASSES)
    np.testing.assert_allclose(np.asarray(out2), np.asarray(ref2),
                               atol=1e-2, rtol=1e-2)

    print("KERNEL_OK")
</pallas_src>

<mosaic_0001>
module attributes {stable_mosaic.version = 11 : i64} {
  func.func @_net_kernel_masked(%arg0: i32, %arg1: memref<256x256xbf16, #tpu.memory_space<vmem>>, %arg2: memref<256x256xbf16, #tpu.memory_space<vmem>>, %arg3: memref<256x256xbf16, #tpu.memory_space<vmem>>, %arg4: memref<256x256xbf16, #tpu.memory_space<vmem>>, %arg5: memref<256x128xbf16, #tpu.memory_space<vmem>>, %arg6: memref<256x768xbf16, #tpu.memory_space<vmem>>, %arg7: memref<256x128xf32, #tpu.memory_space<vmem>>) attributes {dimension_semantics = [#tpu.dimension_semantics<parallel>], iteration_bounds = array<i64: 2>, scalar_prefetch = 0 : i64, scratch_operands = 0 : i64, tpu.core_type = #tpu.core_type<tc>, window_params = [{transform_indices = @transform_0, window_bounds = array<i64: 256, 256>}, {pipeline_mode = #tpu.pipeline_mode<synchronous>, transform_indices = @transform_1, window_bounds = array<i64: 256, 256>}, {pipeline_mode = #tpu.pipeline_mode<synchronous>, transform_indices = @transform_2, window_bounds = array<i64: 256, 256>}, {pipeline_mode = #tpu.pipeline_mode<synchronous>, transform_indices = @transform_3, window_bounds = array<i64: 256, 256>}, {pipeline_mode = #tpu.pipeline_mode<synchronous>, transform_indices = @transform_4, window_bounds = array<i64: 256, 128>}, {transform_indices = @transform_5, window_bounds = array<i64: 256, 768>}, {transform_indices = @transform_6, window_bounds = array<i64: 256, 128>}]} {
    %c0 = arith.constant 0 : index
    %c0_0 = arith.constant 0 : index
    %0 = vector.load %arg1[%c0, %c0_0] : memref<256x256xbf16, #tpu.memory_space<vmem>>, vector<256x256xbf16>
    %c0_1 = arith.constant 0 : index
    %c0_2 = arith.constant 0 : index
    %1 = vector.load %arg2[%c0_1, %c0_2] : memref<256x256xbf16, #tpu.memory_space<vmem>>, vector<256x256xbf16>
    %cst = arith.constant dense<0.000000e+00> : vector<256x256xf32>
    %2 = tpu.matmul %0, %1, %cst {dimension_numbers = #tpu.dot_dimension_numbers<[1], [0], [0], [1], [0, 0, 1, 1], [], []>} : vector<256x256xbf16>, vector<256x256xbf16>, vector<256x256xf32> -> vector<256x256xf32>
    %cst_3 = arith.constant 0.000000e+00 : f32
    %3 = vector.broadcast %cst_3 : f32 to vector<256x256xf32>
    %4 = arith.maximumf %2, %3 : vector<256x256xf32>
    %c0_4 = arith.constant 0 : index
    %c0_5 = arith.constant 0 : index
    %5 = vector.load %arg6[%c0_4, %c0_5] : memref<256x768xbf16, #tpu.memory_space<vmem>>, vector<256x256xbf16>
    %6 = arith.extf %5 : vector<256x256xbf16> to vector<256x256xf32>
    %7 = arith.mulf %4, %6 : vector<256x256xf32>
    %8 = arith.truncf %7 : vector<256x256xf32> to vector<256x256xbf16>
    %c0_6 = arith.constant 0 : index
    %c0_7 = arith.constant 0 : index
    %9 = vector.load %arg3[%c0_6, %c0_7] : memref<256x256xbf16, #tpu.memory_space<vmem>>, vector<256x256xbf16>
    %cst_8 = arith.constant dense<0.000000e+00> : vector<256x256xf32>
    %10 = tpu.matmul %8, %9, %cst_8 {dimension_numbers = #tpu.dot_dimension_numbers<[1], [0], [0], [1], [0, 0, 1, 1], [], []>} : vector<256x256xbf16>, vector<256x256xbf16>, vector<256x256xf32> -> vector<256x256xf32>
    %cst_9 = arith.constant 0.000000e+00 : f32
    %11 = vector.broadcast %cst_9 : f32 to vector<256x256xf32>
    %12 = arith.maximumf %10, %11 : vector<256x256xf32>
    %c0_10 = arith.constant 0 : index
    %c256 = arith.constant 256 : index
    %13 = vector.load %arg6[%c0_10, %c256] : memref<256x768xbf16, #tpu.memory_space<vmem>>, vector<256x256xbf16>
    %14 = arith.extf %13 : vector<256x256xbf16> to vector<256x256xf32>
    %15 = arith.mulf %12, %14 : vector<256x256xf32>
    %16 = arith.truncf %15 : vector<256x256xf32> to vector<256x256xbf16>
    %c0_11 = arith.constant 0 : index
    %c0_12 = arith.constant 0 : index
    %17 = vector.load %arg4[%c0_11, %c0_12] : memref<256x256xbf16, #tpu.memory_space<vmem>>, vector<256x256xbf16>
    %cst_13 = arith.constant dense<0.000000e+00> : vector<256x256xf32>
    %18 = tpu.matmul %16, %17, %cst_13 {dimension_numbers = #tpu.dot_dimension_numbers<[1], [0], [0], [1], [0, 0, 1, 1], [], []>} : vector<256x256xbf16>, vector<256x256xbf16>, vector<256x256xf32> -> vector<256x256xf32>
    %cst_14 = arith.constant 0.000000e+00 : f32
    %19 = vector.broadcast %cst_14 : f32 to vector<256x256xf32>
    %20 = arith.maximumf %18, %19 : vector<256x256xf32>
    %c0_15 = arith.constant 0 : index
    %c512 = arith.constant 512 : index
    %21 = vector.load %arg6[%c0_15, %c512] : memref<256x768xbf16, #tpu.memory_space<vmem>>, vector<256x256xbf16>
    %22 = arith.extf %21 : vector<256x256xbf16> to vector<256x256xf32>
    %23 = arith.mulf %20, %22 : vector<256x256xf32>
    %24 = arith.truncf %23 : vector<256x256xf32> to vector<256x256xbf16>
    %c0_16 = arith.constant 0 : index
    %c0_17 = arith.constant 0 : index
    %25 = vector.load %arg5[%c0_16, %c0_17] : memref<256x128xbf16, #tpu.memory_space<vmem>>, vector<256x128xbf16>
    %cst_18 = arith.constant dense<0.000000e+00> : vector<256x128xf32>
    %26 = tpu.matmul %24, %25, %cst_18 {dimension_numbers = #tpu.dot_dimension_numbers<[1], [0], [0], [1], [0, 0, 1, 1], [], []>} : vector<256x256xbf16>, vector<256x128xbf16>, vector<256x128xf32> -> vector<256x128xf32>
    %27 = tpu.iota {dimensions = array<i32: 1>} : vector<256x128xi32>
    %c2_i32 = arith.constant 2 : i32
    %28 = vector.broadcast %c2_i32 : i32 to vector<256x128xi32>
    %29 = arith.cmpi slt, %27, %28 : vector<256x128xi32>
    %cst_19 = arith.constant 0xFF800000 : f32
    %30 = vector.broadcast %cst_19 : f32 to vector<256x128xf32>
    %31 = arith.select %29, %26, %30 : vector<256x128xi1>, vector<256x128xf32>
    %cst_20 = arith.constant dense<0xFF800000> : vector<256xf32>
    %32 = vector.multi_reduction <maximumf>, %31, %cst_20 [1] : vector<256x128xf32> to vector<256xf32>
    %33 = vector.shape_cast %32 : vector<256xf32> to vector<256x1xf32>
    %34 = vector.broadcast %33 : vector<256x1xf32> to vector<256x128xf32>
    %35 = arith.subf %31, %34 : vector<256x128xf32>
    %36 = math.exp %35 : vector<256x128xf32>
    %cst_21 = arith.constant dense<0.000000e+00> : vector<256xf32>
    %37 = vector.multi_reduction <add>, %36, %cst_21 [1] : vector<256x128xf32> to vector<256xf32>
    %38 = vector.shape_cast %37 : vector<256xf32> to vector<256x1xf32>
    %39 = vector.broadcast %38 : vector<256x1xf32> to vector<256x128xf32>
    %40 = arith.divf %36, %39 : vector<256x128xf32>
    %c0_22 = arith.constant 0 : index
    %c0_23 = arith.constant 0 : index
    %41 = vector.load %arg7[%c0_22, %c0_23] : memref<256x128xf32, #tpu.memory_space<vmem>>, vector<256x128xf32>
    tpu.vector_store %arg7[%c0_22, %c0_23], %40 {strides = array<i32>} : memref<256x128xf32, #tpu.memory_space<vmem>>, vector<256x128xf32>,
    return
  }
  func.func @transform_0(%arg0: i32) -> (i32, i32) {
    %c0_i32 = arith.constant 0 : i32
    %c0_i32_0 = arith.constant 0 : i32
    return %arg0, %c0_i32 : i32, i32
  }
  func.func @transform_1(%arg0: i32) -> (i32, i32) {
    %c0_i32 = arith.constant 0 : i32
    %c0_i32_0 = arith.constant 0 : i32
    %c0_i32_1 = arith.constant 0 : i32
    return %c0_i32, %c0_i32_0 : i32, i32
  }
  func.func @transform_2(%arg0: i32) -> (i32, i32) {
    %c0_i32 = arith.constant 0 : i32
    %c0_i32_0 = arith.constant 0 : i32
    %c0_i32_1 = arith.constant 0 : i32
    return %c0_i32, %c0_i32_0 : i32, i32
  }
  func.func @transform_3(%arg0: i32) -> (i32, i32) {
    %c0_i32 = arith.constant 0 : i32
    %c0_i32_0 = arith.constant 0 : i32
    %c0_i32_1 = arith.constant 0 : i32
    return %c0_i32, %c0_i32_0 : i32, i32
  }
  func.func @transform_4(%arg0: i32) -> (i32, i32) {
    %c0_i32 = arith.constant 0 : i32
    %c0_i32_0 = arith.constant 0 : i32
    %c0_i32_1 = arith.constant 0 : i32
    return %c0_i32, %c0_i32_0 : i32, i32
  }
  func.func @transform_5(%arg0: i32) -> (i32, i32) {
    %c0_i32 = arith.constant 0 : i32
    %c0_i32_0 = arith.constant 0 : i32
    return %arg0, %c0_i32 : i32, i32
  }
  func.func @transform_6(%arg0: i32) -> (i32, i32) {
    %c0_i32 = arith.constant 0 : i32
    %c0_i32_0 = arith.constant 0 : i32
    return %arg0, %c0_i32 : i32, i32
  }
}

</mosaic_0001>

<llo_original>
// kernel: _forward_masked.1
$region0: #{_forward_masked.1}
  #allocation0 [shape = 'u32[]', space=smem, size = 0x4, offset = 0x4, fixed_abs, tag = 'smem constant byte address 0x4 - core index']
  #allocation1 [shape = 'u32[144,128]{1,0:T(1,128)}', space=vmem, size = 0x12000, scoped, tag = 'internal scratch']
  %s0 = inlined_call_operand.hbm [shape: bf16[512,256], index: 0, kind: input, shape index: {}]
  %s1 = inlined_call_operand.hbm [shape: bf16[256,256], index: 1, kind: input, shape index: {}]
  %s2 = inlined_call_operand.hbm [shape: bf16[256,256], index: 2, kind: input, shape index: {}]
  %s3 = inlined_call_operand.hbm [shape: bf16[256,256], index: 3, kind: input, shape index: {}]
  %s4 = inlined_call_operand.hbm [shape: bf16[256,128], index: 4, kind: input, shape index: {}]
  %s5 = inlined_call_operand.hbm [shape: bf16[512,768], index: 5, kind: input, shape index: {}]
  %s6 = inlined_call_operand.hbm [shape: f32[512,128], index: 6, kind: output, shape index: {}]
  %s7 = sld [smem:[#allocation0]]
  $region81: #{_forward_masked.1} parent=0
    _
  %s9 = ssub.s32 1, %s7
  %s10 = scalar_select 0, %s9, %s7
  $region1: #{_forward_masked.1} parent=0
    #allocation2 [shape = 'u8[262144]{0}', space=vmem, size = 0x40000, scoped, tag = 'input window, operand 0']
    #allocation3 [shape = 's32[2]{0}', space=sflag, size = 0x8, scoped, tag = 'scoped memory for _forward_masked.1']
    #allocation4 [shape = 's32[2]{0}', space=sflag, size = 0x8, scoped, tag = 'scoped memory for _forward_masked.1']
    #allocation5 [shape = 'u8[131072]{0}', space=vmem, size = 0x20000, scoped, tag = 'input window, operand 1, single buffered']
    #allocation6 [shape = 's32[1]{0}', space=sflag, size = 0x4, scoped, tag = 'scoped memory for _forward_masked.1']
    #allocation7 [shape = 'u8[131072]{0}', space=vmem, size = 0x20000, scoped, tag = 'input window, operand 2, single buffered']
    #allocation8 [shape = 'u8[131072]{0}', space=vmem, size = 0x20000, scoped, tag = 'input window, operand 3, single buffered']
    #allocation9 [shape = 's32[1]{0}', space=sflag, size = 0x4, scoped, tag = 'scoped memory for _forward_masked.1']
    #allocation10 [shape = 'u8[65536]{0}', space=vmem, size = 0x10000, scoped, tag = 'input window, operand 4, single buffered']
    #allocation11 [shape = 'u8[786432]{0}', space=vmem, size = 0xc0000, scoped, tag = 'input window, operand 5']
    #allocation12 [shape = 's32[2]{0}', space=sflag, size = 0x8, scoped, tag = 'scoped memory for _forward_masked.1']
    #allocation13 [shape = 'u8[262144]{0}', space=vmem, size = 0x40000, scoped, tag = 'output window, operand 0']
    %11 = vsyncpa [#allocation3], 0
    %s12 = scalar_lea.sflag [#allocation3], 1
    %13 = vsyncpa %s12, 0
    %14 = vsyncpa [#allocation6], 0
    %15 = vsyncpa [#allocation9], 0
    %16 = vsyncpa [#allocation12], 0
    %s17 = scalar_lea.sflag [#allocation12], 1
    %18 = vsyncpa %s17, 0
    %19 = vsyncpa [#allocation4], 0
    %s20 = scalar_lea.sflag [#allocation4], 1
    %21 = vsyncpa %s20, 0
    loop: start=0, step=1, limit=4
    $region2: #{_forward_masked.1} parent=1 // loop_pre_header
      _
    $region3: #{_forward_masked.1} parent=1 // loop_header
      %s23 = sphi 0, %s27
      %p24 = scmp.ge.s32.totalorder %s23, 4
      %s33 = sphi 0, %s35
      %s36 = sphi 0, %s33
      %s37 = sphi 0, %s36
      %s53 = sphi 0, %s37
      %s57 = sphi 0, %s57
      %s59 = sphi 0, %s57
      %s60 = sphi 0, %s59
      %s74 = sphi 0, %s60
      %s78 = sphi 0, %s78
      %s80 = sphi 0, %s78
      %s81 = sphi 0, %s80
      %s95 = sphi 0, %s81
      %s99 = sphi 0, %s99
      %s101 = sphi 0, %s99
      %s102 = sphi 0, %s101
      %s116 = sphi 0, %s102
      %s120 = sphi 0, %s120
      %s122 = sphi 0, %s120
      %s123 = sphi 0, %s122
      %s137 = sphi 0, %s123
      %s143 = sphi 0, %s145
      %s146 = sphi 0, %s143
      %s147 = sphi 0, %s146
      %s163 = sphi 0, %s147
      %s169 = sphi 0, %s171
      %s172 = sphi 0, %s169
      %s173 = sphi 0, %s172
      %s189 = sphi 0, %s173
    $region4: #{_forward_masked.1} parent=1 // loop_header_branch
      %26 = sbr.rel (%p24) target = $region8
    $region5: #{_forward_masked.1} parent=1 // loop_body
      %s28 = ssub.s32 %s23, 1
      %s29 = ssub.s32 %s23, 2
      %s30 = sadd.s32 %s23, 1
      %s31 = ssub.s32 %s23, %s30
      %p32 = scmp.eq.s32.totalorder %s31, 0
      %s34 = sadd.s32 %s33, 1
      %s35 = scalar_select %p32, %s33, %s34
      %p38 = pneg %p32
      %p39 = scmp.eq.s32.totalorder %s23, 1
      %p40 = por %p38, %p39
      %p41 = scmp.ne.s32.totalorder %s33, %s36
      %p42 = scmp.eq.s32.totalorder %s23, 0
      %p43 = por %p41, %p42
      %p44 = scmp.ne.s32.totalorder %s33, %s36
      %p45 = scmp.eq.s32.totalorder %s28, 1
      %p46 = por %p44, %p45
      %p47 = scmp.ne.s32.totalorder %s36, %s37
      %p48 = scmp.eq.s32.totalorder %s28, 0
      %p49 = por %p47, %p48
      %p50 = scmp.ne.s32.totalorder %s36, %s37
      %p51 = scmp.eq.s32.totalorder %s29, 1
      %p52 = por %p50, %p51
      %p54 = scmp.ne.s32.totalorder %s37, %s53
      %p55 = scmp.eq.s32.totalorder %s29, 0
      %p56 = por %p54, %p55
      %s58 = sadd.s32 %s57, 1
      %p61 = scmp.eq.s32.totalorder %s23, 1
      %p62 = scmp.ne.s32.totalorder %s57, %s59
      %p63 = scmp.eq.s32.totalorder %s23, 0
      %p64 = por %p62, %p63
      %p65 = scmp.ne.s32.totalorder %s57, %s59
      %p66 = scmp.eq.s32.totalorder %s28, 1
      %p67 = por %p65, %p66
      %p68 = scmp.ne.s32.totalorder %s59, %s60
      %p69 = scmp.eq.s32.totalorder %s28, 0
      %p70 = por %p68, %p69
      %p71 = scmp.ne.s32.totalorder %s59, %s60
      %p72 = scmp.eq.s32.totalorder %s29, 1
      %p73 = por %p71, %p72
      %p75 = scmp.ne.s32.totalorder %s60, %s74
      %p76 = scmp.eq.s32.totalorder %s29, 0
      %p77 = por %p75, %p76
      %s79 = sadd.s32 %s78, 1
      %p82 = scmp.eq.s32.totalorder %s23, 1
      %p83 = scmp.ne.s32.totalorder %s78, %s80
      %p84 = scmp.eq.s32.totalorder %s23, 0
      %p85 = por %p83, %p84
      %p86 = scmp.ne.s32.totalorder %s78, %s80
      %p87 = scmp.eq.s32.totalorder %s28, 1
      %p88 = por %p86, %p87
      %p89 = scmp.ne.s32.totalorder %s80, %s81
      %p90 = scmp.eq.s32.totalorder %s28, 0
      %p91 = por %p89, %p90
      %p92 = scmp.ne.s32.totalorder %s80, %s81
      %p93 = scmp.eq.s32.totalorder %s29, 1
      %p94 = por %p92, %p93
      %p96 = scmp.ne.s32.totalorder %s81, %s95
      %p97 = scmp.eq.s32.totalorder %s29, 0
      %p98 = por %p96, %p97
      %s100 = sadd.s32 %s99, 1
      %p103 = scmp.eq.s32.totalorder %s23, 1
      %p104 = scmp.ne.s32.totalorder %s99, %s101
      %p105 = scmp.eq.s32.totalorder %s23, 0
      %p106 = por %p104, %p105
      %p107 = scmp.ne.s32.totalorder %s99, %s101
      %p108 = scmp.eq.s32.totalorder %s28, 1
      %p109 = por %p107, %p108
      %p110 = scmp.ne.s32.totalorder %s101, %s102
      %p111 = scmp.eq.s32.totalorder %s28, 0
      %p112 = por %p110, %p111
      %p113 = scmp.ne.s32.totalorder %s101, %s102
      %p114 = scmp.eq.s32.totalorder %s29, 1
      %p115 = por %p113, %p114
      %p117 = scmp.ne.s32.totalorder %s102, %s116
      %p118 = scmp.eq.s32.totalorder %s29, 0
      %p119 = por %p117, %p118
      %s121 = sadd.s32 %s120, 1
      %p124 = scmp.eq.s32.totalorder %s23, 1
      %p125 = scmp.ne.s32.totalorder %s120, %s122
      %p126 = scmp.eq.s32.totalorder %s23, 0
      %p127 = por %p125, %p126
      %p128 = scmp.ne.s32.totalorder %s120, %s122
      %p129 = scmp.eq.s32.totalorder %s28, 1
      %p130 = por %p128, %p129
      %p131 = scmp.ne.s32.totalorder %s122, %s123
      %p132 = scmp.eq.s32.totalorder %s28, 0
      %p133 = por %p131, %p132
      %p134 = scmp.ne.s32.totalorder %s122, %s123
      %p135 = scmp.eq.s32.totalorder %s29, 1
      %p136 = por %p134, %p135
      %p138 = scmp.ne.s32.totalorder %s123, %s137
      %p139 = scmp.eq.s32.totalorder %s29, 0
      %p140 = por %p138, %p139
      %s141 = ssub.s32 %s23, %s30
      %p142 = scmp.eq.s32.totalorder %s141, 0
      %s144 = sadd.s32 %s143, 1
      %s145 = scalar_select %p142, %s143, %s144
      %p148 = pneg %p142
      %p149 = scmp.eq.s32.totalorder %s23, 1
      %p150 = por %p148, %p149
      %p151 = scmp.ne.s32.totalorder %s143, %s146
      %p152 = scmp.eq.s32.totalorder %s23, 0
      %p153 = por %p151, %p152
      %p154 = scmp.ne.s32.totalorder %s143, %s146
      %p155 = scmp.eq.s32.totalorder %s28, 1
      %p156 = por %p154, %p155
      %p157 = scmp.ne.s32.totalorder %s146, %s147
      %p158 = scmp.eq.s32.totalorder %s28, 0
      %p159 = por %p157, %p158
      %p160 = scmp.ne.s32.totalorder %s146, %s147
      %p161 = scmp.eq.s32.totalorder %s29, 1
      %p162 = por %p160, %p161
      %p164 = scmp.ne.s32.totalorder %s147, %s163
      %p165 = scmp.eq.s32.totalorder %s29, 0
      %p166 = por %p164, %p165
      %s167 = ssub.s32 %s23, %s30
      %p168 = scmp.eq.s32.totalorder %s167, 0
      %s170 = sadd.s32 %s169, 1
      %s171 = scalar_select %p168, %s169, %s170
      %p174 = pneg %p168
      %p175 = scmp.eq.s32.totalorder %s23, 1
      %p176 = por %p174, %p175
      %p177 = scmp.ne.s32.totalorder %s169, %s172
      %p178 = scmp.eq.s32.totalorder %s23, 0
      %p179 = por %p177, %p178
      %p180 = scmp.ne.s32.totalorder %s169, %s172
      %p181 = scmp.eq.s32.totalorder %s28, 1
      %p182 = por %p180, %p181
      %p183 = scmp.ne.s32.totalorder %s172, %s173
      %p184 = scmp.eq.s32.totalorder %s28, 0
      %p185 = por %p183, %p184
      %p186 = scmp.ne.s32.totalorder %s172, %s173
      %p187 = scmp.eq.s32.totalorder %s29, 1
      %p188 = por %p186, %p187
      %p190 = scmp.ne.s32.totalorder %s173, %s189
      %p191 = scmp.eq.s32.totalorder %s29, 0
      %p192 = por %p190, %p191
      %p193 = scmp.le.s32.totalorder 1, %s23
      %p194 = scmp.lt.s32.totalorder %s23, 3
      %p195 = pnand %p193, %p194
      %p196 = pneg %p195
      // Predicated region
      $region9: #{_forward_masked.1} parent=5 // pred_check
        _
      $region10: #{_forward_masked.1} parent=5 // pred_check_branch
        %198 = sbr.rel (%p195) target = $region12
      $region11: #{_forward_masked.1} parent=5 // pred_region
        %s199 = ssub.s32 %s23, 1
        // Predicated region
        $region13: #{_forward_masked.1} parent=11 // pred_check
          %p200 = pneg %p70
        $region14: #{_forward_masked.1} parent=11 // pred_check_branch
          %202 = sbr.rel (%p200) target = $region16
        $region15: #{_forward_masked.1} parent=11 // pred_region
          %s204 = ssub.s32 4096, 4096
          %205 = vsyncadd [#allocation6], %s204
          %s206 = sshll.u32 [#allocation5], 4
          %s207 = int_to_ptr.vmem [resolvable:$true] %s206
          %212 = dma.hbm_to_vmem [thread:$0]  %s1, 4096, %s207, [#allocation6], 128, 128, 8
        $region16: #{_forward_masked.1} parent=11 // pred_fallthru
          _
        // Predicated region
        $region17: #{_forward_masked.1} parent=11 // pred_check
          %p213 = pneg %p91
        $region18: #{_forward_masked.1} parent=11 // pred_check_branch
          %215 = sbr.rel (%p213) target = $region20
        $region19: #{_forward_masked.1} parent=11 // pred_region
          %s217 = ssub.s32 4096, 4096
          %218 = vsyncadd [#allocation6], %s217
          %s219 = sshll.u32 [#allocation7], 4
          %s220 = int_to_ptr.vmem [resolvable:$true] %s219
          %225 = dma.hbm_to_vmem [thread:$0]  %s2, 4096, %s220, [#allocation6], 128, 128, 8
        $region20: #{_forward_masked.1} parent=11 // pred_fallthru
          _
        // Predicated region
        $region21: #{_forward_masked.1} parent=11 // pred_check
          %p226 = pneg %p112
        $region22: #{_forward_masked.1} parent=11 // pred_check_branch
          %228 = sbr.rel (%p226) target = $region24
        $region23: #{_forward_masked.1} parent=11 // pred_region
          %s230 = ssub.s32 4096, 4096
          %231 = vsyncadd [#allocation9], %s230
          %s232 = sshll.u32 [#allocation8], 4
          %s233 = int_to_ptr.vmem [resolvable:$true] %s232
          %238 = dma.hbm_to_vmem [thread:$0]  %s3, 4096, %s233, [#allocation9], 128, 128, 8
        $region24: #{_forward_masked.1} parent=11 // pred_fallthru
          _
        // Predicated region
        $region25: #{_forward_masked.1} parent=11 // pred_check
          %p239 = pneg %p133
        $region26: #{_forward_masked.1} parent=11 // pred_check_branch
          %241 = sbr.rel (%p239) target = $region28
        $region27: #{_forward_masked.1} parent=11 // pred_region
          %s243 = ssub.s32 2048, 2048
          %244 = vsyncadd [#allocation9], %s243
          %s245 = sshll.u32 [#allocation10], 4
          %s246 = int_to_ptr.vmem [resolvable:$true] %s245
          %251 = dma.hbm_to_vmem [thread:$0]  %s4, 2048, %s246, [#allocation9], 64, 64, 4
        $region28: #{_forward_masked.1} parent=11 // pred_fallthru
          _
      $region12: #{_forward_masked.1} parent=5 // pred_fallthru
        _
      %p252 = scmp.lt.s32.totalorder %s23, 2
      // Predicated region
      $region29: #{_forward_masked.1} parent=5 // pred_check
        %p253 = pneg %p252
      $region30: #{_forward_masked.1} parent=5 // pred_check_branch
        %255 = sbr.rel (%p253) target = $region32
      $region31: #{_forward_masked.1} parent=5 // pred_region
        // Predicated region
        $region33: #{_forward_masked.1} parent=31 // pred_check
          %p256 = pneg %p43
        $region34: #{_forward_masked.1} parent=31 // pred_check_branch
          %258 = sbr.rel (%p256) target = $region36
        $region35: #{_forward_masked.1} parent=31 // pred_region
          %s259 = sand.u32 %s33, 1
          %s260 = scalar_lea.sflag [#allocation3], %s259
          %s261 = sand.u32 %s33, 1
          %s262 = smul.addr %s261, 256
          %s263 = scalar_lea.vmem [#allocation2], %s262
          %s264 = smul.u32 32, %s23
          %s266 = ssub.s32 4096, 4096
          %267 = vsyncadd %s260, %s266
          %s268 = smul.addr %s264, 2
          %s269 = smul.addr %s268, 64
          %s270 = scalar_lea.hbm %s0, %s269
          %s271 = sshll.u32 %s263, 4
          %s272 = int_to_ptr.vmem [resolvable:$true] %s271
          %277 = dma.hbm_to_vmem [thread:$0]  %s270, 4096, %s272, %s260, 128, 128, 8
        $region36: #{_forward_masked.1} parent=31 // pred_fallthru
          _
        // Predicated region
        $region37: #{_forward_masked.1} parent=31 // pred_check
          %p278 = pneg %p153
        $region38: #{_forward_masked.1} parent=31 // pred_check_branch
          %280 = sbr.rel (%p278) target = $region40
        $region39: #{_forward_masked.1} parent=31 // pred_region
          %s281 = sand.u32 %s143, 1
          %s282 = scalar_lea.sflag [#allocation12], %s281
          %s283 = sand.u32 %s143, 1
          %s284 = smul.addr %s283, 768
          %s285 = scalar_lea.vmem [#allocation11], %s284
          %s286 = smul.u32 32, %s23
          %s288 = ssub.s32 12288, 12288
          %289 = vsyncadd %s282, %s288
          %s290 = smul.addr %s286, 6
          %s291 = smul.addr %s290, 64
          %s292 = scalar_lea.hbm %s5, %s291
          %s293 = sshll.u32 %s285, 4
          %s294 = int_to_ptr.vmem [resolvable:$true] %s293
          %299 = dma.hbm_to_vmem [thread:$0]  %s292, 12288, %s294, %s282, 384, 384, 24
        $region40: #{_forward_masked.1} parent=31 // pred_fallthru
          _
      $region32: #{_forward_masked.1} parent=5 // pred_fallthru
        _
      %p300 = scmp.le.s32.totalorder 1, %s23
      %p301 = scmp.lt.s32.totalorder %s23, 3
      %p302 = pnand %p300, %p301
      %p303 = pneg %p302
      // Predicated region
      $region41: #{_forward_masked.1} parent=5 // pred_check
        _
      $region42: #{_forward_masked.1} parent=5 // pred_check_branch
        %305 = sbr.rel (%p302) target = $region44
      $region43: #{_forward_masked.1} parent=5 // pred_region
        %s306 = ssub.s32 %s23, 1
        %s307 = sand.u32 %s36, 1
        %s308 = scalar_lea.sflag [#allocation3], %s307
        %s309 = sand.u32 %s36, 1
        %s310 = smul.addr %s309, 256
        %s311 = scalar_lea.vmem [#allocation2], %s310
        // Predicated region
        $region45: #{_forward_masked.1} parent=43 // pred_check
          %p312 = pneg %p49
        $region46: #{_forward_masked.1} parent=43 // pred_check_branch
          %314 = sbr.rel (%p312) target = $region48
        $region47: #{_forward_masked.1} parent=43 // pred_region
          %315 = dma.done %s308, 4096
        $region48: #{_forward_masked.1} parent=43 // pred_fallthru
          _
        // Predicated region
        $region49: #{_forward_masked.1} parent=43 // pred_check
          %p316 = pneg %p70
        $region50: #{_forward_masked.1} parent=43 // pred_check_branch
          %318 = sbr.rel (%p316) target = $region52
        $region51: #{_forward_masked.1} parent=43 // pred_region
          %319 = dma.done [#allocation6], 4096
        $region52: #{_forward_masked.1} parent=43 // pred_fallthru
          _
        // Predicated region
        $region53: #{_forward_masked.1} parent=43 // pred_check
          %p320 = pneg %p91
        $region54: #{_forward_masked.1} parent=43 // pred_check_branch
          %322 = sbr.rel (%p320) target = $region56
        $region55: #{_forward_masked.1} parent=43 // pred_region
          %323 = dma.done [#allocation6], 4096
        $region56: #{_forward_masked.1} parent=43 // pred_fallthru
          _
        // Predicated region
        $region57: #{_forward_masked.1} parent=43 // pred_check
          %p324 = pneg %p112
        $region58: #{_forward_masked.1} parent=43 // pred_check_branch
          %326 = sbr.rel (%p324) target = $region60
        $region59: #{_forward_masked.1} parent=43 // pred_region
          %327 = dma.done [#allocation9], 4096
        $region60: #{_forward_masked.1} parent=43 // pred_fallthru
          _
        // Predicated region
        $region61: #{_forward_masked.1} parent=43 // pred_check
          %p328 = pneg %p133
        $region62: #{_forward_masked.1} parent=43 // pred_check_branch
          %330 = sbr.rel (%p328) target = $region64
        $region63: #{_forward_masked.1} parent=43 // pred_region
          %331 = dma.done [#allocation9], 2048
        $region64: #{_forward_masked.1} parent=43 // pred_fallthru
          _
        %s332 = sand.u32 %s146, 1
        %s333 = scalar_lea.sflag [#allocation12], %s332
        %s334 = sand.u32 %s146, 1
        %s335 = smul.addr %s334, 768
        %s336 = scalar_lea.vmem [#allocation11], %s335
        // Predicated region
        $region65: #{_forward_masked.1} parent=43 // pred_check
          %p337 = pneg %p159
        $region66: #{_forward_masked.1} parent=43 // pred_check_branch
          %339 = sbr.rel (%p337) target = $region68
        $region67: #{_forward_masked.1} parent=43 // pred_region
          %340 = dma.done %s333, 12288
        $region68: #{_forward_masked.1} parent=43 // pred_fallthru
          _
        %s341 = sand.u32 %s36, 1
        %s342 = scalar_lea.sflag [#allocation3], %s341
        %s343 = sand.u32 %s36, 1
        %s344 = smul.addr %s343, 256
        %s345 = scalar_lea.vmem [#allocation2], %s344
        %p346 = pneg %p49
        %p347 = pneg %p46
        %p348 = pneg %p70
        %p349 = pneg %p67
        %p350 = pneg %p91
        %p351 = pneg %p88
        %p352 = pneg %p112
        %p353 = pneg %p109
        %p354 = pneg %p133
        %p355 = pneg %p130
        %s356 = sand.u32 %s146, 1
        %s357 = scalar_lea.sflag [#allocation12], %s356
        %s358 = sand.u32 %s146, 1
        %s359 = smul.addr %s358, 768
        %s360 = scalar_lea.vmem [#allocation11], %s359
        %p361 = pneg %p159
        %p362 = pneg %p156
        %p363 = pneg %p185
        %p364 = pneg %p182
        %s365 = sand.u32 %s172, 1
        %s366 = scalar_lea.sflag [#allocation4], %s365
        %s367 = sand.u32 %s172, 1
        %s368 = smul.addr %s367, 256
        %s369 = scalar_lea.vmem [#allocation13], %s368
        %s370 = smul.u32 32, %s28
        %s371 = smul.u32 32, %s28
        %s372 = smul.u32 32, %s28
        %v374 = vld [vmem:[%s311] sm:$0xff]
        %v375 = vld [vmem:[%s311 + $0x8] sm:$0xff]
        %v376 = vld [vmem:[%s311 + $0x10] sm:$0xff]
        %v377 = vld [vmem:[%s311 + $0x18] sm:$0xff]
        %v378 = vld [vmem:[%s311 + $0x20] sm:$0xff]
        %v379 = vld [vmem:[%s311 + $0x28] sm:$0xff]
        %v380 = vld [vmem:[%s311 + $0x30] sm:$0xff]
        %v381 = vld [vmem:[%s311 + $0x38] sm:$0xff]
        %v382 = vld [vmem:[%s311 + $0x40] sm:$0xff]
        %v383 = vld [vmem:[%s311 + $0x48] sm:$0xff]
        %v384 = vld [vmem:[%s311 + $0x50] sm:$0xff]
        %v385 = vld [vmem:[%s311 + $0x58] sm:$0xff]
        %v386 = vld [vmem:[%s311 + $0x60] sm:$0xff]
        %v387 = vld [vmem:[%s311 + $0x68] sm:$0xff]
        %v388 = vld [vmem:[%s311 + $0x70] sm:$0xff]
        %v389 = vld [vmem:[%s311 + $0x78] sm:$0xff]
        %v390 = vld [vmem:[%s311 + $0x80] sm:$0xff]
        %v391 = vld [vmem:[%s311 + $0x88] sm:$0xff]
        %v392 = vld [vmem:[%s311 + $0x90] sm:$0xff]
        %v393 = vld [vmem:[%s311 + $0x98] sm:$0xff]
        %v394 = vld [vmem:[%s311 + $0xa0] sm:$0xff]
        %v395 = vld [vmem:[%s311 + $0xa8] sm:$0xff]
        %v396 = vld [vmem:[%s311 + $0xb0] sm:$0xff]
        %v397 = vld [vmem:[%s311 + $0xb8] sm:$0xff]
        %v398 = vld [vmem:[%s311 + $0xc0] sm:$0xff]
        %v399 = vld [vmem:[%s311 + $0xc8] sm:$0xff]
        %v400 = vld [vmem:[%s311 + $0xd0] sm:$0xff]
        %v401 = vld [vmem:[%s311 + $0xd8] sm:$0xff]
        %v402 = vld [vmem:[%s311 + $0xe0] sm:$0xff]
        %v403 = vld [vmem:[%s311 + $0xe8] sm:$0xff]
        %v404 = vld [vmem:[%s311 + $0xf0] sm:$0xff]
        %v405 = vld [vmem:[%s311 + $0xf8] sm:$0xff]
        %v406 = vld [vmem:[#allocation5] sm:$0xff]
        %v407 = vld [vmem:[#allocation5 + $0x8] sm:$0xff]
        %v408 = vld [vmem:[#allocation5 + $0x10] sm:$0xff]
        %v409 = vld [vmem:[#allocation5 + $0x18] sm:$0xff]
        %v410 = vld [vmem:[#allocation5 + $0x20] sm:$0xff]
        %v411 = vld [vmem:[#allocation5 + $0x28] sm:$0xff]
        %v412 = vld [vmem:[#allocation5 + $0x30] sm:$0xff]
        %v413 = vld [vmem:[#allocation5 + $0x38] sm:$0xff]
        %v414 = vld [vmem:[#allocation5 + $0x40] sm:$0xff]
        %v415 = vld [vmem:[#allocation5 + $0x48] sm:$0xff]
        %v416 = vld [vmem:[#allocation5 + $0x50] sm:$0xff]
        %v417 = vld [vmem:[#allocation5 + $0x58] sm:$0xff]
        %v418 = vld [vmem:[#allocation5 + $0x60] sm:$0xff]
        %v419 = vld [vmem:[#allocation5 + $0x68] sm:$0xff]
        %v420 = vld [vmem:[#allocation5 + $0x70] sm:$0xff]
        %v421 = vld [vmem:[#allocation5 + $0x78] sm:$0xff]
        %v422 = vld [vmem:[#allocation5 + $0x80] sm:$0xff]
        %v423 = vld [vmem:[#allocation5 + $0x88] sm:$0xff]
        %v424 = vld [vmem:[#allocation5 + $0x90] sm:$0xff]
        %v425 = vld [vmem:[#allocation5 + $0x98] sm:$0xff]
        %v426 = vld [vmem:[#allocation5 + $0xa0] sm:$0xff]
        %v427 = vld [vmem:[#allocation5 + $0xa8] sm:$0xff]
        %v428 = vld [vmem:[#allocation5 + $0xb0] sm:$0xff]
        %v429 = vld [vmem:[#allocation5 + $0xb8] sm:$0xff]
        %v430 = vld [vmem:[#allocation5 + $0xc0] sm:$0xff]
        %v431 = vld [vmem:[#allocation5 + $0xc8] sm:$0xff]
        %v432 = vld [vmem:[#allocation5 + $0xd0] sm:$0xff]
        %v433 = vld [vmem:[#allocation5 + $0xd8] sm:$0xff]
        %v434 = vld [vmem:[#allocation5 + $0xe0] sm:$0xff]
        %v435 = vld [vmem:[#allocation5 + $0xe8] sm:$0xff]
        %v436 = vld [vmem:[#allocation5 + $0xf0] sm:$0xff]
        %v437 = vld [vmem:[#allocation5 + $0xf8] sm:$0xff]
        %v470 = vunpack.c.l.b16 %v374
        %v471 = vunpack.c.h.b16 %v374
        %v472 = vunpack.c.l.b16 %v375
        %v473 = vunpack.c.h.b16 %v375
        %v474 = vunpack.c.l.b16 %v376
        %v475 = vunpack.c.h.b16 %v376
        %v476 = vunpack.c.l.b16 %v377
        %v477 = vunpack.c.h.b16 %v377
        %v478 = vunpack.c.l.b16 %v378
        %v479 = vunpack.c.h.b16 %v378
        %v480 = vunpack.c.l.b16 %v379
        %v481 = vunpack.c.h.b16 %v379
        %v482 = vunpack.c.l.b16 %v380
        %v483 = vunpack.c.h.b16 %v380
        %v484 = vunpack.c.l.b16 %v381
        %v485 = vunpack.c.h.b16 %v381
        %v486 = vunpack.c.l.b16 %v382
        %v487 = vunpack.c.h.b16 %v382
        %v488 = vunpack.c.l.b16 %v383
        %v489 = vunpack.c.h.b16 %v383
        %v490 = vunpack.c.l.b16 %v384
        %v491 = vunpack.c.h.b16 %v384
        %v492 = vunpack.c.l.b16 %v385
        %v493 = vunpack.c.h.b16 %v385
        %v494 = vunpack.c.l.b16 %v386
        %v495 = vunpack.c.h.b16 %v386
        %v496 = vunpack.c.l.b16 %v387
        %v497 = vunpack.c.h.b16 %v387
        %v498 = vunpack.c.l.b16 %v388
        %v499 = vunpack.c.h.b16 %v388
        %v500 = vunpack.c.l.b16 %v389
        %v501 = vunpack.c.h.b16 %v389
        %v502 = vunpack.c.l.b16 %v390
        %v503 = vunpack.c.h.b16 %v390
        %v504 = vunpack.c.l.b16 %v391
        %v505 = vunpack.c.h.b16 %v391
        %v506 = vunpack.c.l.b16 %v392
        %v507 = vunpack.c.h.b16 %v392
        %v508 = vunpack.c.l.b16 %v393
        %v509 = vunpack.c.h.b16 %v393
        %v510 = vunpack.c.l.b16 %v394
        %v511 = vunpack.c.h.b16 %v394
        %v512 = vunpack.c.l.b16 %v395
        %v513 = vunpack.c.h.b16 %v395
        %v514 = vunpack.c.l.b16 %v396
        %v515 = vunpack.c.h.b16 %v396
        %v516 = vunpack.c.l.b16 %v397
        %v517 = vunpack.c.h.b16 %v397
        %v518 = vunpack.c.l.b16 %v398
        %v519 = vunpack.c.h.b16 %v398
        %v520 = vunpack.c.l.b16 %v399
        %v521 = vunpack.c.h.b16 %v399
        %v522 = vunpack.c.l.b16 %v400
        %v523 = vunpack.c.h.b16 %v400
        %v524 = vunpack.c.l.b16 %v401
        %v525 = vunpack.c.h.b16 %v401
        %v526 = vunpack.c.l.b16 %v402
        %v527 = vunpack.c.h.b16 %v402
        %v528 = vunpack.c.l.b16 %v403
        %v529 = vunpack.c.h.b16 %v403
        %v530 = vunpack.c.l.b16 %v404
        %v531 = vunpack.c.h.b16 %v404
        %v532 = vunpack.c.l.b16 %v405
        %v533 = vunpack.c.h.b16 %v405
        %v534 = vpack.c.b16 %v472, %v470
        %v535 = vpack.c.b16 %v473, %v471
        %v536 = vpack.c.b16 %v476, %v474
        %v537 = vpack.c.b16 %v477, %v475
        %v538 = vpack.c.b16 %v480, %v478
        %v539 = vpack.c.b16 %v481, %v479
        %v540 = vpack.c.b16 %v484, %v482
        %v541 = vpack.c.b16 %v485, %v483
        %v542 = vpack.c.b16 %v488, %v486
        %v543 = vpack.c.b16 %v489, %v487
        %v544 = vpack.c.b16 %v492, %v490
        %v545 = vpack.c.b16 %v493, %v491
        %v546 = vpack.c.b16 %v496, %v494
        %v547 = vpack.c.b16 %v497, %v495
        %v548 = vpack.c.b16 %v500, %v498
        %v549 = vpack.c.b16 %v501, %v499
        %v550 = vpack.c.b16 %v504, %v502
        %v551 = vpack.c.b16 %v505, %v503
        %v552 = vpack.c.b16 %v508, %v506
        %v553 = vpack.c.b16 %v509, %v507
        %v554 = vpack.c.b16 %v512, %v510
        %v555 = vpack.c.b16 %v513, %v511
        %v556 = vpack.c.b16 %v516, %v514
        %v557 = vpack.c.b16 %v517, %v515
        %v558 = vpack.c.b16 %v520, %v518
        %v559 = vpack.c.b16 %v521, %v519
        %v560 = vpack.c.b16 %v524, %v522
        %v561 = vpack.c.b16 %v525, %v523
        %v562 = vpack.c.b16 %v528, %v526
        %v563 = vpack.c.b16 %v529, %v527
        %v564 = vpack.c.b16 %v532, %v530
        %v565 = vpack.c.b16 %v533, %v531
        %v630 = vunpack.c.l.b16 %v406
        %v631 = vunpack.c.h.b16 %v406
        %v632 = vunpack.c.l.b16 %v407
        %v633 = vunpack.c.h.b16 %v407
        %v634 = vunpack.c.l.b16 %v408
        %v635 = vunpack.c.h.b16 %v408
        %v636 = vunpack.c.l.b16 %v409
        %v637 = vunpack.c.h.b16 %v409
        %v638 = vunpack.c.l.b16 %v410
        %v639 = vunpack.c.h.b16 %v410
        %v640 = vunpack.c.l.b16 %v411
        %v641 = vunpack.c.h.b16 %v411
        %v642 = vunpack.c.l.b16 %v412
        %v643 = vunpack.c.h.b16 %v412
        %v644 = vunpack.c.l.b16 %v413
        %v645 = vunpack.c.h.b16 %v413
        %v646 = vunpack.c.l.b16 %v414
        %v647 = vunpack.c.h.b16 %v414
        %v648 = vunpack.c.l.b16 %v415
        %v649 = vunpack.c.h.b16 %v415
        %v650 = vunpack.c.l.b16 %v416
        %v651 = vunpack.c.h.b16 %v416
        %v652 = vunpack.c.l.b16 %v417
        %v653 = vunpack.c.h.b16 %v417
        %v654 = vunpack.c.l.b16 %v418
        %v655 = vunpack.c.h.b16 %v418
        %v656 = vunpack.c.l.b16 %v419
        %v657 = vunpack.c.h.b16 %v419
        %v658 = vunpack.c.l.b16 %v420
        %v659 = vunpack.c.h.b16 %v420
        %v660 = vunpack.c.l.b16 %v421
        %v661 = vunpack.c.h.b16 %v421
        %v662 = vunpack.c.l.b16 %v422
        %v663 = vunpack.c.h.b16 %v422
        %v664 = vunpack.c.l.b16 %v423
        %v665 = vunpack.c.h.b16 %v423
        %v666 = vunpack.c.l.b16 %v424
        %v667 = vunpack.c.h.b16 %v424
        %v668 = vunpack.c.l.b16 %v425
        %v669 = vunpack.c.h.b16 %v425
        %v670 = vunpack.c.l.b16 %v426
        %v671 = vunpack.c.h.b16 %v426
        %v672 = vunpack.c.l.b16 %v427
        %v673 = vunpack.c.h.b16 %v427
        %v674 = vunpack.c.l.b16 %v428
        %v675 = vunpack.c.h.b16 %v428
        %v676 = vunpack.c.l.b16 %v429
        %v677 = vunpack.c.h.b16 %v429
        %v678 = vunpack.c.l.b16 %v430
        %v679 = vunpack.c.h.b16 %v430
        %v680 = vunpack.c.l.b16 %v431
        %v681 = vunpack.c.h.b16 %v431
        %v682 = vunpack.c.l.b16 %v432
        %v683 = vunpack.c.h.b16 %v432
        %v684 = vunpack.c.l.b16 %v433
        %v685 = vunpack.c.h.b16 %v433
        %v686 = vunpack.c.l.b16 %v434
        %v687 = vunpack.c.h.b16 %v434
        %v688 = vunpack.c.l.b16 %v435
        %v689 = vunpack.c.h.b16 %v435
        %v690 = vunpack.c.l.b16 %v436
        %v691 = vunpack.c.h.b16 %v436
        %v692 = vunpack.c.l.b16 %v437
        %v693 = vunpack.c.h.b16 %v437
        %v694 = vpack.c.b16 %v632, %v630
        %v695 = vpack.c.b16 %v633, %v631
        %v696 = vpack.c.b16 %v636, %v634
        %v697 = vpack.c.b16 %v637, %v635
        %v698 = vpack.c.b16 %v640, %v638
        %v699 = vpack.c.b16 %v641, %v639
        %v700 = vpack.c.b16 %v644, %v642
        %v701 = vpack.c.b16 %v645, %v643
        %v702 = vpack.c.b16 %v648, %v646
        %v703 = vpack.c.b16 %v649, %v647
        %v704 = vpack.c.b16 %v652, %v650
        %v705 = vpack.c.b16 %v653, %v651
        %v706 = vpack.c.b16 %v656, %v654
        %v707 = vpack.c.b16 %v657, %v655
        %v708 = vpack.c.b16 %v660, %v658
        %v709 = vpack.c.b16 %v661, %v659
        %v710 = vpack.c.b16 %v664, %v662
        %v711 = vpack.c.b16 %v665, %v663
        %v712 = vpack.c.b16 %v668, %v666
        %v713 = vpack.c.b16 %v669, %v667
        %v714 = vpack.c.b16 %v672, %v670
        %v715 = vpack.c.b16 %v673, %v671
        %v716 = vpack.c.b16 %v676, %v674
        %v717 = vpack.c.b16 %v677, %v675
        %v718 = vpack.c.b16 %v680, %v678
        %v719 = vpack.c.b16 %v681, %v679
        %v720 = vpack.c.b16 %v684, %v682
        %v721 = vpack.c.b16 %v685, %v683
        %v722 = vpack.c.b16 %v688, %v686
        %v723 = vpack.c.b16 %v689, %v687
        %v724 = vpack.c.b16 %v692, %v690
        %v725 = vpack.c.b16 %v693, %v691
        %758 = vmatprep.subr.bf16.mxu0 %v709
        %759 = vmatpush1.bf16.msra.mxu0 %v708
        %760 = vmatprep.subr.bf16.mxu0 %v707
        %761 = vmatpush1.bf16.msra.mxu0 %v706
        %762 = vmatprep.subr.bf16.mxu0 %v705
        %763 = vmatpush1.bf16.msra.mxu0 %v704
        %764 = vmatprep.subr.bf16.mxu0 %v703
        %765 = vmatpush1.bf16.msra.mxu0 %v702
        %766 = vmatprep.subr.bf16.mxu0 %v701
        %767 = vmatpush1.bf16.msra.mxu0 %v700
        %768 = vmatprep.subr.bf16.mxu0 %v699
        %769 = vmatpush1.bf16.msra.mxu0 %v698
        %770 = vmatprep.subr.bf16.mxu0 %v697
        %771 = vmatpush1.bf16.msra.mxu0 %v696
        %772 = vmatprep.subr.bf16.mxu0 %v695
        %773 = vmatpush1.bf16.msra.mxu0 %v694
        %774 = vmatprep.subr.bf16.mxu0 %v725
        %775 = vmatpush2.bf16.msra.mxu0 %v724
        %776 = vmatprep.subr.bf16.mxu0 %v723
        %777 = vmatpush2.bf16.msra.mxu0 %v722
        %778 = vmatprep.subr.bf16.mxu0 %v721
        %779 = vmatpush2.bf16.msra.mxu0 %v720
        %780 = vmatprep.subr.bf16.mxu0 %v719
        %781 = vmatpush2.bf16.msra.mxu0 %v718
        %782 = vmatprep.subr.bf16.mxu0 %v717
        %783 = vmatpush2.bf16.msra.mxu0 %v716
        %784 = vmatprep.subr.bf16.mxu0 %v715
        %785 = vmatpush2.bf16.msra.mxu0 %v714
        %786 = vmatprep.subr.bf16.mxu0 %v713
        %787 = vmatpush2.bf16.msra.mxu0 %v712
        %788 = vmatprep.subr.bf16.mxu0 %v711
        %789 = vmatpush2.bf16.msra.mxu0 %v710
        %790 = vmatprep.mubr.bf16.mxu0 %v535
        %791 = vmatmul.mubr.bf16.gmra.mxu0 %v534
        %v792 = vpop.f32.mrf.mxu0
        %v793 = vadd.f32 0.0, %v792
        %v794 = vpop.f32.mrf.mxu0
        %v795 = vadd.f32 0.0, %v794
        %v796 = vpop.f32.mrf.mxu0
        %v797 = vadd.f32 0.0, %v796
        %v798 = vpop.f32.mrf.mxu0
        %v799 = vadd.f32 0.0, %v798
        %800 = vmatprep.mubr.bf16.mxu0 %v537
        %801 = vmatmul.mubr.bf16.gmra.mxu0 %v536
        %v802 = vpop.f32.mrf.mxu0
        %v803 = vadd.f32 0.0, %v802
        %v804 = vpop.f32.mrf.mxu0
        %v805 = vadd.f32 0.0, %v804
        %v806 = vpop.f32.mrf.mxu0
        %v807 = vadd.f32 0.0, %v806
        %v808 = vpop.f32.mrf.mxu0
        %v809 = vadd.f32 0.0, %v808
        %810 = vmatprep.mubr.bf16.mxu0 %v539
        %811 = vmatmul.mubr.bf16.gmra.mxu0 %v538
        %v812 = vpop.f32.mrf.mxu0
        %v813 = vadd.f32 0.0, %v812
        %v814 = vpop.f32.mrf.mxu0
        %v815 = vadd.f32 0.0, %v814
        %v816 = vpop.f32.mrf.mxu0
        %v817 = vadd.f32 0.0, %v816
        %v818 = vpop.f32.mrf.mxu0
        %v819 = vadd.f32 0.0, %v818
        %820 = vmatprep.mubr.bf16.mxu0 %v541
        %821 = vmatmul.mubr.bf16.gmra.mxu0 %v540
        %v822 = vpop.f32.mrf.mxu0
        %v823 = vadd.f32 0.0, %v822
        %v824 = vpop.f32.mrf.mxu0
        %v825 = vadd.f32 0.0, %v824
        %v826 = vpop.f32.mrf.mxu0
        %v827 = vadd.f32 0.0, %v826
        %v828 = vpop.f32.mrf.mxu0
        %v829 = vadd.f32 0.0, %v828
        %830 = vmatprep.mubr.bf16.mxu0 %v543
        %831 = vmatmul.mubr.bf16.gmra.mxu0 %v542
        %v832 = vpop.f32.mrf.mxu0
        %v833 = vadd.f32 0.0, %v832
        %v834 = vpop.f32.mrf.mxu0
        %v835 = vadd.f32 0.0, %v834
        %v836 = vpop.f32.mrf.mxu0
        %v837 = vadd.f32 0.0, %v836
        %v838 = vpop.f32.mrf.mxu0
        %v839 = vadd.f32 0.0, %v838
        %840 = vmatprep.mubr.bf16.mxu0 %v545
        %841 = vmatmul.mubr.bf16.gmra.mxu0 %v544
        %v842 = vpop.f32.mrf.mxu0
        %v843 = vadd.f32 0.0, %v842
        %v844 = vpop.f32.mrf.mxu0
        %v845 = vadd.f32 0.0, %v844
        %v846 = vpop.f32.mrf.mxu0
        %v847 = vadd.f32 0.0, %v846
        %v848 = vpop.f32.mrf.mxu0
        %v849 = vadd.f32 0.0, %v848
        %850 = vmatprep.mubr.bf16.mxu0 %v547
        %851 = vmatmul.mubr.bf16.gmra.mxu0 %v546
        %v852 = vpop.f32.mrf.mxu0
        %v853 = vadd.f32 0.0, %v852
        %v854 = vpop.f32.mrf.mxu0
        %v855 = vadd.f32 0.0, %v854
        %v856 = vpop.f32.mrf.mxu0
        %v857 = vadd.f32 0.0, %v856
        %v858 = vpop.f32.mrf.mxu0
        %v859 = vadd.f32 0.0, %v858
        %860 = vmatprep.mubr.bf16.mxu0 %v549
        %861 = vmatmul.mubr.bf16.gmra.mxu0 %v548
        %v862 = vpop.f32.mrf.mxu0
        %v863 = vadd.f32 0.0, %v862
        %v864 = vpop.f32.mrf.mxu0
        %v865 = vadd.f32 0.0, %v864
        %v866 = vpop.f32.mrf.mxu0
        %v867 = vadd.f32 0.0, %v866
        %v868 = vpop.f32.mrf.mxu0
        %v869 = vadd.f32 0.0, %v868
        %870 = vmatprep.mubr.bf16.mxu0 %v551
        %871 = vmatmul.mubr.bf16.gmra.mxu0 %v550
        %v872 = vpop.f32.mrf.mxu0
        %v873 = vadd.f32 0.0, %v872
        %v874 = vpop.f32.mrf.mxu0
        %v875 = vadd.f32 0.0, %v874
        %v876 = vpop.f32.mrf.mxu0
        %v877 = vadd.f32 0.0, %v876
        %v878 = vpop.f32.mrf.mxu0
        %v879 = vadd.f32 0.0, %v878
        %880 = vmatprep.mubr.bf16.mxu0 %v553
        %881 = vmatmul.mubr.bf16.gmra.mxu0 %v552
        %v882 = vpop.f32.mrf.mxu0
        %v883 = vadd.f32 0.0, %v882
        %v884 = vpop.f32.mrf.mxu0
        %v885 = vadd.f32 0.0, %v884
        %v886 = vpop.f32.mrf.mxu0
        %v887 = vadd.f32 0.0, %v886
        %v888 = vpop.f32.mrf.mxu0
        %v889 = vadd.f32 0.0, %v888
        %890 = vmatprep.mubr.bf16.mxu0 %v555
        %891 = vmatmul.mubr.bf16.gmra.mxu0 %v554
        %v892 = vpop.f32.mrf.mxu0
        %v893 = vadd.f32 0.0, %v892
        %v894 = vpop.f32.mrf.mxu0
        %v895 = vadd.f32 0.0, %v894
        %v896 = vpop.f32.mrf.mxu0
        %v897 = vadd.f32 0.0, %v896
        %v898 = vpop.f32.mrf.mxu0
        %v899 = vadd.f32 0.0, %v898
        %900 = vmatprep.mubr.bf16.mxu0 %v557
        %901 = vmatmul.mubr.bf16.gmra.mxu0 %v556
        %v902 = vpop.f32.mrf.mxu0
        %v903 = vadd.f32 0.0, %v902
        %v904 = vpop.f32.mrf.mxu0
        %v905 = vadd.f32 0.0, %v904
        %v906 = vpop.f32.mrf.mxu0
        %v907 = vadd.f32 0.0, %v906
        %v908 = vpop.f32.mrf.mxu0
        %v909 = vadd.f32 0.0, %v908
        %910 = vmatprep.mubr.bf16.mxu0 %v559
        %911 = vmatmul.mubr.bf16.gmra.mxu0 %v558
        %v912 = vpop.f32.mrf.mxu0
        %v913 = vadd.f32 0.0, %v912
        %v914 = vpop.f32.mrf.mxu0
        %v915 = vadd.f32 0.0, %v914
        %v916 = vpop.f32.mrf.mxu0
        %v917 = vadd.f32 0.0, %v916
        %v918 = vpop.f32.mrf.mxu0
        %v919 = vadd.f32 0.0, %v918
        %920 = vmatprep.mubr.bf16.mxu0 %v561
        %921 = vmatmul.mubr.bf16.gmra.mxu0 %v560
        %v922 = vpop.f32.mrf.mxu0
        %v923 = vadd.f32 0.0, %v922
        %v924 = vpop.f32.mrf.mxu0
        %v925 = vadd.f32 0.0, %v924
        %v926 = vpop.f32.mrf.mxu0
        %v927 = vadd.f32 0.0, %v926
        %v928 = vpop.f32.mrf.mxu0
        %v929 = vadd.f32 0.0, %v928
        %930 = vmatprep.mubr.bf16.mxu0 %v563
        %931 = vmatmul.mubr.bf16.gmra.mxu0 %v562
        %v932 = vpop.f32.mrf.mxu0
        %v933 = vadd.f32 0.0, %v932
        %v934 = vpop.f32.mrf.mxu0
        %v935 = vadd.f32 0.0, %v934
        %v936 = vpop.f32.mrf.mxu0
        %v937 = vadd.f32 0.0, %v936
        %v938 = vpop.f32.mrf.mxu0
        %v939 = vadd.f32 0.0, %v938
        %940 = vmatprep.mubr.bf16.mxu0 %v565
        %941 = vmatmul.mubr.bf16.gmra.mxu0 %v564
        %v942 = vpop.f32.mrf.mxu0
        %v943 = vadd.f32 0.0, %v942
        %v944 = vpop.f32.mrf.mxu0
        %v945 = vadd.f32 0.0, %v944
        %v946 = vpop.f32.mrf.mxu0
        %v947 = vadd.f32 0.0, %v946
        %v948 = vpop.f32.mrf.mxu0
        %v949 = vadd.f32 0.0, %v948
        %950 = vdwg.mxu0
        %v951 = vmax.f32 %v793, 0.0
        %v952 = vmax.f32 %v795, 0.0
        %v953 = vmax.f32 %v797, 0.0
        %v954 = vmax.f32 %v799, 0.0
        %v955 = vmax.f32 %v803, 0.0
        %v956 = vmax.f32 %v805, 0.0
        %v957 = vmax.f32 %v807, 0.0
        %v958 = vmax.f32 %v809, 0.0
        %v959 = vmax.f32 %v813, 0.0
        %v960 = vmax.f32 %v815, 0.0
        %v961 = vmax.f32 %v817, 0.0
        %v962 = vmax.f32 %v819, 0.0
        %v963 = vmax.f32 %v823, 0.0
        %v964 = vmax.f32 %v825, 0.0
        %v965 = vmax.f32 %v827, 0.0
        %v966 = vmax.f32 %v829, 0.0
        %v967 = vmax.f32 %v833, 0.0
        %v968 = vmax.f32 %v835, 0.0
        %v969 = vmax.f32 %v837, 0.0
        %v970 = vmax.f32 %v839, 0.0
        %v971 = vmax.f32 %v843, 0.0
        %v972 = vmax.f32 %v845, 0.0
        %v973 = vmax.f32 %v847, 0.0
        %v974 = vmax.f32 %v849, 0.0
        %v975 = vmax.f32 %v853, 0.0
        %v976 = vmax.f32 %v855, 0.0
        %v977 = vmax.f32 %v857, 0.0
        %v978 = vmax.f32 %v859, 0.0
        %v979 = vmax.f32 %v863, 0.0
        %v980 = vmax.f32 %v865, 0.0
        %v981 = vmax.f32 %v867, 0.0
        %v982 = vmax.f32 %v869, 0.0
        %v983 = vmax.f32 %v873, 0.0
        %v984 = vmax.f32 %v875, 0.0
        %v985 = vmax.f32 %v877, 0.0
        %v986 = vmax.f32 %v879, 0.0
        %v987 = vmax.f32 %v883, 0.0
        %v988 = vmax.f32 %v885, 0.0
        %v989 = vmax.f32 %v887, 0.0
        %v990 = vmax.f32 %v889, 0.0
        %v991 = vmax.f32 %v893, 0.0
        %v992 = vmax.f32 %v895, 0.0
        %v993 = vmax.f32 %v897, 0.0
        %v994 = vmax.f32 %v899, 0.0
        %v995 = vmax.f32 %v903, 0.0
        %v996 = vmax.f32 %v905, 0.0
        %v997 = vmax.f32 %v907, 0.0
        %v998 = vmax.f32 %v909, 0.0
        %v999 = vmax.f32 %v913, 0.0
        %v1000 = vmax.f32 %v915, 0.0
        %v1001 = vmax.f32 %v917, 0.0
        %v1002 = vmax.f32 %v919, 0.0
        %v1003 = vmax.f32 %v923, 0.0
        %v1004 = vmax.f32 %v925, 0.0
        %v1005 = vmax.f32 %v927, 0.0
        %v1006 = vmax.f32 %v929, 0.0
        %v1007 = vmax.f32 %v933, 0.0
        %v1008 = vmax.f32 %v935, 0.0
        %v1009 = vmax.f32 %v937, 0.0
        %v1010 = vmax.f32 %v939, 0.0
        %v1011 = vmax.f32 %v943, 0.0
        %v1012 = vmax.f32 %v945, 0.0
        %v1013 = vmax.f32 %v947, 0.0
        %v1014 = vmax.f32 %v949, 0.0
        %v1015 = vld [vmem:[%s336] sm:$0xff]
        %v1016 = vld [vmem:[%s336 + $0x18] sm:$0xff]
        %v1017 = vld [vmem:[%s336 + $0x30] sm:$0xff]
        %v1018 = vld [vmem:[%s336 + $0x48] sm:$0xff]
        %v1019 = vld [vmem:[%s336 + $0x60] sm:$0xff]
        %v1020 = vld [vmem:[%s336 + $0x78] sm:$0xff]
        %v1021 = vld [vmem:[%s336 + $0x90] sm:$0xff]
        %v1022 = vld [vmem:[%s336 + $0xa8] sm:$0xff]
        %v1023 = vld [vmem:[%s336 + $0xc0] sm:$0xff]
        %v1024 = vld [vmem:[%s336 + $0xd8] sm:$0xff]
        %v1025 = vld [vmem:[%s336 + $0xf0] sm:$0xff]
        %v1026 = vld [vmem:[%s336 + $0x108] sm:$0xff]
        %v1027 = vld [vmem:[%s336 + $0x120] sm:$0xff]
        %v1028 = vld [vmem:[%s336 + $0x138] sm:$0xff]
        %v1029 = vld [vmem:[%s336 + $0x150] sm:$0xff]
        %v1030 = vld [vmem:[%s336 + $0x168] sm:$0xff]
        %v1031 = vld [vmem:[%s336 + $0x180] sm:$0xff]
        %v1032 = vld [vmem:[%s336 + $0x198] sm:$0xff]
        %v1033 = vld [vmem:[%s336 + $0x1b0] sm:$0xff]
        %v1034 = vld [vmem:[%s336 + $0x1c8] sm:$0xff]
        %v1035 = vld [vmem:[%s336 + $0x1e0] sm:$0xff]
        %v1036 = vld [vmem:[%s336 + $0x1f8] sm:$0xff]
        %v1037 = vld [vmem:[%s336 + $0x210] sm:$0xff]
        %v1038 = vld [vmem:[%s336 + $0x228] sm:$0xff]
        %v1039 = vld [vmem:[%s336 + $0x240] sm:$0xff]
        %v1040 = vld [vmem:[%s336 + $0x258] sm:$0xff]
        %v1041 = vld [vmem:[%s336 + $0x270] sm:$0xff]
        %v1042 = vld [vmem:[%s336 + $0x288] sm:$0xff]
        %v1043 = vld [vmem:[%s336 + $0x2a0] sm:$0xff]
        %v1044 = vld [vmem:[%s336 + $0x2b8] sm:$0xff]
        %v1045 = vld [vmem:[%s336 + $0x2d0] sm:$0xff]
        %v1046 = vld [vmem:[%s336 + $0x2e8] sm:$0xff]
        %v1047 = vunpack.c.l.bf16 %v1015
        %v1048 = vunpack.c.h.bf16 %v1015
        %v1049 = vunpack.c.l.bf16 %v1016
        %v1050 = vunpack.c.h.bf16 %v1016
        %v1051 = vunpack.c.l.bf16 %v1017
        %v1052 = vunpack.c.h.bf16 %v1017
        %v1053 = vunpack.c.l.bf16 %v1018
        %v1054 = vunpack.c.h.bf16 %v1018
        %v1055 = vunpack.c.l.bf16 %v1019
        %v1056 = vunpack.c.h.bf16 %v1019
        %v1057 = vunpack.c.l.bf16 %v1020
        %v1058 = vunpack.c.h.bf16 %v1020
        %v1059 = vunpack.c.l.bf16 %v1021
        %v1060 = vunpack.c.h.bf16 %v1021
        %v1061 = vunpack.c.l.bf16 %v1022
        %v1062 = vunpack.c.h.bf16 %v1022
        %v1063 = vunpack.c.l.bf16 %v1023
        %v1064 = vunpack.c.h.bf16 %v1023
        %v1065 = vunpack.c.l.bf16 %v1024
        %v1066 = vunpack.c.h.bf16 %v1024
        %v1067 = vunpack.c.l.bf16 %v1025
        %v1068 = vunpack.c.h.bf16 %v1025
        %v1069 = vunpack.c.l.bf16 %v1026
        %v1070 = vunpack.c.h.bf16 %v1026
        %v1071 = vunpack.c.l.bf16 %v1027
        %v1072 = vunpack.c.h.bf16 %v1027
        %v1073 = vunpack.c.l.bf16 %v1028
        %v1074 = vunpack.c.h.bf16 %v1028
        %v1075 = vunpack.c.l.bf16 %v1029
        %v1076 = vunpack.c.h.bf16 %v1029
        %v1077 = vunpack.c.l.bf16 %v1030
        %v1078 = vunpack.c.h.bf16 %v1030
        %v1079 = vunpack.c.l.bf16 %v1031
        %v1080 = vunpack.c.h.bf16 %v1031
        %v1081 = vunpack.c.l.bf16 %v1032
        %v1082 = vunpack.c.h.bf16 %v1032
        %v1083 = vunpack.c.l.bf16 %v1033
        %v1084 = vunpack.c.h.bf16 %v1033
        %v1085 = vunpack.c.l.bf16 %v1034
        %v1086 = vunpack.c.h.bf16 %v1034
        %v1087 = vunpack.c.l.bf16 %v1035
        %v1088 = vunpack.c.h.bf16 %v1035
        %v1089 = vunpack.c.l.bf16 %v1036
        %v1090 = vunpack.c.h.bf16 %v1036
        %v1091 = vunpack.c.l.bf16 %v1037
        %v1092 = vunpack.c.h.bf16 %v1037
        %v1093 = vunpack.c.l.bf16 %v1038
        %v1094 = vunpack.c.h.bf16 %v1038
        %v1095 = vunpack.c.l.bf16 %v1039
        %v1096 = vunpack.c.h.bf16 %v1039
        %v1097 = vunpack.c.l.bf16 %v1040
        %v1098 = vunpack.c.h.bf16 %v1040
        %v1099 = vunpack.c.l.bf16 %v1041
        %v1100 = vunpack.c.h.bf16 %v1041
        %v1101 = vunpack.c.l.bf16 %v1042
        %v1102 = vunpack.c.h.bf16 %v1042
        %v1103 = vunpack.c.l.bf16 %v1043
        %v1104 = vunpack.c.h.bf16 %v1043
        %v1105 = vunpack.c.l.bf16 %v1044
        %v1106 = vunpack.c.h.bf16 %v1044
        %v1107 = vunpack.c.l.bf16 %v1045
        %v1108 = vunpack.c.h.bf16 %v1045
        %v1109 = vunpack.c.l.bf16 %v1046
        %v1110 = vunpack.c.h.bf16 %v1046
        %v1111 = vmul.f32 %v951, %v1047
        %v1112 = vmul.f32 %v952, %v1048
        %v1113 = vmul.f32 %v953, %v1049
        %v1114 = vmul.f32 %v954, %v1050
        %v1115 = vmul.f32 %v955, %v1051
        %v1116 = vmul.f32 %v956, %v1052
        %v1117 = vmul.f32 %v957, %v1053
        %v1118 = vmul.f32 %v958, %v1054
        %v1119 = vmul.f32 %v959, %v1055
        %v1120 = vmul.f32 %v960, %v1056
        %v1121 = vmul.f32 %v961, %v1057
        %v1122 = vmul.f32 %v962, %v1058
        %v1123 = vmul.f32 %v963, %v1059
        %v1124 = vmul.f32 %v964, %v1060
        %v1125 = vmul.f32 %v965, %v1061
        %v1126 = vmul.f32 %v966, %v1062
        %v1127 = vmul.f32 %v967, %v1063
        %v1128 = vmul.f32 %v968, %v1064
        %v1129 = vmul.f32 %v969, %v1065
        %v1130 = vmul.f32 %v970, %v1066
        %v1131 = vmul.f32 %v971, %v1067
        %v1132 = vmul.f32 %v972, %v1068
        %v1133 = vmul.f32 %v973, %v1069
        %v1134 = vmul.f32 %v974, %v1070
        %v1135 = vmul.f32 %v975, %v1071
        %v1136 = vmul.f32 %v976, %v1072
        %v1137 = vmul.f32 %v977, %v1073
        %v1138 = vmul.f32 %v978, %v1074
        %v1139 = vmul.f32 %v979, %v1075
        %v1140 = vmul.f32 %v980, %v1076
        %v1141 = vmul.f32 %v981, %v1077
        %v1142 = vmul.f32 %v982, %v1078
        %v1143 = vmul.f32 %v983, %v1079
        %v1144 = vmul.f32 %v984, %v1080
        %v1145 = vmul.f32 %v985, %v1081
        %v1146 = vmul.f32 %v986, %v1082
        %v1147 = vmul.f32 %v987, %v1083
        %v1148 = vmul.f32 %v988, %v1084
        %v1149 = vmul.f32 %v989, %v1085
        %v1150 = vmul.f32 %v990, %v1086
        %v1151 = vmul.f32 %v991, %v1087
        %v1152 = vmul.f32 %v992, %v1088
        %v1153 = vmul.f32 %v993, %v1089
        %v1154 = vmul.f32 %v994, %v1090
        %v1155 = vmul.f32 %v995, %v1091
        %v1156 = vmul.f32 %v996, %v1092
        %v1157 = vmul.f32 %v997, %v1093
        %v1158 = vmul.f32 %v998, %v1094
        %v1159 = vmul.f32 %v999, %v1095
        %v1160 = vmul.f32 %v1000, %v1096
        %v1161 = vmul.f32 %v1001, %v1097
        %v1162 = vmul.f32 %v1002, %v1098
        %v1163 = vmul.f32 %v1003, %v1099
        %v1164 = vmul.f32 %v1004, %v1100
        %v1165 = vmul.f32 %v1005, %v1101
        %v1166 = vmul.f32 %v1006, %v1102
        %v1167 = vmul.f32 %v1007, %v1103
        %v1168 = vmul.f32 %v1008, %v1104
        %v1169 = vmul.f32 %v1009, %v1105
        %v1170 = vmul.f32 %v1010, %v1106
        %v1171 = vmul.f32 %v1011, %v1107
        %v1172 = vmul.f32 %v1012, %v1108
        %v1173 = vmul.f32 %v1013, %v1109
        %v1174 = vmul.f32 %v1014, %v1110
        %v1175 = vpack.c.bf16 %v1113, %v1111
        %v1176 = vpack.c.bf16 %v1114, %v1112
        %v1177 = vpack.c.bf16 %v1117, %v1115
        %v1178 = vpack.c.bf16 %v1118, %v1116
        %v1179 = vpack.c.bf16 %v1121, %v1119
        %v1180 = vpack.c.bf16 %v1122, %v1120
        %v1181 = vpack.c.bf16 %v1125, %v1123
        %v1182 = vpack.c.bf16 %v1126, %v1124
        %v1183 = vpack.c.bf16 %v1129, %v1127
        %v1184 = vpack.c.bf16 %v1130, %v1128
        %v1185 = vpack.c.bf16 %v1133, %v1131
        %v1186 = vpack.c.bf16 %v1134, %v1132
        %v1187 = vpack.c.bf16 %v1137, %v1135
        %v1188 = vpack.c.bf16 %v1138, %v1136
        %v1189 = vpack.c.bf16 %v1141, %v1139
        %v1190 = vpack.c.bf16 %v1142, %v1140
        %v1191 = vpack.c.bf16 %v1145, %v1143
        %v1192 = vpack.c.bf16 %v1146, %v1144
        %v1193 = vpack.c.bf16 %v1149, %v1147
        %v1194 = vpack.c.bf16 %v1150, %v1148
        %v1195 = vpack.c.bf16 %v1153, %v1151
        %v1196 = vpack.c.bf16 %v1154, %v1152
        %v1197 = vpack.c.bf16 %v1157, %v1155
        %v1198 = vpack.c.bf16 %v1158, %v1156
        %v1199 = vpack.c.bf16 %v1161, %v1159
        %v1200 = vpack.c.bf16 %v1162, %v1160
        %v1201 = vpack.c.bf16 %v1165, %v1163
        %v1202 = vpack.c.bf16 %v1166, %v1164
        %v1203 = vpack.c.bf16 %v1169, %v1167
        %v1204 = vpack.c.bf16 %v1170, %v1168
        %v1205 = vpack.c.bf16 %v1173, %v1171
        %v1206 = vpack.c.bf16 %v1174, %v1172
        %v1207 = vld [vmem:[#allocation7] sm:$0xff]
        %v1208 = vld [vmem:[#allocation7 + $0x8] sm:$0xff]
        %v1209 = vld [vmem:[#allocation7 + $0x10] sm:$0xff]
        %v1210 = vld [vmem:[#allocation7 + $0x18] sm:$0xff]
        %v1211 = vld [vmem:[#allocation7 + $0x20] sm:$0xff]
        %v1212 = vld [vmem:[#allocation7 + $0x28] sm:$0xff]
        %v1213 = vld [vmem:[#allocation7 + $0x30] sm:$0xff]
        %v1214 = vld [vmem:[#allocation7 + $0x38] sm:$0xff]
        %v1215 = vld [vmem:[#allocation7 + $0x40] sm:$0xff]
        %v1216 = vld [vmem:[#allocation7 + $0x48] sm:$0xff]
        %v1217 = vld [vmem:[#allocation7 + $0x50] sm:$0xff]
        %v1218 = vld [vmem:[#allocation7 + $0x58] sm:$0xff]
        %v1219 = vld [vmem:[#allocation7 + $0x60] sm:$0xff]
        %v1220 = vld [vmem:[#allocation7 + $0x68] sm:$0xff]
        %v1221 = vld [vmem:[#allocation7 + $0x70] sm:$0xff]
        %v1222 = vld [vmem:[#allocation7 + $0x78] sm:$0xff]
        %v1223 = vld [vmem:[#allocation7 + $0x80] sm:$0xff]
        %v1224 = vld [vmem:[#allocation7 + $0x88] sm:$0xff]
        %v1225 = vld [vmem:[#allocation7 + $0x90] sm:$0xff]
        %v1226 = vld [vmem:[#allocation7 + $0x98] sm:$0xff]
        %v1227 = vld [vmem:[#allocation7 + $0xa0] sm:$0xff]
        %v1228 = vld [vmem:[#allocation7 + $0xa8] sm:$0xff]
        %v1229 = vld [vmem:[#allocation7 + $0xb0] sm:$0xff]
        %v1230 = vld [vmem:[#allocation7 + $0xb8] sm:$0xff]
        %v1231 = vld [vmem:[#allocation7 + $0xc0] sm:$0xff]
        %v1232 = vld [vmem:[#allocation7 + $0xc8] sm:$0xff]
        %v1233 = vld [vmem:[#allocation7 + $0xd0] sm:$0xff]
        %v1234 = vld [vmem:[#allocation7 + $0xd8] sm:$0xff]
        %v1235 = vld [vmem:[#allocation7 + $0xe0] sm:$0xff]
        %v1236 = vld [vmem:[#allocation7 + $0xe8] sm:$0xff]
        %v1237 = vld [vmem:[#allocation7 + $0xf0] sm:$0xff]
        %v1238 = vld [vmem:[#allocation7 + $0xf8] sm:$0xff]
        %v1271 = vunpack.c.l.b16 %v1207
        %v1272 = vunpack.c.h.b16 %v1207
        %v1273 = vunpack.c.l.b16 %v1208
        %v1274 = vunpack.c.h.b16 %v1208
        %v1275 = vunpack.c.l.b16 %v1209
        %v1276 = vunpack.c.h.b16 %v1209
        %v1277 = vunpack.c.l.b16 %v1210
        %v1278 = vunpack.c.h.b16 %v1210
        %v1279 = vunpack.c.l.b16 %v1211
        %v1280 = vunpack.c.h.b16 %v1211
        %v1281 = vunpack.c.l.b16 %v1212
        %v1282 = vunpack.c.h.b16 %v1212
        %v1283 = vunpack.c.l.b16 %v1213
        %v1284 = vunpack.c.h.b16 %v1213
        %v1285 = vunpack.c.l.b16 %v1214
        %v1286 = vunpack.c.h.b16 %v1214
        %v1287 = vunpack.c.l.b16 %v1215
        %v1288 = vunpack.c.h.b16 %v1215
        %v1289 = vunpack.c.l.b16 %v1216
        %v1290 = vunpack.c.h.b16 %v1216
        %v1291 = vunpack.c.l.b16 %v1217
        %v1292 = vunpack.c.h.b16 %v1217
        %v1293 = vunpack.c.l.b16 %v1218
        %v1294 = vunpack.c.h.b16 %v1218
        %v1295 = vunpack.c.l.b16 %v1219
        %v1296 = vunpack.c.h.b16 %v1219
        %v1297 = vunpack.c.l.b16 %v1220
        %v1298 = vunpack.c.h.b16 %v1220
        %v1299 = vunpack.c.l.b16 %v1221
        %v1300 = vunpack.c.h.b16 %v1221
        %v1301 = vunpack.c.l.b16 %v1222
        %v1302 = vunpack.c.h.b16 %v1222
        %v1303 = vunpack.c.l.b16 %v1223
        %v1304 = vunpack.c.h.b16 %v1223
        %v1305 = vunpack.c.l.b16 %v1224
        %v1306 = vunpack.c.h.b16 %v1224
        %v1307 = vunpack.c.l.b16 %v1225
        %v1308 = vunpack.c.h.b16 %v1225
        %v1309 = vunpack.c.l.b16 %v1226
        %v1310 = vunpack.c.h.b16 %v1226
        %v1311 = vunpack.c.l.b16 %v1227
        %v1312 = vunpack.c.h.b16 %v1227
        %v1313 = vunpack.c.l.b16 %v1228
        %v1314 = vunpack.c.h.b16 %v1228
        %v1315 = vunpack.c.l.b16 %v1229
        %v1316 = vunpack.c.h.b16 %v1229
        %v1317 = vunpack.c.l.b16 %v1230
        %v1318 = vunpack.c.h.b16 %v1230
        %v1319 = vunpack.c.l.b16 %v1231
        %v1320 = vunpack.c.h.b16 %v1231
        %v1321 = vunpack.c.l.b16 %v1232
        %v1322 = vunpack.c.h.b16 %v1232
        %v1323 = vunpack.c.l.b16 %v1233
        %v1324 = vunpack.c.h.b16 %v1233
        %v1325 = vunpack.c.l.b16 %v1234
        %v1326 = vunpack.c.h.b16 %v1234
        %v1327 = vunpack.c.l.b16 %v1235
        %v1328 = vunpack.c.h.b16 %v1235
        %v1329 = vunpack.c.l.b16 %v1236
        %v1330 = vunpack.c.h.b16 %v1236
        %v1331 = vunpack.c.l.b16 %v1237
        %v1332 = vunpack.c.h.b16 %v1237
        %v1333 = vunpack.c.l.b16 %v1238
        %v1334 = vunpack.c.h.b16 %v1238
        %v1335 = vpack.c.b16 %v1273, %v1271
        %v1336 = vpack.c.b16 %v1274, %v1272
        %v1337 = vpack.c.b16 %v1277, %v1275
        %v1338 = vpack.c.b16 %v1278, %v1276
        %v1339 = vpack.c.b16 %v1281, %v1279
        %v1340 = vpack.c.b16 %v1282, %v1280
        %v1341 = vpack.c.b16 %v1285, %v1283
        %v1342 = vpack.c.b16 %v1286, %v1284
        %v1343 = vpack.c.b16 %v1289, %v1287
        %v1344 = vpack.c.b16 %v1290, %v1288
        %v1345 = vpack.c.b16 %v1293, %v1291
        %v1346 = vpack.c.b16 %v1294, %v1292
        %v1347 = vpack.c.b16 %v1297, %v1295
        %v1348 = vpack.c.b16 %v1298, %v1296
        %v1349 = vpack.c.b16 %v1301, %v1299
        %v1350 = vpack.c.b16 %v1302, %v1300
        %v1351 = vpack.c.b16 %v1305, %v1303
        %v1352 = vpack.c.b16 %v1306, %v1304
        %v1353 = vpack.c.b16 %v1309, %v1307
        %v1354 = vpack.c.b16 %v1310, %v1308
        %v1355 = vpack.c.b16 %v1313, %v1311
        %v1356 = vpack.c.b16 %v1314, %v1312
        %v1357 = vpack.c.b16 %v1317, %v1315
        %v1358 = vpack.c.b16 %v1318, %v1316
        %v1359 = vpack.c.b16 %v1321, %v1319
        %v1360 = vpack.c.b16 %v1322, %v1320
        %v1361 = vpack.c.b16 %v1325, %v1323
        %v1362 = vpack.c.b16 %v1326, %v1324
        %v1363 = vpack.c.b16 %v1329, %v1327
        %v1364 = vpack.c.b16 %v1330, %v1328
        %v1365 = vpack.c.b16 %v1333, %v1331
        %v1366 = vpack.c.b16 %v1334, %v1332
        %1399 = vmatprep.subr.bf16.mxu0 %v1350
        %1400 = vmatpush1.bf16.msra.mxu0 %v1349
        %1401 = vmatprep.subr.bf16.mxu0 %v1348
        %1402 = vmatpush1.bf16.msra.mxu0 %v1347
        %1403 = vmatprep.subr.bf16.mxu0 %v1346
        %1404 = vmatpush1.bf16.msra.mxu0 %v1345
        %1405 = vmatprep.subr.bf16.mxu0 %v1344
        %1406 = vmatpush1.bf16.msra.mxu0 %v1343
        %1407 = vmatprep.subr.bf16.mxu0 %v1342
        %1408 = vmatpush1.bf16.msra.mxu0 %v1341
        %1409 = vmatprep.subr.bf16.mxu0 %v1340
        %1410 = vmatpush1.bf16.msra.mxu0 %v1339
        %1411 = vmatprep.subr.bf16.mxu0 %v1338
        %1412 = vmatpush1.bf16.msra.mxu0 %v1337
        %1413 = vmatprep.subr.bf16.mxu0 %v1336
        %1414 = vmatpush1.bf16.msra.mxu0 %v1335
        %1415 = vmatprep.subr.bf16.mxu0 %v1366
        %1416 = vmatpush2.bf16.msra.mxu0 %v1365
        %1417 = vmatprep.subr.bf16.mxu0 %v1364
        %1418 = vmatpush2.bf16.msra.mxu0 %v1363
        %1419 = vmatprep.subr.bf16.mxu0 %v1362
        %1420 = vmatpush2.bf16.msra.mxu0 %v1361
        %1421 = vmatprep.subr.bf16.mxu0 %v1360
        %1422 = vmatpush2.bf16.msra.mxu0 %v1359
        %1423 = vmatprep.subr.bf16.mxu0 %v1358
        %1424 = vmatpush2.bf16.msra.mxu0 %v1357
        %1425 = vmatprep.subr.bf16.mxu0 %v1356
        %1426 = vmatpush2.bf16.msra.mxu0 %v1355
        %1427 = vmatprep.subr.bf16.mxu0 %v1354
        %1428 = vmatpush2.bf16.msra.mxu0 %v1353
        %1429 = vmatprep.subr.bf16.mxu0 %v1352
        %1430 = vmatpush2.bf16.msra.mxu0 %v1351
        %1431 = vmatprep.mubr.bf16.mxu0 %v1176
        %1432 = vmatmul.mubr.bf16.gmra.mxu0 %v1175
        %v1433 = vpop.f32.mrf.mxu0
        %v1434 = vadd.f32 0.0, %v1433
        %v1435 = vpop.f32.mrf.mxu0
        %v1436 = vadd.f32 0.0, %v1435
        %v1437 = vpop.f32.mrf.mxu0
        %v1438 = vadd.f32 0.0, %v1437
        %v1439 = vpop.f32.mrf.mxu0
        %v1440 = vadd.f32 0.0, %v1439
        %1441 = vmatprep.mubr.bf16.mxu0 %v1178
        %1442 = vmatmul.mubr.bf16.gmra.mxu0 %v1177
        %v1443 = vpop.f32.mrf.mxu0
        %v1444 = vadd.f32 0.0, %v1443
        %v1445 = vpop.f32.mrf.mxu0
        %v1446 = vadd.f32 0.0, %v1445
        %v1447 = vpop.f32.mrf.mxu0
        %v1448 = vadd.f32 0.0, %v1447
        %v1449 = vpop.f32.mrf.mxu0
        %v1450 = vadd.f32 0.0, %v1449
        %1451 = vmatprep.mubr.bf16.mxu0 %v1180
        %1452 = vmatmul.mubr.bf16.gmra.mxu0 %v1179
        %v1453 = vpop.f32.mrf.mxu0
        %v1454 = vadd.f32 0.0, %v1453
        %v1455 = vpop.f32.mrf.mxu0
        %v1456 = vadd.f32 0.0, %v1455
        %v1457 = vpop.f32.mrf.mxu0
        %v1458 = vadd.f32 0.0, %v1457
        %v1459 = vpop.f32.mrf.mxu0
        %v1460 = vadd.f32 0.0, %v1459
        %1461 = vmatprep.mubr.bf16.mxu0 %v1182
        %1462 = vmatmul.mubr.bf16.gmra.mxu0 %v1181
        %v1463 = vpop.f32.mrf.mxu0
        %v1464 = vadd.f32 0.0, %v1463
        %v1465 = vpop.f32.mrf.mxu0
        %v1466 = vadd.f32 0.0, %v1465
        %v1467 = vpop.f32.mrf.mxu0
        %v1468 = vadd.f32 0.0, %v1467
        %v1469 = vpop.f32.mrf.mxu0
        %v1470 = vadd.f32 0.0, %v1469
        %1471 = vmatprep.mubr.bf16.mxu0 %v1184
        %1472 = vmatmul.mubr.bf16.gmra.mxu0 %v1183
        %v1473 = vpop.f32.mrf.mxu0
        %v1474 = vadd.f32 0.0, %v1473
        %v1475 = vpop.f32.mrf.mxu0
        %v1476 = vadd.f32 0.0, %v1475
        %v1477 = vpop.f32.mrf.mxu0
        %v1478 = vadd.f32 0.0, %v1477
        %v1479 = vpop.f32.mrf.mxu0
        %v1480 = vadd.f32 0.0, %v1479
        %1481 = vmatprep.mubr.bf16.mxu0 %v1186
        %1482 = vmatmul.mubr.bf16.gmra.mxu0 %v1185
        %v1483 = vpop.f32.mrf.mxu0
        %v1484 = vadd.f32 0.0, %v1483
        %v1485 = vpop.f32.mrf.mxu0
        %v1486 = vadd.f32 0.0, %v1485
        %v1487 = vpop.f32.mrf.mxu0
        %v1488 = vadd.f32 0.0, %v1487
        %v1489 = vpop.f32.mrf.mxu0
        %v1490 = vadd.f32 0.0, %v1489
        %1491 = vmatprep.mubr.bf16.mxu0 %v1188
        %1492 = vmatmul.mubr.bf16.gmra.mxu0 %v1187
        %v1493 = vpop.f32.mrf.mxu0
        %v1494 = vadd.f32 0.0, %v1493
        %v1495 = vpop.f32.mrf.mxu0
        %v1496 = vadd.f32 0.0, %v1495
        %v1497 = vpop.f32.mrf.mxu0
        %v1498 = vadd.f32 0.0, %v1497
        %v1499 = vpop.f32.mrf.mxu0
        %v1500 = vadd.f32 0.0, %v1499
        %1501 = vmatprep.mubr.bf16.mxu0 %v1190
        %1502 = vmatmul.mubr.bf16.gmra.mxu0 %v1189
        %v1503 = vpop.f32.mrf.mxu0
        %v1504 = vadd.f32 0.0, %v1503
        %v1505 = vpop.f32.mrf.mxu0
        %v1506 = vadd.f32 0.0, %v1505
        %v1507 = vpop.f32.mrf.mxu0
        %v1508 = vadd.f32 0.0, %v1507
        %v1509 = vpop.f32.mrf.mxu0
        %v1510 = vadd.f32 0.0, %v1509
        %1511 = vmatprep.mubr.bf16.mxu0 %v1192
        %1512 = vmatmul.mubr.bf16.gmra.mxu0 %v1191
        %v1513 = vpop.f32.mrf.mxu0
        %v1514 = vadd.f32 0.0, %v1513
        %v1515 = vpop.f32.mrf.mxu0
        %v1516 = vadd.f32 0.0, %v1515
        %v1517 = vpop.f32.mrf.mxu0
        %v1518 = vadd.f32 0.0, %v1517
        %v1519 = vpop.f32.mrf.mxu0
        %v1520 = vadd.f32 0.0, %v1519
        %1521 = vmatprep.mubr.bf16.mxu0 %v1194
        %1522 = vmatmul.mubr.bf16.gmra.mxu0 %v1193
        %v1523 = vpop.f32.mrf.mxu0
        %v1524 = vadd.f32 0.0, %v1523
        %v1525 = vpop.f32.mrf.mxu0
        %v1526 = vadd.f32 0.0, %v1525
        %v1527 = vpop.f32.mrf.mxu0
        %v1528 = vadd.f32 0.0, %v1527
        %v1529 = vpop.f32.mrf.mxu0
        %v1530 = vadd.f32 0.0, %v1529
        %1531 = vmatprep.mubr.bf16.mxu0 %v1196
        %1532 = vmatmul.mubr.bf16.gmra.mxu0 %v1195
        %v1533 = vpop.f32.mrf.mxu0
        %v1534 = vadd.f32 0.0, %v1533
        %v1535 = vpop.f32.mrf.mxu0
        %v1536 = vadd.f32 0.0, %v1535
        %v1537 = vpop.f32.mrf.mxu0
        %v1538 = vadd.f32 0.0, %v1537
        %v1539 = vpop.f32.mrf.mxu0
        %v1540 = vadd.f32 0.0, %v1539
        %1541 = vmatprep.mubr.bf16.mxu0 %v1198
        %1542 = vmatmul.mubr.bf16.gmra.mxu0 %v1197
        %v1543 = vpop.f32.mrf.mxu0
        %v1544 = vadd.f32 0.0, %v1543
        %v1545 = vpop.f32.mrf.mxu0
        %v1546 = vadd.f32 0.0, %v1545
        %v1547 = vpop.f32.mrf.mxu0
        %v1548 = vadd.f32 0.0, %v1547
        %v1549 = vpop.f32.mrf.mxu0
        %v1550 = vadd.f32 0.0, %v1549
        %1551 = vmatprep.mubr.bf16.mxu0 %v1200
        %1552 = vmatmul.mubr.bf16.gmra.mxu0 %v1199
        %v1553 = vpop.f32.mrf.mxu0
        %v1554 = vadd.f32 0.0, %v1553
        %v1555 = vpop.f32.mrf.mxu0
        %v1556 = vadd.f32 0.0, %v1555
        %v1557 = vpop.f32.mrf.mxu0
        %v1558 = vadd.f32 0.0, %v1557
        %v1559 = vpop.f32.mrf.mxu0
        %v1560 = vadd.f32 0.0, %v1559
        %1561 = vmatprep.mubr.bf16.mxu0 %v1202
        %1562 = vmatmul.mubr.bf16.gmra.mxu0 %v1201
        %v1563 = vpop.f32.mrf.mxu0
        %v1564 = vadd.f32 0.0, %v1563
        %v1565 = vpop.f32.mrf.mxu0
        %v1566 = vadd.f32 0.0, %v1565
        %v1567 = vpop.f32.mrf.mxu0
        %v1568 = vadd.f32 0.0, %v1567
        %v1569 = vpop.f32.mrf.mxu0
        %v1570 = vadd.f32 0.0, %v1569
        %1571 = vmatprep.mubr.bf16.mxu0 %v1204
        %1572 = vmatmul.mubr.bf16.gmra.mxu0 %v1203
        %v1573 = vpop.f32.mrf.mxu0
        %v1574 = vadd.f32 0.0, %v1573
        %v1575 = vpop.f32.mrf.mxu0
        %v1576 = vadd.f32 0.0, %v1575
        %v1577 = vpop.f32.mrf.mxu0
        %v1578 = vadd.f32 0.0, %v1577
        %v1579 = vpop.f32.mrf.mxu0
        %v1580 = vadd.f32 0.0, %v1579
        %1581 = vmatprep.mubr.bf16.mxu0 %v1206
        %1582 = vmatmul.mubr.bf16.gmra.mxu0 %v1205
        %v1583 = vpop.f32.mrf.mxu0
        %v1584 = vadd.f32 0.0, %v1583
        %v1585 = vpop.f32.mrf.mxu0
        %v1586 = vadd.f32 0.0, %v1585
        %v1587 = vpop.f32.mrf.mxu0
        %v1588 = vadd.f32 0.0, %v1587
        %v1589 = vpop.f32.mrf.mxu0
        %v1590 = vadd.f32 0.0, %v1589
        %1591 = vdwg.mxu0
        %v1592 = vmax.f32 %v1434, 0.0
        %v1593 = vmax.f32 %v1436, 0.0
        %v1594 = vmax.f32 %v1438, 0.0
        %v1595 = vmax.f32 %v1440, 0.0
        %v1596 = vmax.f32 %v1444, 0.0
        %v1597 = vmax.f32 %v1446, 0.0
        %v1598 = vmax.f32 %v1448, 0.0
        %v1599 = vmax.f32 %v1450, 0.0
        %v1600 = vmax.f32 %v1454, 0.0
        %v1601 = vmax.f32 %v1456, 0.0
        %v1602 = vmax.f32 %v1458, 0.0
        %v1603 = vmax.f32 %v1460, 0.0
        %v1604 = vmax.f32 %v1464, 0.0
        %v1605 = vmax.f32 %v1466, 0.0
        %v1606 = vmax.f32 %v1468, 0.0
        %v1607 = vmax.f32 %v1470, 0.0
        %v1608 = vmax.f32 %v1474, 0.0
        %v1609 = vmax.f32 %v1476, 0.0
        %v1610 = vmax.f32 %v1478, 0.0
        %v1611 = vmax.f32 %v1480, 0.0
        %v1612 = vmax.f32 %v1484, 0.0
        %v1613 = vmax.f32 %v1486, 0.0
        %v1614 = vmax.f32 %v1488, 0.0
        %v1615 = vmax.f32 %v1490, 0.0
        %v1616 = vmax.f32 %v1494, 0.0
        %v1617 = vmax.f32 %v1496, 0.0
        %v1618 = vmax.f32 %v1498, 0.0
        %v1619 = vmax.f32 %v1500, 0.0
        %v1620 = vmax.f32 %v1504, 0.0
        %v1621 = vmax.f32 %v1506, 0.0
        %v1622 = vmax.f32 %v1508, 0.0
        %v1623 = vmax.f32 %v1510, 0.0
        %v1624 = vmax.f32 %v1514, 0.0
        %v1625 = vmax.f32 %v1516, 0.0
        %v1626 = vmax.f32 %v1518, 0.0
        %v1627 = vmax.f32 %v1520, 0.0
        %v1628 = vmax.f32 %v1524, 0.0
        %v1629 = vmax.f32 %v1526, 0.0
        %v1630 = vmax.f32 %v1528, 0.0
        %v1631 = vmax.f32 %v1530, 0.0
        %v1632 = vmax.f32 %v1534, 0.0
        %v1633 = vmax.f32 %v1536, 0.0
        %v1634 = vmax.f32 %v1538, 0.0
        %v1635 = vmax.f32 %v1540, 0.0
        %v1636 = vmax.f32 %v1544, 0.0
        %v1637 = vmax.f32 %v1546, 0.0
        %v1638 = vmax.f32 %v1548, 0.0
        %v1639 = vmax.f32 %v1550, 0.0
        %v1640 = vmax.f32 %v1554, 0.0
        %v1641 = vmax.f32 %v1556, 0.0
        %v1642 = vmax.f32 %v1558, 0.0
        %v1643 = vmax.f32 %v1560, 0.0
        %v1644 = vmax.f32 %v1564, 0.0
        %v1645 = vmax.f32 %v1566, 0.0
        %v1646 = vmax.f32 %v1568, 0.0
        %v1647 = vmax.f32 %v1570, 0.0
        %v1648 = vmax.f32 %v1574, 0.0
        %v1649 = vmax.f32 %v1576, 0.0
        %v1650 = vmax.f32 %v1578, 0.0
        %v1651 = vmax.f32 %v1580, 0.0
        %v1652 = vmax.f32 %v1584, 0.0
        %v1653 = vmax.f32 %v1586, 0.0
        %v1654 = vmax.f32 %v1588, 0.0
        %v1655 = vmax.f32 %v1590, 0.0
        %v1656 = vld [vmem:[%s336 + $0x8] sm:$0xff]
        %v1657 = vld [vmem:[%s336 + $0x20] sm:$0xff]
        %v1658 = vld [vmem:[%s336 + $0x38] sm:$0xff]
        %v1659 = vld [vmem:[%s336 + $0x50] sm:$0xff]
        %v1660 = vld [vmem:[%s336 + $0x68] sm:$0xff]
        %v1661 = vld [vmem:[%s336 + $0x80] sm:$0xff]
        %v1662 = vld [vmem:[%s336 + $0x98] sm:$0xff]
        %v1663 = vld [vmem:[%s336 + $0xb0] sm:$0xff]
        %v1664 = vld [vmem:[%s336 + $0xc8] sm:$0xff]
        %v1665 = vld [vmem:[%s336 + $0xe0] sm:$0xff]
        %v1666 = vld [vmem:[%s336 + $0xf8] sm:$0xff]
        %v1667 = vld [vmem:[%s336 + $0x110] sm:$0xff]
        %v1668 = vld [vmem:[%s336 + $0x128] sm:$0xff]
        %v1669 = vld [vmem:[%s336 + $0x140] sm:$0xff]
        %v1670 = vld [vmem:[%s336 + $0x158] sm:$0xff]
        %v1671 = vld [vmem:[%s336 + $0x170] sm:$0xff]
        %v1672 = vld [vmem:[%s336 + $0x188] sm:$0xff]
        %v1673 = vld [vmem:[%s336 + $0x1a0] sm:$0xff]
        %v1674 = vld [vmem:[%s336 + $0x1b8] sm:$0xff]
        %v1675 = vld [vmem:[%s336 + $0x1d0] sm:$0xff]
        %v1676 = vld [vmem:[%s336 + $0x1e8] sm:$0xff]
        %v1677 = vld [vmem:[%s336 + $0x200] sm:$0xff]
        %v1678 = vld [vmem:[%s336 + $0x218] sm:$0xff]
        %v1679 = vld [vmem:[%s336 + $0x230] sm:$0xff]
        %v1680 = vld [vmem:[%s336 + $0x248] sm:$0xff]
        %v1681 = vld [vmem:[%s336 + $0x260] sm:$0xff]
        %v1682 = vld [vmem:[%s336 + $0x278] sm:$0xff]
        %v1683 = vld [vmem:[%s336 + $0x290] sm:$0xff]
        %v1684 = vld [vmem:[%s336 + $0x2a8] sm:$0xff]
        %v1685 = vld [vmem:[%s336 + $0x2c0] sm:$0xff]
        %v1686 = vld [vmem:[%s336 + $0x2d8] sm:$0xff]
        %v1687 = vld [vmem:[%s336 + $0x2f0] sm:$0xff]
        %v1688 = vunpack.c.l.bf16 %v1656
        %v1689 = vunpack.c.h.bf16 %v1656
        %v1690 = vunpack.c.l.bf16 %v1657
        %v1691 = vunpack.c.h.bf16 %v1657
        %v1692 = vunpack.c.l.bf16 %v1658
        %v1693 = vunpack.c.h.bf16 %v1658
        %v1694 = vunpack.c.l.bf16 %v1659
        %v1695 = vunpack.c.h.bf16 %v1659
        %v1696 = vunpack.c.l.bf16 %v1660
        %v1697 = vunpack.c.h.bf16 %v1660
        %v1698 = vunpack.c.l.bf16 %v1661
        %v1699 = vunpack.c.h.bf16 %v1661
        %v1700 = vunpack.c.l.bf16 %v1662
        %v1701 = vunpack.c.h.bf16 %v1662
        %v1702 = vunpack.c.l.bf16 %v1663
        %v1703 = vunpack.c.h.bf16 %v1663
        %v1704 = vunpack.c.l.bf16 %v1664
        %v1705 = vunpack.c.h.bf16 %v1664
        %v1706 = vunpack.c.l.bf16 %v1665
        %v1707 = vunpack.c.h.bf16 %v1665
        %v1708 = vunpack.c.l.bf16 %v1666
        %v1709 = vunpack.c.h.bf16 %v1666
        %v1710 = vunpack.c.l.bf16 %v1667
        %v1711 = vunpack.c.h.bf16 %v1667
        %v1712 = vunpack.c.l.bf16 %v1668
        %v1713 = vunpack.c.h.bf16 %v1668
        %v1714 = vunpack.c.l.bf16 %v1669
        %v1715 = vunpack.c.h.bf16 %v1669
        %v1716 = vunpack.c.l.bf16 %v1670
        %v1717 = vunpack.c.h.bf16 %v1670
        %v1718 = vunpack.c.l.bf16 %v1671
        %v1719 = vunpack.c.h.bf16 %v1671
        %v1720 = vunpack.c.l.bf16 %v1672
        %v1721 = vunpack.c.h.bf16 %v1672
        %v1722 = vunpack.c.l.bf16 %v1673
        %v1723 = vunpack.c.h.bf16 %v1673
        %v1724 = vunpack.c.l.bf16 %v1674
        %v1725 = vunpack.c.h.bf16 %v1674
        %v1726 = vunpack.c.l.bf16 %v1675
        %v1727 = vunpack.c.h.bf16 %v1675
        %v1728 = vunpack.c.l.bf16 %v1676
        %v1729 = vunpack.c.h.bf16 %v1676
        %v1730 = vunpack.c.l.bf16 %v1677
        %v1731 = vunpack.c.h.bf16 %v1677
        %v1732 = vunpack.c.l.bf16 %v1678
        %v1733 = vunpack.c.h.bf16 %v1678
        %v1734 = vunpack.c.l.bf16 %v1679
        %v1735 = vunpack.c.h.bf16 %v1679
        %v1736 = vunpack.c.l.bf16 %v1680
        %v1737 = vunpack.c.h.bf16 %v1680
        %v1738 = vunpack.c.l.bf16 %v1681
        %v1739 = vunpack.c.h.bf16 %v1681
        %v1740 = vunpack.c.l.bf16 %v1682
        %v1741 = vunpack.c.h.bf16 %v1682
        %v1742 = vunpack.c.l.bf16 %v1683
        %v1743 = vunpack.c.h.bf16 %v1683
        %v1744 = vunpack.c.l.bf16 %v1684
        %v1745 = vunpack.c.h.bf16 %v1684
        %v1746 = vunpack.c.l.bf16 %v1685
        %v1747 = vunpack.c.h.bf16 %v1685
        %v1748 = vunpack.c.l.bf16 %v1686
        %v1749 = vunpack.c.h.bf16 %v1686
        %v1750 = vunpack.c.l.bf16 %v1687
        %v1751 = vunpack.c.h.bf16 %v1687
        %v1752 = vmul.f32 %v1592, %v1688
        %v1753 = vmul.f32 %v1593, %v1689
        %v1754 = vmul.f32 %v1594, %v1690
        %v1755 = vmul.f32 %v1595, %v1691
        %v1756 = vmul.f32 %v1596, %v1692
        %v1757 = vmul.f32 %v1597, %v1693
        %v1758 = vmul.f32 %v1598, %v1694
        %v1759 = vmul.f32 %v1599, %v1695
        %v1760 = vmul.f32 %v1600, %v1696
        %v1761 = vmul.f32 %v1601, %v1697
        %v1762 = vmul.f32 %v1602, %v1698
        %v1763 = vmul.f32 %v1603, %v1699
        %v1764 = vmul.f32 %v1604, %v1700
        %v1765 = vmul.f32 %v1605, %v1701
        %v1766 = vmul.f32 %v1606, %v1702
        %v1767 = vmul.f32 %v1607, %v1703
        %v1768 = vmul.f32 %v1608, %v1704
        %v1769 = vmul.f32 %v1609, %v1705
        %v1770 = vmul.f32 %v1610, %v1706
        %v1771 = vmul.f32 %v1611, %v1707
        %v1772 = vmul.f32 %v1612, %v1708
        %v1773 = vmul.f32 %v1613, %v1709
        %v1774 = vmul.f32 %v1614, %v1710
        %v1775 = vmul.f32 %v1615, %v1711
        %v1776 = vmul.f32 %v1616, %v1712
        %v1777 = vmul.f32 %v1617, %v1713
        %v1778 = vmul.f32 %v1618, %v1714
        %v1779 = vmul.f32 %v1619, %v1715
        %v1780 = vmul.f32 %v1620, %v1716
        %v1781 = vmul.f32 %v1621, %v1717
        %v1782 = vmul.f32 %v1622, %v1718
        %v1783 = vmul.f32 %v1623, %v1719
        %v1784 = vmul.f32 %v1624, %v1720
        %v1785 = vmul.f32 %v1625, %v1721
        %v1786 = vmul.f32 %v1626, %v1722
        %v1787 = vmul.f32 %v1627, %v1723
        %v1788 = vmul.f32 %v1628, %v1724
        %v1789 = vmul.f32 %v1629, %v1725
        %v1790 = vmul.f32 %v1630, %v1726
        %v1791 = vmul.f32 %v1631, %v1727
        %v1792 = vmul.f32 %v1632, %v1728
        %v1793 = vmul.f32 %v1633, %v1729
        %v1794 = vmul.f32 %v1634, %v1730
        %v1795 = vmul.f32 %v1635, %v1731
        %v1796 = vmul.f32 %v1636, %v1732
        %v1797 = vmul.f32 %v1637, %v1733
        %v1798 = vmul.f32 %v1638, %v1734
        %v1799 = vmul.f32 %v1639, %v1735
        %v1800 = vmul.f32 %v1640, %v1736
        %v1801 = vmul.f32 %v1641, %v1737
        %v1802 = vmul.f32 %v1642, %v1738
        %v1803 = vmul.f32 %v1643, %v1739
        %v1804 = vmul.f32 %v1644, %v1740
        %v1805 = vmul.f32 %v1645, %v1741
        %v1806 = vmul.f32 %v1646, %v1742
        %v1807 = vmul.f32 %v1647, %v1743
        %v1808 = vmul.f32 %v1648, %v1744
        %v1809 = vmul.f32 %v1649, %v1745
        %v1810 = vmul.f32 %v1650, %v1746
        %v1811 = vmul.f32 %v1651, %v1747
        %v1812 = vmul.f32 %v1652, %v1748
        %v1813 = vmul.f32 %v1653, %v1749
        %v1814 = vmul.f32 %v1654, %v1750
        %v1815 = vmul.f32 %v1655, %v1751
        %v1816 = vpack.c.bf16 %v1754, %v1752
        %v1817 = vpack.c.bf16 %v1755, %v1753
        %v1818 = vpack.c.bf16 %v1758, %v1756
        %v1819 = vpack.c.bf16 %v1759, %v1757
        %v1820 = vpack.c.bf16 %v1762, %v1760
        %v1821 = vpack.c.bf16 %v1763, %v1761
        %v1822 = vpack.c.bf16 %v1766, %v1764
        %v1823 = vpack.c.bf16 %v1767, %v1765
        %v1824 = vpack.c.bf16 %v1770, %v1768
        %v1825 = vpack.c.bf16 %v1771, %v1769
        %v1826 = vpack.c.bf16 %v1774, %v1772
        %v1827 = vpack.c.bf16 %v1775, %v1773
        %v1828 = vpack.c.bf16 %v1778, %v1776
        %v1829 = vpack.c.bf16 %v1779, %v1777
        %v1830 = vpack.c.bf16 %v1782, %v1780
        %v1831 = vpack.c.bf16 %v1783, %v1781
        %v1832 = vpack.c.bf16 %v1786, %v1784
        %v1833 = vpack.c.bf16 %v1787, %v1785
        %v1834 = vpack.c.bf16 %v1790, %v1788
        %v1835 = vpack.c.bf16 %v1791, %v1789
        %v1836 = vpack.c.bf16 %v1794, %v1792
        %v1837 = vpack.c.bf16 %v1795, %v1793
        %v1838 = vpack.c.bf16 %v1798, %v1796
        %v1839 = vpack.c.bf16 %v1799, %v1797
        %v1840 = vpack.c.bf16 %v1802, %v1800
        %v1841 = vpack.c.bf16 %v1803, %v1801
        %v1842 = vpack.c.bf16 %v1806, %v1804
        %v1843 = vpack.c.bf16 %v1807, %v1805
        %v1844 = vpack.c.bf16 %v1810, %v1808
        %v1845 = vpack.c.bf16 %v1811, %v1809
        %v1846 = vpack.c.bf16 %v1814, %v1812
        %v1847 = vpack.c.bf16 %v1815, %v1813
        %v1848 = vld [vmem:[#allocation8] sm:$0xff]
        %v1849 = vld [vmem:[#allocation8 + $0x8] sm:$0xff]
        %v1850 = vld [vmem:[#allocation8 + $0x10] sm:$0xff]
        %v1851 = vld [vmem:[#allocation8 + $0x18] sm:$0xff]
        %v1852 = vld [vmem:[#allocation8 + $0x20] sm:$0xff]
        %v1853 = vld [vmem:[#allocation8 + $0x28] sm:$0xff]
        %v1854 = vld [vmem:[#allocation8 + $0x30] sm:$0xff]
        %v1855 = vld [vmem:[#allocation8 + $0x38] sm:$0xff]
        %v1856 = vld [vmem:[#allocation8 + $0x40] sm:$0xff]
        %v1857 = vld [vmem:[#allocation8 + $0x48] sm:$0xff]
        %v1858 = vld [vmem:[#allocation8 + $0x50] sm:$0xff]
        %v1859 = vld [vmem:[#allocation8 + $0x58] sm:$0xff]
        %v1860 = vld [vmem:[#allocation8 + $0x60] sm:$0xff]
        %v1861 = vld [vmem:[#allocation8 + $0x68] sm:$0xff]
        %v1862 = vld [vmem:[#allocation8 + $0x70] sm:$0xff]
        %v1863 = vld [vmem:[#allocation8 + $0x78] sm:$0xff]
        %v1864 = vld [vmem:[#allocation8 + $0x80] sm:$0xff]
        %v1865 = vld [vmem:[#allocation8 + $0x88] sm:$0xff]
        %v1866 = vld [vmem:[#allocation8 + $0x90] sm:$0xff]
        %v1867 = vld [vmem:[#allocation8 + $0x98] sm:$0xff]
        %v1868 = vld [vmem:[#allocation8 + $0xa0] sm:$0xff]
        %v1869 = vld [vmem:[#allocation8 + $0xa8] sm:$0xff]
        %v1870 = vld [vmem:[#allocation8 + $0xb0] sm:$0xff]
        %v1871 = vld [vmem:[#allocation8 + $0xb8] sm:$0xff]
        %v1872 = vld [vmem:[#allocation8 + $0xc0] sm:$0xff]
        %v1873 = vld [vmem:[#allocation8 + $0xc8] sm:$0xff]
        %v1874 = vld [vmem:[#allocation8 + $0xd0] sm:$0xff]
        %v1875 = vld [vmem:[#allocation8 + $0xd8] sm:$0xff]
        %v1876 = vld [vmem:[#allocation8 + $0xe0] sm:$0xff]
        %v1877 = vld [vmem:[#allocation8 + $0xe8] sm:$0xff]
        %v1878 = vld [vmem:[#allocation8 + $0xf0] sm:$0xff]
        %v1879 = vld [vmem:[#allocation8 + $0xf8] sm:$0xff]
        %v1912 = vunpack.c.l.b16 %v1848
        %v1913 = vunpack.c.h.b16 %v1848
        %v1914 = vunpack.c.l.b16 %v1849
        %v1915 = vunpack.c.h.b16 %v1849
        %v1916 = vunpack.c.l.b16 %v1850
        %v1917 = vunpack.c.h.b16 %v1850
        %v1918 = vunpack.c.l.b16 %v1851
        %v1919 = vunpack.c.h.b16 %v1851
        %v1920 = vunpack.c.l.b16 %v1852
        %v1921 = vunpack.c.h.b16 %v1852
        %v1922 = vunpack.c.l.b16 %v1853
        %v1923 = vunpack.c.h.b16 %v1853
        %v1924 = vunpack.c.l.b16 %v1854
        %v1925 = vunpack.c.h.b16 %v1854
        %v1926 = vunpack.c.l.b16 %v1855
        %v1927 = vunpack.c.h.b16 %v1855
        %v1928 = vunpack.c.l.b16 %v1856
        %v1929 = vunpack.c.h.b16 %v1856
        %v1930 = vunpack.c.l.b16 %v1857
        %v1931 = vunpack.c.h.b16 %v1857
        %v1932 = vunpack.c.l.b16 %v1858
        %v1933 = vunpack.c.h.b16 %v1858
        %v1934 = vunpack.c.l.b16 %v1859
        %v1935 = vunpack.c.h.b16 %v1859
        %v1936 = vunpack.c.l.b16 %v1860
        %v1937 = vunpack.c.h.b16 %v1860
        %v1938 = vunpack.c.l.b16 %v1861
        %v1939 = vunpack.c.h.b16 %v1861
        %v1940 = vunpack.c.l.b16 %v1862
        %v1941 = vunpack.c.h.b16 %v1862
        %v1942 = vunpack.c.l.b16 %v1863
        %v1943 = vunpack.c.h.b16 %v1863
        %v1944 = vunpack.c.l.b16 %v1864
        %v1945 = vunpack.c.h.b16 %v1864
        %v1946 = vunpack.c.l.b16 %v1865
        %v1947 = vunpack.c.h.b16 %v1865
        %v1948 = vunpack.c.l.b16 %v1866
        %v1949 = vunpack.c.h.b16 %v1866
        %v1950 = vunpack.c.l.b16 %v1867
        %v1951 = vunpack.c.h.b16 %v1867
        %v1952 = vunpack.c.l.b16 %v1868
        %v1953 = vunpack.c.h.b16 %v1868
        %v1954 = vunpack.c.l.b16 %v1869
        %v1955 = vunpack.c.h.b16 %v1869
        %v1956 = vunpack.c.l.b16 %v1870
        %v1957 = vunpack.c.h.b16 %v1870
        %v1958 = vunpack.c.l.b16 %v1871
        %v1959 = vunpack.c.h.b16 %v1871
        %v1960 = vunpack.c.l.b16 %v1872
        %v1961 = vunpack.c.h.b16 %v1872
        %v1962 = vunpack.c.l.b16 %v1873
        %v1963 = vunpack.c.h.b16 %v1873
        %v1964 = vunpack.c.l.b16 %v1874
        %v1965 = vunpack.c.h.b16 %v1874
        %v1966 = vunpack.c.l.b16 %v1875
        %v1967 = vunpack.c.h.b16 %v1875
        %v1968 = vunpack.c.l.b16 %v1876
        %v1969 = vunpack.c.h.b16 %v1876
        %v1970 = vunpack.c.l.b16 %v1877
        %v1971 = vunpack.c.h.b16 %v1877
        %v1972 = vunpack.c.l.b16 %v1878
        %v1973 = vunpack.c.h.b16 %v1878
        %v1974 = vunpack.c.l.b16 %v1879
        %v1975 = vunpack.c.h.b16 %v1879
        %v1976 = vpack.c.b16 %v1914, %v1912
        %v1977 = vpack.c.b16 %v1915, %v1913
        %v1978 = vpack.c.b16 %v1918, %v1916
        %v1979 = vpack.c.b16 %v1919, %v1917
        %v1980 = vpack.c.b16 %v1922, %v1920
        %v1981 = vpack.c.b16 %v1923, %v1921
        %v1982 = vpack.c.b16 %v1926, %v1924
        %v1983 = vpack.c.b16 %v1927, %v1925
        %v1984 = vpack.c.b16 %v1930, %v1928
        %v1985 = vpack.c.b16 %v1931, %v1929
        %v1986 = vpack.c.b16 %v1934, %v1932
        %v1987 = vpack.c.b16 %v1935, %v1933
        %v1988 = vpack.c.b16 %v1938, %v1936
        %v1989 = vpack.c.b16 %v1939, %v1937
        %v1990 = vpack.c.b16 %v1942, %v1940
        %v1991 = vpack.c.b16 %v1943, %v1941
        %v1992 = vpack.c.b16 %v1946, %v1944
        %v1993 = vpack.c.b16 %v1947, %v1945
        %v1994 = vpack.c.b16 %v1950, %v1948
        %v1995 = vpack.c.b16 %v1951, %v1949
        %v1996 = vpack.c.b16 %v1954, %v1952
        %v1997 = vpack.c.b16 %v1955, %v1953
        %v1998 = vpack.c.b16 %v1958, %v1956
        %v1999 = vpack.c.b16 %v1959, %v1957
        %v2000 = vpack.c.b16 %v1962, %v1960
        %v2001 = vpack.c.b16 %v1963, %v1961
        %v2002 = vpack.c.b16 %v1966, %v1964
        %v2003 = vpack.c.b16 %v1967, %v1965
        %v2004 = vpack.c.b16 %v1970, %v1968
        %v2005 = vpack.c.b16 %v1971, %v1969
        %v2006 = vpack.c.b16 %v1974, %v1972
        %v2007 = vpack.c.b16 %v1975, %v1973
        %2040 = vmatprep.subr.bf16.mxu0 %v1991
        %2041 = vmatpush1.bf16.msra.mxu0 %v1990
        %2042 = vmatprep.subr.bf16.mxu0 %v1989
        %2043 = vmatpush1.bf16.msra.mxu0 %v1988
        %2044 = vmatprep.subr.bf16.mxu0 %v1987
        %2045 = vmatpush1.bf16.msra.mxu0 %v1986
        %2046 = vmatprep.subr.bf16.mxu0 %v1985
        %2047 = vmatpush1.bf16.msra.mxu0 %v1984
        %2048 = vmatprep.subr.bf16.mxu0 %v1983
        %2049 = vmatpush1.bf16.msra.mxu0 %v1982
        %2050 = vmatprep.subr.bf16.mxu0 %v1981
        %2051 = vmatpush1.bf16.msra.mxu0 %v1980
        %2052 = vmatprep.subr.bf16.mxu0 %v1979
        %2053 = vmatpush1.bf16.msra.mxu0 %v1978
        %2054 = vmatprep.subr.bf16.mxu0 %v1977
        %2055 = vmatpush1.bf16.msra.mxu0 %v1976
        %2056 = vmatprep.subr.bf16.mxu0 %v2007
        %2057 = vmatpush2.bf16.msra.mxu0 %v2006
        %2058 = vmatprep.subr.bf16.mxu0 %v2005
        %2059 = vmatpush2.bf16.msra.mxu0 %v2004
        %2060 = vmatprep.subr.bf16.mxu0 %v2003
        %2061 = vmatpush2.bf16.msra.mxu0 %v2002
        %2062 = vmatprep.subr.bf16.mxu0 %v2001
        %2063 = vmatpush2.bf16.msra.mxu0 %v2000
        %2064 = vmatprep.subr.bf16.mxu0 %v1999
        %2065 = vmatpush2.bf16.msra.mxu0 %v1998
        %2066 = vmatprep.subr.bf16.mxu0 %v1997
        %2067 = vmatpush2.bf16.msra.mxu0 %v1996
        %2068 = vmatprep.subr.bf16.mxu0 %v1995
        %2069 = vmatpush2.bf16.msra.mxu0 %v1994
        %2070 = vmatprep.subr.bf16.mxu0 %v1993
        %2071 = vmatpush2.bf16.msra.mxu0 %v1992
        %2072 = vmatprep.mubr.bf16.mxu0 %v1817
        %2073 = vmatmul.mubr.bf16.gmra.mxu0 %v1816
        %v2074 = vpop.f32.mrf.mxu0
        %v2075 = vadd.f32 0.0, %v2074
        %v2076 = vpop.f32.mrf.mxu0
        %v2077 = vadd.f32 0.0, %v2076
        %v2078 = vpop.f32.mrf.mxu0
        %v2079 = vadd.f32 0.0, %v2078
        %v2080 = vpop.f32.mrf.mxu0
        %v2081 = vadd.f32 0.0, %v2080
        %2082 = vmatprep.mubr.bf16.mxu0 %v1819
        %2083 = vmatmul.mubr.bf16.gmra.mxu0 %v1818
        %v2084 = vpop.f32.mrf.mxu0
        %v2085 = vadd.f32 0.0, %v2084
        %v2086 = vpop.f32.mrf.mxu0
        %v2087 = vadd.f32 0.0, %v2086
        %v2088 = vpop.f32.mrf.mxu0
        %v2089 = vadd.f32 0.0, %v2088
        %v2090 = vpop.f32.mrf.mxu0
        %v2091 = vadd.f32 0.0, %v2090
        %2092 = vmatprep.mubr.bf16.mxu0 %v1821
        %2093 = vmatmul.mubr.bf16.gmra.mxu0 %v1820
        %v2094 = vpop.f32.mrf.mxu0
        %v2095 = vadd.f32 0.0, %v2094
        %v2096 = vpop.f32.mrf.mxu0
        %v2097 = vadd.f32 0.0, %v2096
        %v2098 = vpop.f32.mrf.mxu0
        %v2099 = vadd.f32 0.0, %v2098
        %v2100 = vpop.f32.mrf.mxu0
        %v2101 = vadd.f32 0.0, %v2100
        %2102 = vmatprep.mubr.bf16.mxu0 %v1823
        %2103 = vmatmul.mubr.bf16.gmra.mxu0 %v1822
        %v2104 = vpop.f32.mrf.mxu0
        %v2105 = vadd.f32 0.0, %v2104
        %v2106 = vpop.f32.mrf.mxu0
        %v2107 = vadd.f32 0.0, %v2106
        %v2108 = vpop.f32.mrf.mxu0
        %v2109 = vadd.f32 0.0, %v2108
        %v2110 = vpop.f32.mrf.mxu0
        %v2111 = vadd.f32 0.0, %v2110
        %2112 = vmatprep.mubr.bf16.mxu0 %v1825
        %2113 = vmatmul.mubr.bf16.gmra.mxu0 %v1824
        %v2114 = vpop.f32.mrf.mxu0
        %v2115 = vadd.f32 0.0, %v2114
        %v2116 = vpop.f32.mrf.mxu0
        %v2117 = vadd.f32 0.0, %v2116
        %v2118 = vpop.f32.mrf.mxu0
        %v2119 = vadd.f32 0.0, %v2118
        %v2120 = vpop.f32.mrf.mxu0
        %v2121 = vadd.f32 0.0, %v2120
        %2122 = vmatprep.mubr.bf16.mxu0 %v1827
        %2123 = vmatmul.mubr.bf16.gmra.mxu0 %v1826
        %v2124 = vpop.f32.mrf.mxu0
        %v2125 = vadd.f32 0.0, %v2124
        %v2126 = vpop.f32.mrf.mxu0
        %v2127 = vadd.f32 0.0, %v2126
        %v2128 = vpop.f32.mrf.mxu0
        %v2129 = vadd.f32 0.0, %v2128
        %v2130 = vpop.f32.mrf.mxu0
        %v2131 = vadd.f32 0.0, %v2130
        %2132 = vmatprep.mubr.bf16.mxu0 %v1829
        %2133 = vmatmul.mubr.bf16.gmra.mxu0 %v1828
        %v2134 = vpop.f32.mrf.mxu0
        %v2135 = vadd.f32 0.0, %v2134
        %v2136 = vpop.f32.mrf.mxu0
        %v2137 = vadd.f32 0.0, %v2136
        %v2138 = vpop.f32.mrf.mxu0
        %v2139 = vadd.f32 0.0, %v2138
        %v2140 = vpop.f32.mrf.mxu0
        %v2141 = vadd.f32 0.0, %v2140
        %2142 = vmatprep.mubr.bf16.mxu0 %v1831
        %2143 = vmatmul.mubr.bf16.gmra.mxu0 %v1830
        %v2144 = vpop.f32.mrf.mxu0
        %v2145 = vadd.f32 0.0, %v2144
        %v2146 = vpop.f32.mrf.mxu0
        %v2147 = vadd.f32 0.0, %v2146
        %v2148 = vpop.f32.mrf.mxu0
        %v2149 = vadd.f32 0.0, %v2148
        %v2150 = vpop.f32.mrf.mxu0
        %v2151 = vadd.f32 0.0, %v2150
        %2152 = vmatprep.mubr.bf16.mxu0 %v1833
        %2153 = vmatmul.mubr.bf16.gmra.mxu0 %v1832
        %v2154 = vpop.f32.mrf.mxu0
        %v2155 = vadd.f32 0.0, %v2154
        %v2156 = vpop.f32.mrf.mxu0
        %v2157 = vadd.f32 0.0, %v2156
        %v2158 = vpop.f32.mrf.mxu0
        %v2159 = vadd.f32 0.0, %v2158
        %v2160 = vpop.f32.mrf.mxu0
        %v2161 = vadd.f32 0.0, %v2160
        %2162 = vmatprep.mubr.bf16.mxu0 %v1835
        %2163 = vmatmul.mubr.bf16.gmra.mxu0 %v1834
        %v2164 = vpop.f32.mrf.mxu0
        %v2165 = vadd.f32 0.0, %v2164
        %v2166 = vpop.f32.mrf.mxu0
        %v2167 = vadd.f32 0.0, %v2166
        %v2168 = vpop.f32.mrf.mxu0
        %v2169 = vadd.f32 0.0, %v2168
        %v2170 = vpop.f32.mrf.mxu0
        %v2171 = vadd.f32 0.0, %v2170
        %2172 = vmatprep.mubr.bf16.mxu0 %v1837
        %2173 = vmatmul.mubr.bf16.gmra.mxu0 %v1836
        %v2174 = vpop.f32.mrf.mxu0
        %v2175 = vadd.f32 0.0, %v2174
        %v2176 = vpop.f32.mrf.mxu0
        %v2177 = vadd.f32 0.0, %v2176
        %v2178 = vpop.f32.mrf.mxu0
        %v2179 = vadd.f32 0.0, %v2178
        %v2180 = vpop.f32.mrf.mxu0
        %v2181 = vadd.f32 0.0, %v2180
        %2182 = vmatprep.mubr.bf16.mxu0 %v1839
        %2183 = vmatmul.mubr.bf16.gmra.mxu0 %v1838
        %v2184 = vpop.f32.mrf.mxu0
        %v2185 = vadd.f32 0.0, %v2184
        %v2186 = vpop.f32.mrf.mxu0
        %v2187 = vadd.f32 0.0, %v2186
        %v2188 = vpop.f32.mrf.mxu0
        %v2189 = vadd.f32 0.0, %v2188
        %v2190 = vpop.f32.mrf.mxu0
        %v2191 = vadd.f32 0.0, %v2190
        %2192 = vmatprep.mubr.bf16.mxu0 %v1841
        %2193 = vmatmul.mubr.bf16.gmra.mxu0 %v1840
        %v2194 = vpop.f32.mrf.mxu0
        %v2195 = vadd.f32 0.0, %v2194
        %v2196 = vpop.f32.mrf.mxu0
        %v2197 = vadd.f32 0.0, %v2196
        %v2198 = vpop.f32.mrf.mxu0
        %v2199 = vadd.f32 0.0, %v2198
        %v2200 = vpop.f32.mrf.mxu0
        %v2201 = vadd.f32 0.0, %v2200
        %2202 = vmatprep.mubr.bf16.mxu0 %v1843
        %2203 = vmatmul.mubr.bf16.gmra.mxu0 %v1842
        %v2204 = vpop.f32.mrf.mxu0
        %v2205 = vadd.f32 0.0, %v2204
        %v2206 = vpop.f32.mrf.mxu0
        %v2207 = vadd.f32 0.0, %v2206
        %v2208 = vpop.f32.mrf.mxu0
        %v2209 = vadd.f32 0.0, %v2208
        %v2210 = vpop.f32.mrf.mxu0
        %v2211 = vadd.f32 0.0, %v2210
        %2212 = vmatprep.mubr.bf16.mxu0 %v1845
        %2213 = vmatmul.mubr.bf16.gmra.mxu0 %v1844
        %v2214 = vpop.f32.mrf.mxu0
        %v2215 = vadd.f32 0.0, %v2214
        %v2216 = vpop.f32.mrf.mxu0
        %v2217 = vadd.f32 0.0, %v2216
        %v2218 = vpop.f32.mrf.mxu0
        %v2219 = vadd.f32 0.0, %v2218
        %v2220 = vpop.f32.mrf.mxu0
        %v2221 = vadd.f32 0.0, %v2220
        %2222 = vmatprep.mubr.bf16.mxu0 %v1847
        %2223 = vmatmul.mubr.bf16.gmra.mxu0 %v1846
        %v2224 = vpop.f32.mrf.mxu0
        %v2225 = vadd.f32 0.0, %v2224
        %v2226 = vpop.f32.mrf.mxu0
        %v2227 = vadd.f32 0.0, %v2226
        %v2228 = vpop.f32.mrf.mxu0
        %v2229 = vadd.f32 0.0, %v2228
        %v2230 = vpop.f32.mrf.mxu0
        %v2231 = vadd.f32 0.0, %v2230
        %2232 = vdwg.mxu0
        %v2233 = vmax.f32 %v2075, 0.0
        %v2234 = vmax.f32 %v2077, 0.0
        %v2235 = vmax.f32 %v2079, 0.0
        %v2236 = vmax.f32 %v2081, 0.0
        %v2237 = vmax.f32 %v2085, 0.0
        %v2238 = vmax.f32 %v2087, 0.0
        %v2239 = vmax.f32 %v2089, 0.0
        %v2240 = vmax.f32 %v2091, 0.0
        %v2241 = vmax.f32 %v2095, 0.0
        %v2242 = vmax.f32 %v2097, 0.0
        %v2243 = vmax.f32 %v2099, 0.0
        %v2244 = vmax.f32 %v2101, 0.0
        %v2245 = vmax.f32 %v2105, 0.0
        %v2246 = vmax.f32 %v2107, 0.0
        %v2247 = vmax.f32 %v2109, 0.0
        %v2248 = vmax.f32 %v2111, 0.0
        %v2249 = vmax.f32 %v2115, 0.0
        %v2250 = vmax.f32 %v2117, 0.0
        %v2251 = vmax.f32 %v2119, 0.0
        %v2252 = vmax.f32 %v2121, 0.0
        %v2253 = vmax.f32 %v2125, 0.0
        %v2254 = vmax.f32 %v2127, 0.0
        %v2255 = vmax.f32 %v2129, 0.0
        %v2256 = vmax.f32 %v2131, 0.0
        %v2257 = vmax.f32 %v2135, 0.0
        %v2258 = vmax.f32 %v2137, 0.0
        %v2259 = vmax.f32 %v2139, 0.0
        %v2260 = vmax.f32 %v2141, 0.0
        %v2261 = vmax.f32 %v2145, 0.0
        %v2262 = vmax.f32 %v2147, 0.0
        %v2263 = vmax.f32 %v2149, 0.0
        %v2264 = vmax.f32 %v2151, 0.0
        %v2265 = vmax.f32 %v2155, 0.0
        %v2266 = vmax.f32 %v2157, 0.0
        %v2267 = vmax.f32 %v2159, 0.0
        %v2268 = vmax.f32 %v2161, 0.0
        %v2269 = vmax.f32 %v2165, 0.0
        %v2270 = vmax.f32 %v2167, 0.0
        %v2271 = vmax.f32 %v2169, 0.0
        %v2272 = vmax.f32 %v2171, 0.0
        %v2273 = vmax.f32 %v2175, 0.0
        %v2274 = vmax.f32 %v2177, 0.0
        %v2275 = vmax.f32 %v2179, 0.0
        %v2276 = vmax.f32 %v2181, 0.0
        %v2277 = vmax.f32 %v2185, 0.0
        %v2278 = vmax.f32 %v2187, 0.0
        %v2279 = vmax.f32 %v2189, 0.0
        %v2280 = vmax.f32 %v2191, 0.0
        %v2281 = vmax.f32 %v2195, 0.0
        %v2282 = vmax.f32 %v2197, 0.0
        %v2283 = vmax.f32 %v2199, 0.0
        %v2284 = vmax.f32 %v2201, 0.0
        %v2285 = vmax.f32 %v2205, 0.0
        %v2286 = vmax.f32 %v2207, 0.0
        %v2287 = vmax.f32 %v2209, 0.0
        %v2288 = vmax.f32 %v2211, 0.0
        %v2289 = vmax.f32 %v2215, 0.0
        %v2290 = vmax.f32 %v2217, 0.0
        %v2291 = vmax.f32 %v2219, 0.0
        %v2292 = vmax.f32 %v2221, 0.0
        %v2293 = vmax.f32 %v2225, 0.0
        %v2294 = vmax.f32 %v2227, 0.0
        %v2295 = vmax.f32 %v2229, 0.0
        %v2296 = vmax.f32 %v2231, 0.0
        %v2297 = vld [vmem:[%s336 + $0x10] sm:$0xff]
        %v2298 = vld [vmem:[%s336 + $0x28] sm:$0xff]
        %v2299 = vld [vmem:[%s336 + $0x40] sm:$0xff]
        %v2300 = vld [vmem:[%s336 + $0x58] sm:$0xff]
        %v2301 = vld [vmem:[%s336 + $0x70] sm:$0xff]
        %v2302 = vld [vmem:[%s336 + $0x88] sm:$0xff]
        %v2303 = vld [vmem:[%s336 + $0xa0] sm:$0xff]
        %v2304 = vld [vmem:[%s336 + $0xb8] sm:$0xff]
        %v2305 = vld [vmem:[%s336 + $0xd0] sm:$0xff]
        %v2306 = vld [vmem:[%s336 + $0xe8] sm:$0xff]
        %v2307 = vld [vmem:[%s336 + $0x100] sm:$0xff]
        %v2308 = vld [vmem:[%s336 + $0x118] sm:$0xff]
        %v2309 = vld [vmem:[%s336 + $0x130] sm:$0xff]
        %v2310 = vld [vmem:[%s336 + $0x148] sm:$0xff]
        %v2311 = vld [vmem:[%s336 + $0x160] sm:$0xff]
        %v2312 = vld [vmem:[%s336 + $0x178] sm:$0xff]
        %v2313 = vld [vmem:[%s336 + $0x190] sm:$0xff]
        %v2314 = vld [vmem:[%s336 + $0x1a8] sm:$0xff]
        %v2315 = vld [vmem:[%s336 + $0x1c0] sm:$0xff]
        %v2316 = vld [vmem:[%s336 + $0x1d8] sm:$0xff]
        %v2317 = vld [vmem:[%s336 + $0x1f0] sm:$0xff]
        %v2318 = vld [vmem:[%s336 + $0x208] sm:$0xff]
        %v2319 = vld [vmem:[%s336 + $0x220] sm:$0xff]
        %v2320 = vld [vmem:[%s336 + $0x238] sm:$0xff]
        %v2321 = vld [vmem:[%s336 + $0x250] sm:$0xff]
        %v2322 = vld [vmem:[%s336 + $0x268] sm:$0xff]
        %v2323 = vld [vmem:[%s336 + $0x280] sm:$0xff]
        %v2324 = vld [vmem:[%s336 + $0x298] sm:$0xff]
        %v2325 = vld [vmem:[%s336 + $0x2b0] sm:$0xff]
        %v2326 = vld [vmem:[%s336 + $0x2c8] sm:$0xff]
        %v2327 = vld [vmem:[%s336 + $0x2e0] sm:$0xff]
        %v2328 = vld [vmem:[%s336 + $0x2f8] sm:$0xff]
        %v2329 = vunpack.c.l.bf16 %v2297
        %v2330 = vunpack.c.h.bf16 %v2297
        %v2331 = vunpack.c.l.bf16 %v2298
        %v2332 = vunpack.c.h.bf16 %v2298
        %v2333 = vunpack.c.l.bf16 %v2299
        %v2334 = vunpack.c.h.bf16 %v2299
        %v2335 = vunpack.c.l.bf16 %v2300
        %v2336 = vunpack.c.h.bf16 %v2300
        %v2337 = vunpack.c.l.bf16 %v2301
        %v2338 = vunpack.c.h.bf16 %v2301
        %v2339 = vunpack.c.l.bf16 %v2302
        %v2340 = vunpack.c.h.bf16 %v2302
        %v2341 = vunpack.c.l.bf16 %v2303
        %v2342 = vunpack.c.h.bf16 %v2303
        %v2343 = vunpack.c.l.bf16 %v2304
        %v2344 = vunpack.c.h.bf16 %v2304
        %v2345 = vunpack.c.l.bf16 %v2305
        %v2346 = vunpack.c.h.bf16 %v2305
        %v2347 = vunpack.c.l.bf16 %v2306
        %v2348 = vunpack.c.h.bf16 %v2306
        %v2349 = vunpack.c.l.bf16 %v2307
        %v2350 = vunpack.c.h.bf16 %v2307
        %v2351 = vunpack.c.l.bf16 %v2308
        %v2352 = vunpack.c.h.bf16 %v2308
        %v2353 = vunpack.c.l.bf16 %v2309
        %v2354 = vunpack.c.h.bf16 %v2309
        %v2355 = vunpack.c.l.bf16 %v2310
        %v2356 = vunpack.c.h.bf16 %v2310
        %v2357 = vunpack.c.l.bf16 %v2311
        %v2358 = vunpack.c.h.bf16 %v2311
        %v2359 = vunpack.c.l.bf16 %v2312
        %v2360 = vunpack.c.h.bf16 %v2312
        %v2361 = vunpack.c.l.bf16 %v2313
        %v2362 = vunpack.c.h.bf16 %v2313
        %v2363 = vunpack.c.l.bf16 %v2314
        %v2364 = vunpack.c.h.bf16 %v2314
        %v2365 = vunpack.c.l.bf16 %v2315
        %v2366 = vunpack.c.h.bf16 %v2315
        %v2367 = vunpack.c.l.bf16 %v2316
        %v2368 = vunpack.c.h.bf16 %v2316
        %v2369 = vunpack.c.l.bf16 %v2317
        %v2370 = vunpack.c.h.bf16 %v2317
        %v2371 = vunpack.c.l.bf16 %v2318
        %v2372 = vunpack.c.h.bf16 %v2318
        %v2373 = vunpack.c.l.bf16 %v2319
        %v2374 = vunpack.c.h.bf16 %v2319
        %v2375 = vunpack.c.l.bf16 %v2320
        %v2376 = vunpack.c.h.bf16 %v2320
        %v2377 = vunpack.c.l.bf16 %v2321
        %v2378 = vunpack.c.h.bf16 %v2321
        %v2379 = vunpack.c.l.bf16 %v2322
        %v2380 = vunpack.c.h.bf16 %v2322
        %v2381 = vunpack.c.l.bf16 %v2323
        %v2382 = vunpack.c.h.bf16 %v2323
        %v2383 = vunpack.c.l.bf16 %v2324
        %v2384 = vunpack.c.h.bf16 %v2324
        %v2385 = vunpack.c.l.bf16 %v2325
        %v2386 = vunpack.c.h.bf16 %v2325
        %v2387 = vunpack.c.l.bf16 %v2326
        %v2388 = vunpack.c.h.bf16 %v2326
        %v2389 = vunpack.c.l.bf16 %v2327
        %v2390 = vunpack.c.h.bf16 %v2327
        %v2391 = vunpack.c.l.bf16 %v2328
        %v2392 = vunpack.c.h.bf16 %v2328
        %v2393 = vmul.f32 %v2233, %v2329
        %v2394 = vmul.f32 %v2234, %v2330
        %v2395 = vmul.f32 %v2235, %v2331
        %v2396 = vmul.f32 %v2236, %v2332
        %v2397 = vmul.f32 %v2237, %v2333
        %v2398 = vmul.f32 %v2238, %v2334
        %v2399 = vmul.f32 %v2239, %v2335
        %v2400 = vmul.f32 %v2240, %v2336
        %v2401 = vmul.f32 %v2241, %v2337
        %v2402 = vmul.f32 %v2242, %v2338
        %v2403 = vmul.f32 %v2243, %v2339
        %v2404 = vmul.f32 %v2244, %v2340
        %v2405 = vmul.f32 %v2245, %v2341
        %v2406 = vmul.f32 %v2246, %v2342
        %v2407 = vmul.f32 %v2247, %v2343
        %v2408 = vmul.f32 %v2248, %v2344
        %v2409 = vmul.f32 %v2249, %v2345
        %v2410 = vmul.f32 %v2250, %v2346
        %v2411 = vmul.f32 %v2251, %v2347
        %v2412 = vmul.f32 %v2252, %v2348
        %v2413 = vmul.f32 %v2253, %v2349
        %v2414 = vmul.f32 %v2254, %v2350
        %v2415 = vmul.f32 %v2255, %v2351
        %v2416 = vmul.f32 %v2256, %v2352
        %v2417 = vmul.f32 %v2257, %v2353
        %v2418 = vmul.f32 %v2258, %v2354
        %v2419 = vmul.f32 %v2259, %v2355
        %v2420 = vmul.f32 %v2260, %v2356
        %v2421 = vmul.f32 %v2261, %v2357
        %v2422 = vmul.f32 %v2262, %v2358
        %v2423 = vmul.f32 %v2263, %v2359
        %v2424 = vmul.f32 %v2264, %v2360
        %v2425 = vmul.f32 %v2265, %v2361
        %v2426 = vmul.f32 %v2266, %v2362
        %v2427 = vmul.f32 %v2267, %v2363
        %v2428 = vmul.f32 %v2268, %v2364
        %v2429 = vmul.f32 %v2269, %v2365
        %v2430 = vmul.f32 %v2270, %v2366
        %v2431 = vmul.f32 %v2271, %v2367
        %v2432 = vmul.f32 %v2272, %v2368
        %v2433 = vmul.f32 %v2273, %v2369
        %v2434 = vmul.f32 %v2274, %v2370
        %v2435 = vmul.f32 %v2275, %v2371
        %v2436 = vmul.f32 %v2276, %v2372
        %v2437 = vmul.f32 %v2277, %v2373
        %v2438 = vmul.f32 %v2278, %v2374
        %v2439 = vmul.f32 %v2279, %v2375
        %v2440 = vmul.f32 %v2280, %v2376
        %v2441 = vmul.f32 %v2281, %v2377
        %v2442 = vmul.f32 %v2282, %v2378
        %v2443 = vmul.f32 %v2283, %v2379
        %v2444 = vmul.f32 %v2284, %v2380
        %v2445 = vmul.f32 %v2285, %v2381
        %v2446 = vmul.f32 %v2286, %v2382
        %v2447 = vmul.f32 %v2287, %v2383
        %v2448 = vmul.f32 %v2288, %v2384
        %v2449 = vmul.f32 %v2289, %v2385
        %v2450 = vmul.f32 %v2290, %v2386
        %v2451 = vmul.f32 %v2291, %v2387
        %v2452 = vmul.f32 %v2292, %v2388
        %v2453 = vmul.f32 %v2293, %v2389
        %v2454 = vmul.f32 %v2294, %v2390
        %v2455 = vmul.f32 %v2295, %v2391
        %v2456 = vmul.f32 %v2296, %v2392
        %v2457 = vpack.c.bf16 %v2395, %v2393
        %v2458 = vpack.c.bf16 %v2396, %v2394
        %v2459 = vpack.c.bf16 %v2399, %v2397
        %v2460 = vpack.c.bf16 %v2400, %v2398
        %v2461 = vpack.c.bf16 %v2403, %v2401
        %v2462 = vpack.c.bf16 %v2404, %v2402
        %v2463 = vpack.c.bf16 %v2407, %v2405
        %v2464 = vpack.c.bf16 %v2408, %v2406
        %v2465 = vpack.c.bf16 %v2411, %v2409
        %v2466 = vpack.c.bf16 %v2412, %v2410
        %v2467 = vpack.c.bf16 %v2415, %v2413
        %v2468 = vpack.c.bf16 %v2416, %v2414
        %v2469 = vpack.c.bf16 %v2419, %v2417
        %v2470 = vpack.c.bf16 %v2420, %v2418
        %v2471 = vpack.c.bf16 %v2423, %v2421
        %v2472 = vpack.c.bf16 %v2424, %v2422
        %v2473 = vpack.c.bf16 %v2427, %v2425
        %v2474 = vpack.c.bf16 %v2428, %v2426
        %v2475 = vpack.c.bf16 %v2431, %v2429
        %v2476 = vpack.c.bf16 %v2432, %v2430
        %v2477 = vpack.c.bf16 %v2435, %v2433
        %v2478 = vpack.c.bf16 %v2436, %v2434
        %v2479 = vpack.c.bf16 %v2439, %v2437
        %v2480 = vpack.c.bf16 %v2440, %v2438
        %v2481 = vpack.c.bf16 %v2443, %v2441
        %v2482 = vpack.c.bf16 %v2444, %v2442
        %v2483 = vpack.c.bf16 %v2447, %v2445
        %v2484 = vpack.c.bf16 %v2448, %v2446
        %v2485 = vpack.c.bf16 %v2451, %v2449
        %v2486 = vpack.c.bf16 %v2452, %v2450
        %v2487 = vpack.c.bf16 %v2455, %v2453
        %v2488 = vpack.c.bf16 %v2456, %v2454
        %v2489 = vld [vmem:[#allocation10] sm:$0xf]
        %v2490 = vld [vmem:[#allocation10 + $0x4] sm:$0xf]
        %v2491 = vld [vmem:[#allocation10 + $0x8] sm:$0xf]
        %v2492 = vld [vmem:[#allocation10 + $0xc] sm:$0xf]
        %v2493 = vld [vmem:[#allocation10 + $0x10] sm:$0xf]
        %v2494 = vld [vmem:[#allocation10 + $0x14] sm:$0xf]
        %v2495 = vld [vmem:[#allocation10 + $0x18] sm:$0xf]
        %v2496 = vld [vmem:[#allocation10 + $0x1c] sm:$0xf]
        %v2497 = vld [vmem:[#allocation10 + $0x20] sm:$0xf]
        %v2498 = vld [vmem:[#allocation10 + $0x24] sm:$0xf]
        %v2499 = vld [vmem:[#allocation10 + $0x28] sm:$0xf]
        %v2500 = vld [vmem:[#allocation10 + $0x2c] sm:$0xf]
        %v2501 = vld [vmem:[#allocation10 + $0x30] sm:$0xf]
        %v2502 = vld [vmem:[#allocation10 + $0x34] sm:$0xf]
        %v2503 = vld [vmem:[#allocation10 + $0x38] sm:$0xf]
        %v2504 = vld [vmem:[#allocation10 + $0x3c] sm:$0xf]
        %v2505 = vld [vmem:[#allocation10 + $0x40] sm:$0xf]
        %v2506 = vld [vmem:[#allocation10 + $0x44] sm:$0xf]
        %v2507 = vld [vmem:[#allocation10 + $0x48] sm:$0xf]
        %v2508 = vld [vmem:[#allocation10 + $0x4c] sm:$0xf]
        %v2509 = vld [vmem:[#allocation10 + $0x50] sm:$0xf]
        %v2510 = vld [vmem:[#allocation10 + $0x54] sm:$0xf]
        %v2511 = vld [vmem:[#allocation10 + $0x58] sm:$0xf]
        %v2512 = vld [vmem:[#allocation10 + $0x5c] sm:$0xf]
        %v2513 = vld [vmem:[#allocation10 + $0x60] sm:$0xf]
        %v2514 = vld [vmem:[#allocation10 + $0x64] sm:$0xf]
        %v2515 = vld [vmem:[#allocation10 + $0x68] sm:$0xf]
        %v2516 = vld [vmem:[#allocation10 + $0x6c] sm:$0xf]
        %v2517 = vld [vmem:[#allocation10 + $0x70] sm:$0xf]
        %v2518 = vld [vmem:[#allocation10 + $0x74] sm:$0xf]
        %v2519 = vld [vmem:[#allocation10 + $0x78] sm:$0xf]
        %v2520 = vld [vmem:[#allocation10 + $0x7c] sm:$0xf]
        %v2553 = vunpack.c.l.b16 %v2489
        %v2554 = vunpack.c.l.b16 %v2490
        %v2555 = vunpack.c.l.b16 %v2491
        %v2556 = vunpack.c.l.b16 %v2492
        %v2557 = vunpack.c.l.b16 %v2493
        %v2558 = vunpack.c.l.b16 %v2494
        %v2559 = vunpack.c.l.b16 %v2495
        %v2560 = vunpack.c.l.b16 %v2496
        %v2561 = vunpack.c.l.b16 %v2497
        %v2562 = vunpack.c.l.b16 %v2498
        %v2563 = vunpack.c.l.b16 %v2499
        %v2564 = vunpack.c.l.b16 %v2500
        %v2565 = vunpack.c.l.b16 %v2501
        %v2566 = vunpack.c.l.b16 %v2502
        %v2567 = vunpack.c.l.b16 %v2503
        %v2568 = vunpack.c.l.b16 %v2504
        %v2569 = vunpack.c.l.b16 %v2505
        %v2570 = vunpack.c.l.b16 %v2506
        %v2571 = vunpack.c.l.b16 %v2507
        %v2572 = vunpack.c.l.b16 %v2508
        %v2573 = vunpack.c.l.b16 %v2509
        %v2574 = vunpack.c.l.b16 %v2510
        %v2575 = vunpack.c.l.b16 %v2511
        %v2576 = vunpack.c.l.b16 %v2512
        %v2577 = vunpack.c.l.b16 %v2513
        %v2578 = vunpack.c.l.b16 %v2514
        %v2579 = vunpack.c.l.b16 %v2515
        %v2580 = vunpack.c.l.b16 %v2516
        %v2581 = vunpack.c.l.b16 %v2517
        %v2582 = vunpack.c.l.b16 %v2518
        %v2583 = vunpack.c.l.b16 %v2519
        %v2584 = vunpack.c.l.b16 %v2520
        %v2585 = vpack.c.b16 %v2554, %v2553
        %v2586 = vpack.c.b16 %v2556, %v2555
        %v2587 = vpack.c.b16 %v2558, %v2557
        %v2588 = vpack.c.b16 %v2560, %v2559
        %v2589 = vpack.c.b16 %v2562, %v2561
        %v2590 = vpack.c.b16 %v2564, %v2563
        %v2591 = vpack.c.b16 %v2566, %v2565
        %v2592 = vpack.c.b16 %v2568, %v2567
        %v2593 = vpack.c.b16 %v2570, %v2569
        %v2594 = vpack.c.b16 %v2572, %v2571
        %v2595 = vpack.c.b16 %v2574, %v2573
        %v2596 = vpack.c.b16 %v2576, %v2575
        %v2597 = vpack.c.b16 %v2578, %v2577
        %v2598 = vpack.c.b16 %v2580, %v2579
        %v2599 = vpack.c.b16 %v2582, %v2581
        %v2600 = vpack.c.b16 %v2584, %v2583
        %2617 = vmatprep.subr.bf16.mxu0 0
        %2618 = vmatpush1.bf16.msra.mxu0 %v2592
        %2619 = vmatprep.subr.bf16.mxu0 0
        %2620 = vmatpush1.bf16.msra.mxu0 %v2591
        %2621 = vmatprep.subr.bf16.mxu0 0
        %2622 = vmatpush1.bf16.msra.mxu0 %v2590
        %2623 = vmatprep.subr.bf16.mxu0 0
        %2624 = vmatpush1.bf16.msra.mxu0 %v2589
        %2625 = vmatprep.subr.bf16.mxu0 0
        %2626 = vmatpush1.bf16.msra.mxu0 %v2588
        %2627 = vmatprep.subr.bf16.mxu0 0
        %2628 = vmatpush1.bf16.msra.mxu0 %v2587
        %2629 = vmatprep.subr.bf16.mxu0 0
        %2630 = vmatpush1.bf16.msra.mxu0 %v2586
        %2631 = vmatprep.subr.bf16.mxu0 0
        %2632 = vmatpush1.bf16.msra.mxu0 %v2585
        %2633 = vmatprep.subr.bf16.mxu0 0
        %2634 = vmatpush2.bf16.msra.mxu0 %v2600
        %2635 = vmatprep.subr.bf16.mxu0 0
        %2636 = vmatpush2.bf16.msra.mxu0 %v2599
        %2637 = vmatprep.subr.bf16.mxu0 0
        %2638 = vmatpush2.bf16.msra.mxu0 %v2598
        %2639 = vmatprep.subr.bf16.mxu0 0
        %2640 = vmatpush2.bf16.msra.mxu0 %v2597
        %2641 = vmatprep.subr.bf16.mxu0 0
        %2642 = vmatpush2.bf16.msra.mxu0 %v2596
        %2643 = vmatprep.subr.bf16.mxu0 0
        %2644 = vmatpush2.bf16.msra.mxu0 %v2595
        %2645 = vmatprep.subr.bf16.mxu0 0
        %2646 = vmatpush2.bf16.msra.mxu0 %v2594
        %2647 = vmatprep.subr.bf16.mxu0 0
        %2648 = vmatpush2.bf16.msra.mxu0 %v2593
        %2649 = vmatprep.mubr.bf16.mxu0 %v2458
        %2650 = vmatmul.mubr.bf16.gmra.mxu0 %v2457
        %v2651 = vpop.f32.mrf.mxu0
        %v2652 = vadd.f32 0.0, %v2651
        %v2653 = vpop.f32.mrf.mxu0
        %v2654 = vpop.f32.mrf.mxu0
        %v2655 = vadd.f32 0.0, %v2654
        %v2656 = vpop.f32.mrf.mxu0
        %2657 = vmatprep.mubr.bf16.mxu0 %v2460
        %2658 = vmatmul.mubr.bf16.gmra.mxu0 %v2459
        %v2659 = vpop.f32.mrf.mxu0
        %v2660 = vadd.f32 0.0, %v2659
        %v2661 = vpop.f32.mrf.mxu0
        %v2662 = vpop.f32.mrf.mxu0
        %v2663 = vadd.f32 0.0, %v2662
        %v2664 = vpop.f32.mrf.mxu0
        %2665 = vmatprep.mubr.bf16.mxu0 %v2462
        %2666 = vmatmul.mubr.bf16.gmra.mxu0 %v2461
        %v2667 = vpop.f32.mrf.mxu0
        %v2668 = vadd.f32 0.0, %v2667
        %v2669 = vpop.f32.mrf.mxu0
        %v2670 = vpop.f32.mrf.mxu0
        %v2671 = vadd.f32 0.0, %v2670
        %v2672 = vpop.f32.mrf.mxu0
        %2673 = vmatprep.mubr.bf16.mxu0 %v2464
        %2674 = vmatmul.mubr.bf16.gmra.mxu0 %v2463
        %v2675 = vpop.f32.mrf.mxu0
        %v2676 = vadd.f32 0.0, %v2675
        %v2677 = vpop.f32.mrf.mxu0
        %v2678 = vpop.f32.mrf.mxu0
        %v2679 = vadd.f32 0.0, %v2678
        %v2680 = vpop.f32.mrf.mxu0
        %2681 = vmatprep.mubr.bf16.mxu0 %v2466
        %2682 = vmatmul.mubr.bf16.gmra.mxu0 %v2465
        %v2683 = vpop.f32.mrf.mxu0
        %v2684 = vadd.f32 0.0, %v2683
        %v2685 = vpop.f32.mrf.mxu0
        %v2686 = vpop.f32.mrf.mxu0
        %v2687 = vadd.f32 0.0, %v2686
        %v2688 = vpop.f32.mrf.mxu0
        %2689 = vmatprep.mubr.bf16.mxu0 %v2468
        %2690 = vmatmul.mubr.bf16.gmra.mxu0 %v2467
        %v2691 = vpop.f32.mrf.mxu0
        %v2692 = vadd.f32 0.0, %v2691
        %v2693 = vpop.f32.mrf.mxu0
        %v2694 = vpop.f32.mrf.mxu0
        %v2695 = vadd.f32 0.0, %v2694
        %v2696 = vpop.f32.mrf.mxu0
        %2697 = vmatprep.mubr.bf16.mxu0 %v2470
        %2698 = vmatmul.mubr.bf16.gmra.mxu0 %v2469
        %v2699 = vpop.f32.mrf.mxu0
        %v2700 = vadd.f32 0.0, %v2699
        %v2701 = vpop.f32.mrf.mxu0
        %v2702 = vpop.f32.mrf.mxu0
        %v2703 = vadd.f32 0.0, %v2702
        %v2704 = vpop.f32.mrf.mxu0
        %2705 = vmatprep.mubr.bf16.mxu0 %v2472
        %2706 = vmatmul.mubr.bf16.gmra.mxu0 %v2471
        %v2707 = vpop.f32.mrf.mxu0
        %v2708 = vadd.f32 0.0, %v2707
        %v2709 = vpop.f32.mrf.mxu0
        %v2710 = vpop.f32.mrf.mxu0
        %v2711 = vadd.f32 0.0, %v2710
        %v2712 = vpop.f32.mrf.mxu0
        %2713 = vmatprep.mubr.bf16.mxu0 %v2474
        %2714 = vmatmul.mubr.bf16.gmra.mxu0 %v2473
        %v2715 = vpop.f32.mrf.mxu0
        %v2716 = vadd.f32 0.0, %v2715
        %v2717 = vpop.f32.mrf.mxu0
        %v2718 = vpop.f32.mrf.mxu0
        %v2719 = vadd.f32 0.0, %v2718
        %v2720 = vpop.f32.mrf.mxu0
        %2721 = vmatprep.mubr.bf16.mxu0 %v2476
        %2722 = vmatmul.mubr.bf16.gmra.mxu0 %v2475
        %v2723 = vpop.f32.mrf.mxu0
        %v2724 = vadd.f32 0.0, %v2723
        %v2725 = vpop.f32.mrf.mxu0
        %v2726 = vpop.f32.mrf.mxu0
        %v2727 = vadd.f32 0.0, %v2726
        %v2728 = vpop.f32.mrf.mxu0
        %2729 = vmatprep.mubr.bf16.mxu0 %v2478
        %2730 = vmatmul.mubr.bf16.gmra.mxu0 %v2477
        %v2731 = vpop.f32.mrf.mxu0
        %v2732 = vadd.f32 0.0, %v2731
        %v2733 = vpop.f32.mrf.mxu0
        %v2734 = vpop.f32.mrf.mxu0
        %v2735 = vadd.f32 0.0, %v2734
        %v2736 = vpop.f32.mrf.mxu0
        %2737 = vmatprep.mubr.bf16.mxu0 %v2480
        %2738 = vmatmul.mubr.bf16.gmra.mxu0 %v2479
        %v2739 = vpop.f32.mrf.mxu0
        %v2740 = vadd.f32 0.0, %v2739
        %v2741 = vpop.f32.mrf.mxu0
        %v2742 = vpop.f32.mrf.mxu0
        %v2743 = vadd.f32 0.0, %v2742
        %v2744 = vpop.f32.mrf.mxu0
        %2745 = vmatprep.mubr.bf16.mxu0 %v2482
        %2746 = vmatmul.mubr.bf16.gmra.mxu0 %v2481
        %v2747 = vpop.f32.mrf.mxu0
        %v2748 = vadd.f32 0.0, %v2747
        %v2749 = vpop.f32.mrf.mxu0
        %v2750 = vpop.f32.mrf.mxu0
        %v2751 = vadd.f32 0.0, %v2750
        %v2752 = vpop.f32.mrf.mxu0
        %2753 = vmatprep.mubr.bf16.mxu0 %v2484
        %2754 = vmatmul.mubr.bf16.gmra.mxu0 %v2483
        %v2755 = vpop.f32.mrf.mxu0
        %v2756 = vadd.f32 0.0, %v2755
        %v2757 = vpop.f32.mrf.mxu0
        %v2758 = vpop.f32.mrf.mxu0
        %v2759 = vadd.f32 0.0, %v2758
        %v2760 = vpop.f32.mrf.mxu0
        %2761 = vmatprep.mubr.bf16.mxu0 %v2486
        %2762 = vmatmul.mubr.bf16.gmra.mxu0 %v2485
        %v2763 = vpop.f32.mrf.mxu0
        %v2764 = vadd.f32 0.0, %v2763
        %v2765 = vpop.f32.mrf.mxu0
        %v2766 = vpop.f32.mrf.mxu0
        %v2767 = vadd.f32 0.0, %v2766
        %v2768 = vpop.f32.mrf.mxu0
        %2769 = vmatprep.mubr.bf16.mxu0 %v2488
        %2770 = vmatmul.mubr.bf16.gmra.mxu0 %v2487
        %v2771 = vpop.f32.mrf.mxu0
        %v2772 = vadd.f32 0.0, %v2771
        %v2773 = vpop.f32.mrf.mxu0
        %v2774 = vpop.f32.mrf.mxu0
        %v2775 = vadd.f32 0.0, %v2774
        %v2776 = vpop.f32.mrf.mxu0
        %2777 = vdwg.mxu0
        %v2778 = vlaneseq
        %v2779 = vand.u32 %v2778, 127
        %vm2780 = vcmp.lt.s32.totalorder %v2779, 2
        %v2781 = vsel %vm2780, %v2652, -inf
        %v2782 = vsel %vm2780, %v2655, -inf
        %v2783 = vsel %vm2780, %v2660, -inf
        %v2784 = vsel %vm2780, %v2663, -inf
        %v2785 = vsel %vm2780, %v2668, -inf
        %v2786 = vsel %vm2780, %v2671, -inf
        %v2787 = vsel %vm2780, %v2676, -inf
        %v2788 = vsel %vm2780, %v2679, -inf
        %v2789 = vsel %vm2780, %v2684, -inf
        %v2790 = vsel %vm2780, %v2687, -inf
        %v2791 = vsel %vm2780, %v2692, -inf
        %v2792 = vsel %vm2780, %v2695, -inf
        %v2793 = vsel %vm2780, %v2700, -inf
        %v2794 = vsel %vm2780, %v2703, -inf
        %v2795 = vsel %vm2780, %v2708, -inf
        %v2796 = vsel %vm2780, %v2711, -inf
        %v2797 = vsel %vm2780, %v2716, -inf
        %v2798 = vsel %vm2780, %v2719, -inf
        %v2799 = vsel %vm2780, %v2724, -inf
        %v2800 = vsel %vm2780, %v2727, -inf
        %v2801 = vsel %vm2780, %v2732, -inf
        %v2802 = vsel %vm2780, %v2735, -inf
        %v2803 = vsel %vm2780, %v2740, -inf
        %v2804 = vsel %vm2780, %v2743, -inf
        %v2805 = vsel %vm2780, %v2748, -inf
        %v2806 = vsel %vm2780, %v2751, -inf
        %v2807 = vsel %vm2780, %v2756, -inf
        %v2808 = vsel %vm2780, %v2759, -inf
        %v2809 = vsel %vm2780, %v2764, -inf
        %v2810 = vsel %vm2780, %v2767, -inf
        %v2811 = vsel %vm2780, %v2772, -inf
        %v2812 = vsel %vm2780, %v2775, -inf
        %2813 = vmax.xlane.f32.xlu0 %v2781
        %v2814 = vpop.xlane.xlu0 %2813
        %2815 = vmax.xlane.f32.xlu0 %v2782
        %v2816 = vpop.xlane.xlu0 %2815
        %2817 = vmax.xlane.f32.xlu0 %v2783
        %v2818 = vpop.xlane.xlu0 %2817
        %2819 = vmax.xlane.f32.xlu0 %v2784
        %v2820 = vpop.xlane.xlu0 %2819
        %2821 = vmax.xlane.f32.xlu0 %v2785
        %v2822 = vpop.xlane.xlu0 %2821
        %2823 = vmax.xlane.f32.xlu0 %v2786
        %v2824 = vpop.xlane.xlu0 %2823
        %2825 = vmax.xlane.f32.xlu0 %v2787
        %v2826 = vpop.xlane.xlu0 %2825
        %2827 = vmax.xlane.f32.xlu0 %v2788
        %v2828 = vpop.xlane.xlu0 %2827
        %2829 = vmax.xlane.f32.xlu0 %v2789
        %v2830 = vpop.xlane.xlu0 %2829
        %2831 = vmax.xlane.f32.xlu0 %v2790
        %v2832 = vpop.xlane.xlu0 %2831
        %2833 = vmax.xlane.f32.xlu0 %v2791
        %v2834 = vpop.xlane.xlu0 %2833
        %2835 = vmax.xlane.f32.xlu0 %v2792
        %v2836 = vpop.xlane.xlu0 %2835
        %2837 = vmax.xlane.f32.xlu0 %v2793
        %v2838 = vpop.xlane.xlu0 %2837
        %2839 = vmax.xlane.f32.xlu0 %v2794
        %v2840 = vpop.xlane.xlu0 %2839
        %2841 = vmax.xlane.f32.xlu0 %v2795
        %v2842 = vpop.xlane.xlu0 %2841
        %2843 = vmax.xlane.f32.xlu0 %v2796
        %v2844 = vpop.xlane.xlu0 %2843
        %2845 = vmax.xlane.f32.xlu0 %v2797
        %v2846 = vpop.xlane.xlu0 %2845
        %2847 = vmax.xlane.f32.xlu0 %v2798
        %v2848 = vpop.xlane.xlu0 %2847
        %2849 = vmax.xlane.f32.xlu0 %v2799
        %v2850 = vpop.xlane.xlu0 %2849
        %2851 = vmax.xlane.f32.xlu0 %v2800
        %v2852 = vpop.xlane.xlu0 %2851
        %2853 = vmax.xlane.f32.xlu0 %v2801
        %v2854 = vpop.xlane.xlu0 %2853
        %2855 = vmax.xlane.f32.xlu0 %v2802
        %v2856 = vpop.xlane.xlu0 %2855
        %2857 = vmax.xlane.f32.xlu0 %v2803
        %v2858 = vpop.xlane.xlu0 %2857
        %2859 = vmax.xlane.f32.xlu0 %v2804
        %v2860 = vpop.xlane.xlu0 %2859
        %2861 = vmax.xlane.f32.xlu0 %v2805
        %v2862 = vpop.xlane.xlu0 %2861
        %2863 = vmax.xlane.f32.xlu0 %v2806
        %v2864 = vpop.xlane.xlu0 %2863
        %2865 = vmax.xlane.f32.xlu0 %v2807
        %v2866 = vpop.xlane.xlu0 %2865
        %2867 = vmax.xlane.f32.xlu0 %v2808
        %v2868 = vpop.xlane.xlu0 %2867
        %2869 = vmax.xlane.f32.xlu0 %v2809
        %v2870 = vpop.xlane.xlu0 %2869
        %2871 = vmax.xlane.f32.xlu0 %v2810
        %v2872 = vpop.xlane.xlu0 %2871
        %2873 = vmax.xlane.f32.xlu0 %v2811
        %v2874 = vpop.xlane.xlu0 %2873
        %2875 = vmax.xlane.f32.xlu0 %v2812
        %v2876 = vpop.xlane.xlu0 %2875
        %v2877 = vsub.f32 %v2781, %v2814
        %v2878 = vsub.f32 %v2782, %v2816
        %v2879 = vsub.f32 %v2783, %v2818
        %v2880 = vsub.f32 %v2784, %v2820
        %v2881 = vsub.f32 %v2785, %v2822
        %v2882 = vsub.f32 %v2786, %v2824
        %v2883 = vsub.f32 %v2787, %v2826
        %v2884 = vsub.f32 %v2788, %v2828
        %v2885 = vsub.f32 %v2789, %v2830
        %v2886 = vsub.f32 %v2790, %v2832
        %v2887 = vsub.f32 %v2791, %v2834
        %v2888 = vsub.f32 %v2792, %v2836
        %v2889 = vsub.f32 %v2793, %v2838
        %v2890 = vsub.f32 %v2794, %v2840
        %v2891 = vsub.f32 %v2795, %v2842
        %v2892 = vsub.f32 %v2796, %v2844
        %v2893 = vsub.f32 %v2797, %v2846
        %v2894 = vsub.f32 %v2798, %v2848
        %v2895 = vsub.f32 %v2799, %v2850
        %v2896 = vsub.f32 %v2800, %v2852
        %v2897 = vsub.f32 %v2801, %v2854
        %v2898 = vsub.f32 %v2802, %v2856
        %v2899 = vsub.f32 %v2803, %v2858
        %v2900 = vsub.f32 %v2804, %v2860
        %v2901 = vsub.f32 %v2805, %v2862
        %v2902 = vsub.f32 %v2806, %v2864
        %v2903 = vsub.f32 %v2807, %v2866
        %v2904 = vsub.f32 %v2808, %v2868
        %v2905 = vsub.f32 %v2809, %v2870
        %v2906 = vsub.f32 %v2810, %v2872
        %v2907 = vsub.f32 %v2811, %v2874
        %v2908 = vsub.f32 %v2812, %v2876
        %v2909 = vmul.f32 %v2877, 1.442695
        %v2910 = vpow.pop %v2909
        %v2911 = vmul.f32 %v2878, 1.442695
        %v2912 = vpow.pop %v2911
        %v2913 = vmul.f32 %v2879, 1.442695
        %v2914 = vpow.pop %v2913
        %v2915 = vmul.f32 %v2880, 1.442695
        %v2916 = vpow.pop %v2915
        %v2917 = vmul.f32 %v2881, 1.442695
        %v2918 = vpow.pop %v2917
        %v2919 = vmul.f32 %v2882, 1.442695
        %v2920 = vpow.pop %v2919
        %v2921 = vmul.f32 %v2883, 1.442695
        %v2922 = vpow.pop %v2921
        %v2923 = vmul.f32 %v2884, 1.442695
        %v2924 = vpow.pop %v2923
        %v2925 = vmul.f32 %v2885, 1.442695
        %v2926 = vpow.pop %v2925
        %v2927 = vmul.f32 %v2886, 1.442695
        %v2928 = vpow.pop %v2927
        %v2929 = vmul.f32 %v2887, 1.442695
        %v2930 = vpow.pop %v2929
        %v2931 = vmul.f32 %v2888, 1.442695
        %v2932 = vpow.pop %v2931
        %v2933 = vmul.f32 %v2889, 1.442695
        %v2934 = vpow.pop %v2933
        %v2935 = vmul.f32 %v2890, 1.442695
        %v2936 = vpow.pop %v2935
        %v2937 = vmul.f32 %v2891, 1.442695
        %v2938 = vpow.pop %v2937
        %v2939 = vmul.f32 %v2892, 1.442695
        %v2940 = vpow.pop %v2939
        %v2941 = vmul.f32 %v2893, 1.442695
        %v2942 = vpow.pop %v2941
        %v2943 = vmul.f32 %v2894, 1.442695
        %v2944 = vpow.pop %v2943
        %v2945 = vmul.f32 %v2895, 1.442695
        %v2946 = vpow.pop %v2945
        %v2947 = vmul.f32 %v2896, 1.442695
        %v2948 = vpow.pop %v2947
        %v2949 = vmul.f32 %v2897, 1.442695
        %v2950 = vpow.pop %v2949
        %v2951 = vmul.f32 %v2898, 1.442695
        %v2952 = vpow.pop %v2951
        %v2953 = vmul.f32 %v2899, 1.442695
        %v2954 = vpow.pop %v2953
        %v2955 = vmul.f32 %v2900, 1.442695
        %v2956 = vpow.pop %v2955
        %v2957 = vmul.f32 %v2901, 1.442695
        %v2958 = vpow.pop %v2957
        %v2959 = vmul.f32 %v2902, 1.442695
        %v2960 = vpow.pop %v2959
        %v2961 = vmul.f32 %v2903, 1.442695
        %v2962 = vpow.pop %v2961
        %v2963 = vmul.f32 %v2904, 1.442695
        %v2964 = vpow.pop %v2963
        %v2965 = vmul.f32 %v2905, 1.442695
        %v2966 = vpow.pop %v2965
        %v2967 = vmul.f32 %v2906, 1.442695
        %v2968 = vpow.pop %v2967
        %v2969 = vmul.f32 %v2907, 1.442695
        %v2970 = vpow.pop %v2969
        %v2971 = vmul.f32 %v2908, 1.442695
        %v2972 = vpow.pop %v2971
        %2973 = vadd.xlane.f32.xlu0 %v2910
        %v2974 = vpop.xlane.xlu0 %2973
        %2975 = vadd.xlane.f32.xlu0 %v2912
        %v2976 = vpop.xlane.xlu0 %2975
        %2977 = vadd.xlane.f32.xlu0 %v2914
        %v2978 = vpop.xlane.xlu0 %2977
        %2979 = vadd.xlane.f32.xlu0 %v2916
        %v2980 = vpop.xlane.xlu0 %2979
        %2981 = vadd.xlane.f32.xlu0 %v2918
        %v2982 = vpop.xlane.xlu0 %2981
        %2983 = vadd.xlane.f32.xlu0 %v2920
        %v2984 = vpop.xlane.xlu0 %2983
        %2985 = vadd.xlane.f32.xlu0 %v2922
        %v2986 = vpop.xlane.xlu0 %2985
        %2987 = vadd.xlane.f32.xlu0 %v2924
        %v2988 = vpop.xlane.xlu0 %2987
        %2989 = vadd.xlane.f32.xlu0 %v2926
        %v2990 = vpop.xlane.xlu0 %2989
        %2991 = vadd.xlane.f32.xlu0 %v2928
        %v2992 = vpop.xlane.xlu0 %2991
        %2993 = vadd.xlane.f32.xlu0 %v2930
        %v2994 = vpop.xlane.xlu0 %2993
        %2995 = vadd.xlane.f32.xlu0 %v2932
        %v2996 = vpop.xlane.xlu0 %2995
        %2997 = vadd.xlane.f32.xlu0 %v2934
        %v2998 = vpop.xlane.xlu0 %2997
        %2999 = vadd.xlane.f32.xlu0 %v2936
        %v3000 = vpop.xlane.xlu0 %2999
        %3001 = vadd.xlane.f32.xlu0 %v2938
        %v3002 = vpop.xlane.xlu0 %3001
        %3003 = vadd.xlane.f32.xlu0 %v2940
        %v3004 = vpop.xlane.xlu0 %3003
        %3005 = vadd.xlane.f32.xlu0 %v2942
        %v3006 = vpop.xlane.xlu0 %3005
        %3007 = vadd.xlane.f32.xlu0 %v2944
        %v3008 = vpop.xlane.xlu0 %3007
        %3009 = vadd.xlane.f32.xlu0 %v2946
        %v3010 = vpop.xlane.xlu0 %3009
        %3011 = vadd.xlane.f32.xlu0 %v2948
        %v3012 = vpop.xlane.xlu0 %3011
        %3013 = vadd.xlane.f32.xlu0 %v2950
        %v3014 = vpop.xlane.xlu0 %3013
        %3015 = vadd.xlane.f32.xlu0 %v2952
        %v3016 = vpop.xlane.xlu0 %3015
        %3017 = vadd.xlane.f32.xlu0 %v2954
        %v3018 = vpop.xlane.xlu0 %3017
        %3019 = vadd.xlane.f32.xlu0 %v2956
        %v3020 = vpop.xlane.xlu0 %3019
        %3021 = vadd.xlane.f32.xlu0 %v2958
        %v3022 = vpop.xlane.xlu0 %3021
        %3023 = vadd.xlane.f32.xlu0 %v2960
        %v3024 = vpop.xlane.xlu0 %3023
        %3025 = vadd.xlane.f32.xlu0 %v2962
        %v3026 = vpop.xlane.xlu0 %3025
        %3027 = vadd.xlane.f32.xlu0 %v2964
        %v3028 = vpop.xlane.xlu0 %3027
        %3029 = vadd.xlane.f32.xlu0 %v2966
        %v3030 = vpop.xlane.xlu0 %3029
        %3031 = vadd.xlane.f32.xlu0 %v2968
        %v3032 = vpop.xlane.xlu0 %3031
        %3033 = vadd.xlane.f32.xlu0 %v2970
        %v3034 = vpop.xlane.xlu0 %3033
        %3035 = vadd.xlane.f32.xlu0 %v2972
        %v3036 = vpop.xlane.xlu0 %3035
        %v3037 = vrcp.pop %v2974
        %v3038 = vmul.f32 %v2910, %v3037
        %v3039 = vrcp.pop %v2976
        %v3040 = vmul.f32 %v2912, %v3039
        %v3041 = vrcp.pop %v2978
        %v3042 = vmul.f32 %v2914, %v3041
        %v3043 = vrcp.pop %v2980
        %v3044 = vmul.f32 %v2916, %v3043
        %v3045 = vrcp.pop %v2982
        %v3046 = vmul.f32 %v2918, %v3045
        %v3047 = vrcp.pop %v2984
        %v3048 = vmul.f32 %v2920, %v3047
        %v3049 = vrcp.pop %v2986
        %v3050 = vmul.f32 %v2922, %v3049
        %v3051 = vrcp.pop %v2988
        %v3052 = vmul.f32 %v2924, %v3051
        %v3053 = vrcp.pop %v2990
        %v3054 = vmul.f32 %v2926, %v3053
        %v3055 = vrcp.pop %v2992
        %v3056 = vmul.f32 %v2928, %v3055
        %v3057 = vrcp.pop %v2994
        %v3058 = vmul.f32 %v2930, %v3057
        %v3059 = vrcp.pop %v2996
        %v3060 = vmul.f32 %v2932, %v3059
        %v3061 = vrcp.pop %v2998
        %v3062 = vmul.f32 %v2934, %v3061
        %v3063 = vrcp.pop %v3000
        %v3064 = vmul.f32 %v2936, %v3063
        %v3065 = vrcp.pop %v3002
        %v3066 = vmul.f32 %v2938, %v3065
        %v3067 = vrcp.pop %v3004
        %v3068 = vmul.f32 %v2940, %v3067
        %v3069 = vrcp.pop %v3006
        %v3070 = vmul.f32 %v2942, %v3069
        %v3071 = vrcp.pop %v3008
        %v3072 = vmul.f32 %v2944, %v3071
        %v3073 = vrcp.pop %v3010
        %v3074 = vmul.f32 %v2946, %v3073
        %v3075 = vrcp.pop %v3012
        %v3076 = vmul.f32 %v2948, %v3075
        %v3077 = vrcp.pop %v3014
        %v3078 = vmul.f32 %v2950, %v3077
        %v3079 = vrcp.pop %v3016
        %v3080 = vmul.f32 %v2952, %v3079
        %v3081 = vrcp.pop %v3018
        %v3082 = vmul.f32 %v2954, %v3081
        %v3083 = vrcp.pop %v3020
        %v3084 = vmul.f32 %v2956, %v3083
        %v3085 = vrcp.pop %v3022
        %v3086 = vmul.f32 %v2958, %v3085
        %v3087 = vrcp.pop %v3024
        %v3088 = vmul.f32 %v2960, %v3087
        %v3089 = vrcp.pop %v3026
        %v3090 = vmul.f32 %v2962, %v3089
        %v3091 = vrcp.pop %v3028
        %v3092 = vmul.f32 %v2964, %v3091
        %v3093 = vrcp.pop %v3030
        %v3094 = vmul.f32 %v2966, %v3093
        %v3095 = vrcp.pop %v3032
        %v3096 = vmul.f32 %v2968, %v3095
        %v3097 = vrcp.pop %v3034
        %v3098 = vmul.f32 %v2970, %v3097
        %v3099 = vrcp.pop %v3036
        %v3100 = vmul.f32 %v2972, %v3099
        %3101 = vst [vmem:[%s369] sm:$0xff] %v3038
        %3102 = vst [vmem:[%s369 + $0x8] sm:$0xff] %v3040
        %3103 = vst [vmem:[%s369 + $0x10] sm:$0xff] %v3042
        %3104 = vst [vmem:[%s369 + $0x18] sm:$0xff] %v3044
        %3105 = vst [vmem:[%s369 + $0x20] sm:$0xff] %v3046
        %3106 = vst [vmem:[%s369 + $0x28] sm:$0xff] %v3048
        %3107 = vst [vmem:[%s369 + $0x30] sm:$0xff] %v3050
        %3108 = vst [vmem:[%s369 + $0x38] sm:$0xff] %v3052
        %3109 = vst [vmem:[%s369 + $0x40] sm:$0xff] %v3054
        %3110 = vst [vmem:[%s369 + $0x48] sm:$0xff] %v3056
        %3111 = vst [vmem:[%s369 + $0x50] sm:$0xff] %v3058
        %3112 = vst [vmem:[%s369 + $0x58] sm:$0xff] %v3060
        %3113 = vst [vmem:[%s369 + $0x60] sm:$0xff] %v3062
        %3114 = vst [vmem:[%s369 + $0x68] sm:$0xff] %v3064
        %3115 = vst [vmem:[%s369 + $0x70] sm:$0xff] %v3066
        %3116 = vst [vmem:[%s369 + $0x78] sm:$0xff] %v3068
        %3117 = vst [vmem:[%s369 + $0x80] sm:$0xff] %v3070
        %3118 = vst [vmem:[%s369 + $0x88] sm:$0xff] %v3072
        %3119 = vst [vmem:[%s369 + $0x90] sm:$0xff] %v3074
        %3120 = vst [vmem:[%s369 + $0x98] sm:$0xff] %v3076
        %3121 = vst [vmem:[%s369 + $0xa0] sm:$0xff] %v3078
        %3122 = vst [vmem:[%s369 + $0xa8] sm:$0xff] %v3080
        %3123 = vst [vmem:[%s369 + $0xb0] sm:$0xff] %v3082
        %3124 = vst [vmem:[%s369 + $0xb8] sm:$0xff] %v3084
        %3125 = vst [vmem:[%s369 + $0xc0] sm:$0xff] %v3086
        %3126 = vst [vmem:[%s369 + $0xc8] sm:$0xff] %v3088
        %3127 = vst [vmem:[%s369 + $0xd0] sm:$0xff] %v3090
        %3128 = vst [vmem:[%s369 + $0xd8] sm:$0xff] %v3092
        %3129 = vst [vmem:[%s369 + $0xe0] sm:$0xff] %v3094
        %3130 = vst [vmem:[%s369 + $0xe8] sm:$0xff] %v3096
        %3131 = vst [vmem:[%s369 + $0xf0] sm:$0xff] %v3098
        %3132 = vst [vmem:[%s369 + $0xf8] sm:$0xff] %v3100
        %s3133 = sand.u32 %s172, 1
        %s3134 = scalar_lea.sflag [#allocation4], %s3133
        %s3135 = sand.u32 %s172, 1
        %s3136 = smul.addr %s3135, 256
        %s3137 = scalar_lea.vmem [#allocation13], %s3136
        // Predicated region
        $region69: #{_forward_masked.1} parent=43 // pred_check
          %p3138 = pneg %p182
        $region70: #{_forward_masked.1} parent=43 // pred_check_branch
          %3140 = sbr.rel (%p3138) target = $region72
        $region71: #{_forward_masked.1} parent=43 // pred_region
          %s3141 = smul.u32 32, %s28
          %s3143 = ssub.s32 4096, 4096
          %3144 = vsyncadd %s3134, %s3143
          %s3145 = smul.addr %s3141, 128
          %s3146 = scalar_lea.hbm %s6, %s3145
          %s3147 = sshll.u32 %s3137, 4
          %s3148 = int_to_ptr.vmem [resolvable:$true] %s3147
          %3153 = dma.vmem_to_hbm [thread:$0]  %s3148, 4096, %s3146, %s3134, 128, 128, 8
        $region72: #{_forward_masked.1} parent=43 // pred_fallthru
          _
      $region44: #{_forward_masked.1} parent=5 // pred_fallthru
        _
      %p3154 = scmp.le.s32.totalorder 2, %s23
      // Predicated region
      $region73: #{_forward_masked.1} parent=5 // pred_check
        %p3155 = pneg %p3154
      $region74: #{_forward_masked.1} parent=5 // pred_check_branch
        %3157 = sbr.rel (%p3155) target = $region76
      $region75: #{_forward_masked.1} parent=5 // pred_region
        %s3158 = ssub.s32 %s23, 2
        // Predicated region
        $region77: #{_forward_masked.1} parent=75 // pred_check
          %p3159 = pneg %p188
        $region78: #{_forward_masked.1} parent=75 // pred_check_branch
          %3161 = sbr.rel (%p3159) target = $region80
        $region79: #{_forward_masked.1} parent=75 // pred_region
          %s3162 = sand.u32 %s173, 1
          %s3163 = scalar_lea.sflag [#allocation4], %s3162
          %s3164 = sand.u32 %s173, 1
          %s3165 = smul.addr %s3164, 256
          %s3166 = scalar_lea.vmem [#allocation13], %s3165
          %3167 = dma.done %s3163, 4096
        $region80: #{_forward_masked.1} parent=75 // pred_fallthru
          _
      $region76: #{_forward_masked.1} parent=5 // pred_fallthru
        _
    $region6: #{_forward_masked.1} parent=1 // loop_footer
      %s27 = sadd.s32 1, %s23
    $region7: #{_forward_masked.1} parent=1 // loop_footer_branch
      %22 = sbr.rel target = $region3
    $region8: #{_forward_masked.1} parent=1 // loop_exit
      _
    %3168 = vsyncpa [#allocation3], 1
    %s3169 = scalar_lea.sflag [#allocation3], 1
    %3170 = vsyncpa %s3169, 1
    %3171 = vsyncpa [#allocation6], 1
    %3172 = vsyncpa [#allocation9], 1
    %3173 = vsyncpa [#allocation12], 1
    %s3174 = scalar_lea.sflag [#allocation12], 1
    %3175 = vsyncpa %s3174, 1
    %3176 = vsyncpa [#allocation4], 1
    %s3177 = scalar_lea.sflag [#allocation4], 1
    %3178 = vsyncpa %s3177, 1

</llo_original>
